<compile_context>
chip_gen: v6e
topology: v6e:2x2x1
jax: 0.10.0
libtpu: 0.0.40
codegen_flags: <defaults>
</compile_context>

<pallas_src>
import jax
import jax.numpy as jnp
import numpy as np
from jax.experimental import pallas as pl
from jax.experimental.pallas import tpu as pltpu


def _leaky(x, slope=0.1):
    # LeakyReLU(0.1): max(x, 0.1*x)
    return jnp.maximum(x, slope * x)


def dablock_kernel(x_ref, code_ref, wg1_ref, wg2_ref, w1x1_ref, spool_ref,
                   ttile_ref, wm1f_ref, wm1d_ref, bm1_ref, wm2_ref, bm2_ref,
                   out_ref):
    # x_ref   : (BN, H, W*C)  lane-dense activations for BN samples
    # code_ref: (BN, 1, 16)   degradation codes
    # out_ref : (BN, H, W*C)
    BN, H, WC = x_ref.shape
    BNH = BN * H
    C = ttile_ref.shape[0]            # channels (64)
    G = w1x1_ref.shape[0]             # lane-group width of the 1x1 weight
    f32 = jnp.float32

    x2 = x_ref[...].astype(f32)                             # (BN, H, WC)
    code = code_ref[...][:, 0, :].astype(f32)               # (BN, 16)

    # --- generate_kernel MLP: 16 -> 64 -> 9*W*C (merged, W-tiled, bf16 MXU) ---
    hidden = _leaky(jnp.dot(code, wg1_ref[...], preferred_element_type=f32))   # (BN,64)
    ker_all = jnp.dot(hidden.astype(jnp.bfloat16), wg2_ref[...],
                      preferred_element_type=f32)            # (BN, 9*WC) f32

    def tap(t):                                              # (BN, 1, WC)
        return ker_all[:, t * WC:(t + 1) * WC][:, None, :]

    # --- dynamic depthwise 3x3 conv (padding=1); shifts = roll + edge mask ---
    # Column (W) shifts: lane rolls on the 2-D flattened view + lane mask.
    x2f = x2.reshape(BNH, WC)
    lane2 = jax.lax.broadcasted_iota(jnp.int32, (BNH, WC), 1)
    x_m = jnp.where(lane2 >= C,
                    pltpu.roll(x2f, shift=C, axis=1), 0.0).reshape(BN, H, WC)       # col x-1
    x_p = jnp.where(lane2 < WC - C,
                    pltpu.roll(x2f, shift=WC - C, axis=1), 0.0).reshape(BN, H, WC)  # col x+1

    # Weighted sums per kernel row (taps t = i*3 + j, i = row, j = col).
    s_top = tap(0) * x_m + tap(1) * x2 + tap(2) * x_p        # needs input row y-1
    s_mid = tap(3) * x_m + tap(4) * x2 + tap(5) * x_p        # centre row
    s_bot = tap(6) * x_m + tap(7) * x2 + tap(8) * x_p        # needs input row y+1

    # Row shifts: sublane rolls on the flattened view; sample-boundary rows are
    # masked to zero, so wrap-around across samples is harmless.
    row2 = jax.lax.broadcasted_iota(jnp.int32, (BN, H, WC), 1).reshape(BNH, WC)
    down = jnp.where(row2 >= 1,
                     pltpu.roll(s_top.reshape(BNH, WC), shift=1, axis=0), 0.0)
    up = jnp.where(row2 <= H - 2,
                   pltpu.roll(s_bot.reshape(BNH, WC), shift=BNH - 1, axis=0), 0.0)
    fea_spa = _leaky(s_mid.reshape(BNH, WC) + down + up)     # (BN*H, WC)

    # --- conv_1x1: per 128-lane-group block-diagonal matmul (bf16, f32 acc) ---
    fea2d = fea_spa.astype(jnp.bfloat16)
    w_g = w1x1_ref[...]                                      # (G, G) bf16
    parts = [jnp.dot(fea2d[:, g * G:(g + 1) * G], w_g, preferred_element_type=f32)
             for g in range(WC // G)]
    fea_da = jnp.concatenate(parts, axis=1) if len(parts) > 1 else parts[0]
    fea_da3 = fea_da.reshape(BN, H, WC)

    # --- CA layer: global avg pool (H-sum + pooling matmul) + MLP + sigmoid ---
    mean_fea = jnp.dot(jnp.sum(fea_da3, axis=1), spool_ref[...],
                       preferred_element_type=f32)           # (BN, C)
    h1 = _leaky(jnp.dot(mean_fea, wm1f_ref[...], preferred_element_type=f32)
                + jnp.dot(code, wm1d_ref[...], preferred_element_type=f32)
                + bm1_ref[...])                               # (BN, 16)
    att = jax.nn.sigmoid(jnp.dot(h1, wm2_ref[...], preferred_element_type=f32)
                         + bm2_ref[...])                      # (BN, C)
    gate = jnp.dot(att, ttile_ref[...], preferred_element_type=f32)   # (BN, WC)

    # --- out = fea_da + fea_da*att + x  (re-read x_ref; lane-dense store) ---
    out = fea_da3 * (1.0 + gate[:, None, :]) + x_ref[...].astype(f32)
    out_ref[...] = out.astype(out_ref.dtype)


def _prepare_kernel_params(params, c, h, w):
    """Re-layout weights into the lane-dense (W*C) kernel layout (bakes h, w)."""
    WC = w * c
    # Wg2: tap-major and tiled along W so the matmul output is already in the
    # lane-dense order: Wg2_big[hid, t*W*C + x*C + ch] = Wg2_pt[ch*9 + t, hid]
    Wg2_taps = jnp.transpose(params["Wg2_pt"].reshape(c, 9, 64), (2, 1, 0))   # (64,9,C)
    Wg2_big = jnp.broadcast_to(Wg2_taps[:, :, None, :],
                               (64, 9, w, c)).reshape(64, 9 * WC)
    Wg2_big = Wg2_big.astype(jnp.bfloat16)
    # 1x1 conv: one block-diagonal weight per lane group (re-used per group).
    if 128 % c == 0:
        G = 128
    elif c % 128 == 0:
        G = c
    else:
        G = WC                       # fallback: full block-diagonal
    W1x1_G = jnp.kron(jnp.eye(G // c, dtype=jnp.float32),
                      params["W1x1_t"]).astype(jnp.bfloat16)                  # (G, G)
    # pooling (mean over H*W within lanes) and channel-tiling helper matrices
    S_pool = jnp.tile(jnp.eye(c, dtype=jnp.float32), (w, 1)) / float(h * w)   # (WC, C)
    T_tile = jnp.tile(jnp.eye(c, dtype=jnp.float32), (1, w))                  # (C, WC)
    return {"Wg2_big": Wg2_big, "W1x1_G": W1x1_G, "S_pool": S_pool, "T_tile": T_tile}


def dablock_apply_lane_dense(x_n, code_n, params, kp, *, block_n=32):
    """Fused DABlock on lane-dense activations.

    x_n: (N, H, W*C), code_n: (N, 1, 16).  Chained DABlocks should stay in
    this layout (no NCHW transposes between blocks).
    block_n is sweepable; ~32 is a good default (cap near 32 on v7x, which has
    half the VMEM of v5e/v6e).
    """
    N, h, WC = x_n.shape
    assert WC % 128 == 0, "w*c must be a multiple of 128 for the lane-dense layout"
    assert h % 8 == 0, "h must be a multiple of 8 (sublane tiling)"

    # bn: biggest divisor of N <= block_n that keeps >= 2 grid steps, so the
    # 'parallel' grid axis can shard across both v7x TensorCores.
    block_n = max(1, block_n)
    divisors = [d for d in range(1, N + 1) if N % d == 0]
    cands = [d for d in divisors if d <= block_n and N // d >= 2]
    if not cands:
        cands = [d for d in divisors if d <= block_n] or [1]
    bn = max(cands)

    weights = (params["Wg1"], kp["Wg2_big"], kp["W1x1_G"], kp["S_pool"],
               kp["T_tile"], params["Wm1_fea"], params["Wm1_deg"],
               params["b_m1"], params["Wm2_t"], params["b_m2"])
    weight_bytes = sum(wgt.size * wgt.dtype.itemsize for wgt in weights)
    act_bytes = bn * h * WC * 4
    # 4 double-buffered I/O activation blocks + ~10 live f32 intermediates
    # + generated per-pixel kernels + double-buffered weights + headroom.
    vmem_est = 14 * act_bytes + bn * 9 * WC * 4 + 2 * weight_bytes + (4 << 20)
    vmem_limit = int(min(max(vmem_est, 32 << 20), 100 << 20))

    grid_spec = pltpu.PrefetchScalarGridSpec(
        num_scalar_prefetch=0,
        grid=(N // bn,),
        in_specs=[
            pl.BlockSpec((bn, h, WC), lambda i: (i, 0, 0)),       # activations
            pl.BlockSpec((bn, 1, 16), lambda i: (i, 0, 0)),       # codes
            pl.BlockSpec(params["Wg1"].shape, lambda i: (0, 0)),  # Wg1
            pl.BlockSpec(kp["Wg2_big"].shape, lambda i: (0, 0)),  # Wg2 (tap+W tiled)
            pl.BlockSpec(kp["W1x1_G"].shape, lambda i: (0, 0)),   # 1x1 group weight
            pl.BlockSpec(kp["S_pool"].shape, lambda i: (0, 0)),   # pooling matrix
            pl.BlockSpec(kp["T_tile"].shape, lambda i: (0, 0)),   # channel tiling
            pl.BlockSpec(params["Wm1_fea"].shape, lambda i: (0, 0)),
            pl.BlockSpec(params["Wm1_deg"].shape, lambda i: (0, 0)),
            pl.BlockSpec(params["b_m1"].shape, lambda i: (0, 0)),
            pl.BlockSpec(params["Wm2_t"].shape, lambda i: (0, 0)),
            pl.BlockSpec(params["b_m2"].shape, lambda i: (0, 0)),
        ],
        out_specs=pl.BlockSpec((bn, h, WC), lambda i: (i, 0, 0)),
    )

    return pl.pallas_call(
        dablock_kernel,
        out_shape=jax.ShapeDtypeStruct((N, h, WC), x_n.dtype),
        grid_spec=grid_spec,
        compiler_params=pltpu.CompilerParams(
            dimension_semantics=("parallel",),
            vmem_limit_bytes=vmem_limit),
    )(x_n, code_n, params["Wg1"], kp["Wg2_big"], kp["W1x1_G"], kp["S_pool"],
      kp["T_tile"], params["Wm1_fea"], params["Wm1_deg"], params["b_m1"],
      params["Wm2_t"], params["b_m2"])


def dablock_forward(x, code_array, params, *, block_n=32):
    """x: (b,u,v,c,h,w) float32, code_array: (b,16,u,v) float32 (PyTorch layout).

    The NCHW <-> lane-dense transposes below are layout glue for parity with
    the PyTorch module; when stacking several DABlocks, keep activations in
    the (N, H, W*C) layout and call dablock_apply_lane_dense directly to avoid
    the extra HBM round trips.
    """
    b, u, v, c, h, w = x.shape
    N = b * u * v
    WC = w * c
    x_n = jnp.transpose(x.reshape(N, c, h, w), (0, 2, 3, 1)).reshape(N, h, WC)
    code_n = jnp.transpose(code_array, (0, 2, 3, 1)).reshape(N, 1, 16)
    kp = _prepare_kernel_params(params, c, h, w)
    out_n = dablock_apply_lane_dense(x_n, code_n, params, kp, block_n=block_n)
    out = out_n.reshape(N, h, w, c)
    return jnp.transpose(out, (0, 3, 1, 2)).reshape(b, u, v, c, h, w)


def init_params(key, channels=64):
    """Deterministic synthetic parameters (PyTorch Conv2d 1x1 weight shapes)."""
    keys = jax.random.split(key, 7)
    # generate_kernel: Conv2d(16,64,1,bias=False) ; Conv2d(64, 64*9, 1, bias=False)
    Wg1_pt = 0.1 * jax.random.normal(keys[0], (64, 16), jnp.float32)
    Wg2_pt = 0.05 * jax.random.normal(keys[1], (channels * 9, 64), jnp.float32)
    # conv_1x1: Conv2d(c, c, 1, bias=False)
    W1x1_pt = 0.1 * jax.random.normal(keys[2], (channels, channels), jnp.float32)
    # ca_layer.mlp: Conv2d(80,16,1)+bias ; Conv2d(16,64,1)+bias
    Wm1_pt = 0.1 * jax.random.normal(keys[3], (16, channels + 16), jnp.float32)
    bm1_pt = 0.1 * jax.random.normal(keys[4], (16,), jnp.float32)
    Wm2_pt = 0.1 * jax.random.normal(keys[5], (channels, 16), jnp.float32)
    bm2_pt = 0.1 * jax.random.normal(keys[6], (channels,), jnp.float32)

    return {
        "Wg1": Wg1_pt.T,                        # (16, 64)
        "Wg2_pt": Wg2_pt,                       # (C*9, 64)  PyTorch layout
        "W1x1_t": W1x1_pt.T,                    # (C_in, C_out)
        "Wm1_fea": Wm1_pt[:, :channels].T,      # (C, 16)
        "Wm1_deg": Wm1_pt[:, channels:].T,      # (16, 16)
        "b_m1": bm1_pt.reshape(1, 16),
        "Wm2_t": Wm2_pt.T,                      # (16, C)
        "b_m2": bm2_pt.reshape(1, channels),
    }


def dablock_reference(x, code_array, params):
    """Pure-JAX reference mirroring the PyTorch semantics (NCHW)."""
    b, u, v, c, h, w = x.shape
    N = b * u * v
    fea_in = x.reshape(N, c, h, w)
    code_n = jnp.transpose(code_array, (0, 2, 3, 1)).reshape(N, 16)

    hid = _leaky(code_n @ params["Wg1"])                           # (N, 64)
    gen = hid @ params["Wg2_pt"].T                                 # (N, c*9)
    ker = gen.reshape(N, c, 3, 3)

    fp = jnp.pad(fea_in, ((0, 0), (0, 0), (1, 1), (1, 1)))
    out_c = jnp.zeros_like(fea_in)
    for i in range(3):
        for j in range(3):
            out_c = out_c + fp[:, :, i:i + h, j:j + w] * ker[:, :, i, j][:, :, None, None]
    fea_spa = _leaky(out_c)

    fea_da = jnp.einsum('nchw,cd->ndhw', fea_spa, params["W1x1_t"])
    mean_fea = fea_da.mean(axis=(2, 3))                            # (N, c)
    h1 = _leaky(mean_fea @ params["Wm1_fea"] + code_n @ params["Wm1_deg"] + params["b_m1"])
    att = jax.nn.sigmoid(h1 @ params["Wm2_t"] + params["b_m2"])    # (N, c)
    out = fea_da + fea_da * att[:, :, None, None] + fea_in
    return out.reshape(b, u, v, c, h, w)


if __name__ == "__main__":
    key = jax.random.PRNGKey(0)
    kx, kc, kparam = jax.random.split(key, 3)

    # channels must be 64 for DABlock's internal wiring (CA_Layer(80,64), 64*9 taps)
    b, u, v, c, h, w = 4, 2, 2, 64, 8, 8      # N = 16 samples -> grid of 2 steps of 8
    x = jax.random.normal(kx, (b, u, v, c, h, w), jnp.float32)
    code_array = jax.random.normal(kc, (b, 16, u, v), jnp.float32)
    params = init_params(kparam, channels=c)

    out = dablock_forward(x, code_array, params, block_n=32)
    out = jax.block_until_ready(out)

    ref = dablock_reference(x, code_array, params)
    assert out.shape == (b, u, v, c, h, w)
    # bf16 MXU operands (f32 accumulation) -> slightly looser tolerance than pure f32
    np.testing.assert_allclose(np.asarray(out), np.asarray(ref), rtol=2e-2, atol=2e-2)
    print("KERNEL_OK")
</pallas_src>

<mosaic_0001>
module attributes {stable_mosaic.version = 11 : i64} {
  func.func @dablock_kernel(%arg0: i32, %arg1: memref<8x8x512xf32, #tpu.memory_space<vmem>>, %arg2: memref<8x1x16xf32, #tpu.memory_space<vmem>>, %arg3: memref<16x64xf32, #tpu.memory_space<vmem>>, %arg4: memref<64x4608xbf16, #tpu.memory_space<vmem>>, %arg5: memref<128x128xbf16, #tpu.memory_space<vmem>>, %arg6: memref<512x64xf32, #tpu.memory_space<vmem>>, %arg7: memref<64x512xf32, #tpu.memory_space<vmem>>, %arg8: memref<64x16xf32, #tpu.memory_space<vmem>>, %arg9: memref<16x16xf32, #tpu.memory_space<vmem>>, %arg10: memref<1x16xf32, #tpu.memory_space<vmem>>, %arg11: memref<16x64xf32, #tpu.memory_space<vmem>>, %arg12: memref<1x64xf32, #tpu.memory_space<vmem>>, %arg13: memref<8x8x512xf32, #tpu.memory_space<vmem>>) attributes {dimension_semantics = [#tpu.dimension_semantics<parallel>], iteration_bounds = array<i64: 2>, scalar_prefetch = 0 : i64, scratch_operands = 0 : i64, tpu.core_type = #tpu.core_type<tc>, window_params = [{transform_indices = @transform_0, window_bounds = array<i64: 8, 8, 512>}, {transform_indices = @transform_1, window_bounds = array<i64: 8, 1, 16>}, {pipeline_mode = #tpu.pipeline_mode<synchronous>, transform_indices = @transform_2, window_bounds = array<i64: 16, 64>}, {pipeline_mode = #tpu.pipeline_mode<synchronous>, transform_indices = @transform_3, window_bounds = array<i64: 64, 4608>}, {pipeline_mode = #tpu.pipeline_mode<synchronous>, transform_indices = @transform_4, window_bounds = array<i64: 128, 128>}, {pipeline_mode = #tpu.pipeline_mode<synchronous>, transform_indices = @transform_5, window_bounds = array<i64: 512, 64>}, {pipeline_mode = #tpu.pipeline_mode<synchronous>, transform_indices = @transform_6, window_bounds = array<i64: 64, 512>}, {pipeline_mode = #tpu.pipeline_mode<synchronous>, transform_indices = @transform_7, window_bounds = array<i64: 64, 16>}, {pipeline_mode = #tpu.pipeline_mode<synchronous>, transform_indices = @transform_8, window_bounds = array<i64: 16, 16>}, {pipeline_mode = #tpu.pipeline_mode<synchronous>, transform_indices = @transform_9, window_bounds = array<i64: 1, 16>}, {pipeline_mode = #tpu.pipeline_mode<synchronous>, transform_indices = @transform_10, window_bounds = array<i64: 16, 64>}, {pipeline_mode = #tpu.pipeline_mode<synchronous>, transform_indices = @transform_11, window_bounds = array<i64: 1, 64>}, {transform_indices = @transform_12, window_bounds = array<i64: 8, 8, 512>}]} {
    %c0 = arith.constant 0 : index
    %c0_0 = arith.constant 0 : index
    %c0_1 = arith.constant 0 : index
    %0 = vector.load %arg1[%c0, %c0_0, %c0_1] : memref<8x8x512xf32, #tpu.memory_space<vmem>>, vector<8x8x512xf32>
    %c0_2 = arith.constant 0 : index
    %c0_3 = arith.constant 0 : index
    %c0_4 = arith.constant 0 : index
    %1 = vector.load %arg2[%c0_2, %c0_3, %c0_4] : memref<8x1x16xf32, #tpu.memory_space<vmem>>, vector<8x1x16xf32>
    %2 = vector.shape_cast %1 : vector<8x1x16xf32> to vector<8x16xf32>
    %c0_5 = arith.constant 0 : index
    %c0_6 = arith.constant 0 : index
    %3 = vector.load %arg3[%c0_5, %c0_6] : memref<16x64xf32, #tpu.memory_space<vmem>>, vector<16x64xf32>
    %cst = arith.constant dense<0.000000e+00> : vector<8x64xf32>
    %4 = tpu.matmul %2, %3, %cst {dimension_numbers = #tpu.dot_dimension_numbers<[1], [0], [0], [1], [0, 0, 1, 1], [], []>} : vector<8x16xf32>, vector<16x64xf32>, vector<8x64xf32> -> vector<8x64xf32>
    %cst_7 = arith.constant 1.000000e-01 : f32
    %5 = vector.broadcast %cst_7 : f32 to vector<8x64xf32>
    %6 = arith.mulf %5, %4 : vector<8x64xf32>
    %7 = arith.maximumf %4, %6 : vector<8x64xf32>
    %8 = arith.truncf %7 : vector<8x64xf32> to vector<8x64xbf16>
    %c0_8 = arith.constant 0 : index
    %c0_9 = arith.constant 0 : index
    %9 = vector.load %arg4[%c0_8, %c0_9] : memref<64x4608xbf16, #tpu.memory_space<vmem>>, vector<64x4608xbf16>
    %cst_10 = arith.constant dense<0.000000e+00> : vector<8x4608xf32>
    %10 = tpu.matmul %8, %9, %cst_10 {dimension_numbers = #tpu.dot_dimension_numbers<[1], [0], [0], [1], [0, 0, 1, 1], [], []>} : vector<8x64xbf16>, vector<64x4608xbf16>, vector<8x4608xf32> -> vector<8x4608xf32>
    %11 = vector.shape_cast %0 : vector<8x8x512xf32> to vector<64x512xf32>
    %12 = tpu.iota {dimensions = array<i32: 1>} : vector<64x512xi32>
    %c64_i32 = arith.constant 64 : i32
    %13 = vector.broadcast %c64_i32 : i32 to vector<64x512xi32>
    %14 = arith.cmpi sge, %12, %13 : vector<64x512xi32>
    %c64_i32_11 = arith.constant 64 : i32
    %15 = tpu.dynamic_rotate %11 by %c64_i32_11 dim 1 : vector<64x512xf32>, i32 -> vector<64x512xf32>
    %cst_12 = arith.constant 0.000000e+00 : f32
    %16 = vector.broadcast %cst_12 : f32 to vector<64x512xf32>
    %17 = arith.select %14, %15, %16 : vector<64x512xi1>, vector<64x512xf32>
    %18 = vector.shape_cast %17 : vector<64x512xf32> to vector<8x8x512xf32>
    %c448_i32 = arith.constant 448 : i32
    %19 = vector.broadcast %c448_i32 : i32 to vector<64x512xi32>
    %20 = arith.cmpi slt, %12, %19 : vector<64x512xi32>
    %c448_i32_13 = arith.constant 448 : i32
    %21 = tpu.dynamic_rotate %11 by %c448_i32_13 dim 1 : vector<64x512xf32>, i32 -> vector<64x512xf32>
    %cst_14 = arith.constant 0.000000e+00 : f32
    %22 = vector.broadcast %cst_14 : f32 to vector<64x512xf32>
    %23 = arith.select %20, %21, %22 : vector<64x512xi1>, vector<64x512xf32>
    %24 = vector.shape_cast %23 : vector<64x512xf32> to vector<8x8x512xf32>
    %25 = vector.extract_strided_slice %10 {offsets = [0, 0], sizes = [8, 512], strides = [1, 1]} : vector<8x4608xf32> to vector<8x512xf32>
    %26 = vector.shape_cast %25 : vector<8x512xf32> to vector<8x1x512xf32>
    %27 = vector.broadcast %26 : vector<8x1x512xf32> to vector<8x8x512xf32>
    %28 = arith.mulf %27, %18 : vector<8x8x512xf32>
    %29 = vector.extract_strided_slice %10 {offsets = [0, 512], sizes = [8, 512], strides = [1, 1]} : vector<8x4608xf32> to vector<8x512xf32>
    %30 = vector.shape_cast %29 : vector<8x512xf32> to vector<8x1x512xf32>
    %31 = vector.broadcast %30 : vector<8x1x512xf32> to vector<8x8x512xf32>
    %32 = arith.mulf %31, %0 : vector<8x8x512xf32>
    %33 = arith.addf %28, %32 : vector<8x8x512xf32>
    %34 = vector.extract_strided_slice %10 {offsets = [0, 1024], sizes = [8, 512], strides = [1, 1]} : vector<8x4608xf32> to vector<8x512xf32>
    %35 = vector.shape_cast %34 : vector<8x512xf32> to vector<8x1x512xf32>
    %36 = vector.broadcast %35 : vector<8x1x512xf32> to vector<8x8x512xf32>
    %37 = arith.mulf %36, %24 : vector<8x8x512xf32>
    %38 = arith.addf %33, %37 : vector<8x8x512xf32>
    %39 = vector.extract_strided_slice %10 {offsets = [0, 1536], sizes = [8, 512], strides = [1, 1]} : vector<8x4608xf32> to vector<8x512xf32>
    %40 = vector.shape_cast %39 : vector<8x512xf32> to vector<8x1x512xf32>
    %41 = vector.broadcast %40 : vector<8x1x512xf32> to vector<8x8x512xf32>
    %42 = arith.mulf %41, %18 : vector<8x8x512xf32>
    %43 = vector.extract_strided_slice %10 {offsets = [0, 2048], sizes = [8, 512], strides = [1, 1]} : vector<8x4608xf32> to vector<8x512xf32>
    %44 = vector.shape_cast %43 : vector<8x512xf32> to vector<8x1x512xf32>
    %45 = vector.broadcast %44 : vector<8x1x512xf32> to vector<8x8x512xf32>
    %46 = arith.mulf %45, %0 : vector<8x8x512xf32>
    %47 = arith.addf %42, %46 : vector<8x8x512xf32>
    %48 = vector.extract_strided_slice %10 {offsets = [0, 2560], sizes = [8, 512], strides = [1, 1]} : vector<8x4608xf32> to vector<8x512xf32>
    %49 = vector.shape_cast %48 : vector<8x512xf32> to vector<8x1x512xf32>
    %50 = vector.broadcast %49 : vector<8x1x512xf32> to vector<8x8x512xf32>
    %51 = arith.mulf %50, %24 : vector<8x8x512xf32>
    %52 = arith.addf %47, %51 : vector<8x8x512xf32>
    %53 = vector.extract_strided_slice %10 {offsets = [0, 3072], sizes = [8, 512], strides = [1, 1]} : vector<8x4608xf32> to vector<8x512xf32>
    %54 = vector.shape_cast %53 : vector<8x512xf32> to vector<8x1x512xf32>
    %55 = vector.broadcast %54 : vector<8x1x512xf32> to vector<8x8x512xf32>
    %56 = arith.mulf %55, %18 : vector<8x8x512xf32>
    %57 = vector.extract_strided_slice %10 {offsets = [0, 3584], sizes = [8, 512], strides = [1, 1]} : vector<8x4608xf32> to vector<8x512xf32>
    %58 = vector.shape_cast %57 : vector<8x512xf32> to vector<8x1x512xf32>
    %59 = vector.broadcast %58 : vector<8x1x512xf32> to vector<8x8x512xf32>
    %60 = arith.mulf %59, %0 : vector<8x8x512xf32>
    %61 = arith.addf %56, %60 : vector<8x8x512xf32>
    %62 = vector.extract_strided_slice %10 {offsets = [0, 4096], sizes = [8, 512], strides = [1, 1]} : vector<8x4608xf32> to vector<8x512xf32>
    %63 = vector.shape_cast %62 : vector<8x512xf32> to vector<8x1x512xf32>
    %64 = vector.broadcast %63 : vector<8x1x512xf32> to vector<8x8x512xf32>
    %65 = arith.mulf %64, %24 : vector<8x8x512xf32>
    %66 = arith.addf %61, %65 : vector<8x8x512xf32>
    %67 = tpu.iota {dimensions = array<i32: 1>} : vector<8x8x512xi32>
    %68 = vector.shape_cast %67 : vector<8x8x512xi32> to vector<64x512xi32>
    %c1_i32 = arith.constant 1 : i32
    %69 = vector.broadcast %c1_i32 : i32 to vector<64x512xi32>
    %70 = arith.cmpi sge, %68, %69 : vector<64x512xi32>
    %71 = vector.shape_cast %38 : vector<8x8x512xf32> to vector<64x512xf32>
    %c1_i32_15 = arith.constant 1 : i32
    %72 = tpu.dynamic_rotate %71 by %c1_i32_15 dim 0 : vector<64x512xf32>, i32 -> vector<64x512xf32>
    %cst_16 = arith.constant 0.000000e+00 : f32
    %73 = vector.broadcast %cst_16 : f32 to vector<64x512xf32>
    %74 = arith.select %70, %72, %73 : vector<64x512xi1>, vector<64x512xf32>
    %c6_i32 = arith.constant 6 : i32
    %75 = vector.broadcast %c6_i32 : i32 to vector<64x512xi32>
    %76 = arith.cmpi sle, %68, %75 : vector<64x512xi32>
    %77 = vector.shape_cast %66 : vector<8x8x512xf32> to vector<64x512xf32>
    %c63_i32 = arith.constant 63 : i32
    %78 = tpu.dynamic_rotate %77 by %c63_i32 dim 0 : vector<64x512xf32>, i32 -> vector<64x512xf32>
    %cst_17 = arith.constant 0.000000e+00 : f32
    %79 = vector.broadcast %cst_17 : f32 to vector<64x512xf32>
    %80 = arith.select %76, %78, %79 : vector<64x512xi1>, vector<64x512xf32>
    %81 = vector.shape_cast %52 : vector<8x8x512xf32> to vector<64x512xf32>
    %82 = arith.addf %81, %74 : vector<64x512xf32>
    %83 = arith.addf %82, %80 : vector<64x512xf32>
    %cst_18 = arith.constant 1.000000e-01 : f32
    %84 = vector.broadcast %cst_18 : f32 to vector<64x512xf32>
    %85 = arith.mulf %84, %83 : vector<64x512xf32>
    %86 = arith.maximumf %83, %85 : vector<64x512xf32>
    %87 = arith.truncf %86 : vector<64x512xf32> to vector<64x512xbf16>
    %c0_19 = arith.constant 0 : index
    %c0_20 = arith.constant 0 : index
    %88 = vector.load %arg5[%c0_19, %c0_20] : memref<128x128xbf16, #tpu.memory_space<vmem>>, vector<128x128xbf16>
    %89 = vector.extract_strided_slice %87 {offsets = [0, 0], sizes = [64, 128], strides = [1, 1]} : vector<64x512xbf16> to vector<64x128xbf16>
    %cst_21 = arith.constant dense<0.000000e+00> : vector<64x128xf32>
    %90 = tpu.matmul %89, %88, %cst_21 {dimension_numbers = #tpu.dot_dimension_numbers<[1], [0], [0], [1], [0, 0, 1, 1], [], []>} : vector<64x128xbf16>, vector<128x128xbf16>, vector<64x128xf32> -> vector<64x128xf32>
    %91 = vector.extract_strided_slice %87 {offsets = [0, 128], sizes = [64, 128], strides = [1, 1]} : vector<64x512xbf16> to vector<64x128xbf16>
    %cst_22 = arith.constant dense<0.000000e+00> : vector<64x128xf32>
    %92 = tpu.matmul %91, %88, %cst_22 {dimension_numbers = #tpu.dot_dimension_numbers<[1], [0], [0], [1], [0, 0, 1, 1], [], []>} : vector<64x128xbf16>, vector<128x128xbf16>, vector<64x128xf32> -> vector<64x128xf32>
    %93 = vector.extract_strided_slice %87 {offsets = [0, 256], sizes = [64, 128], strides = [1, 1]} : vector<64x512xbf16> to vector<64x128xbf16>
    %cst_23 = arith.constant dense<0.000000e+00> : vector<64x128xf32>
    %94 = tpu.matmul %93, %88, %cst_23 {dimension_numbers = #tpu.dot_dimension_numbers<[1], [0], [0], [1], [0, 0, 1, 1], [], []>} : vector<64x128xbf16>, vector<128x128xbf16>, vector<64x128xf32> -> vector<64x128xf32>
    %95 = vector.extract_strided_slice %87 {offsets = [0, 384], sizes = [64, 128], strides = [1, 1]} : vector<64x512xbf16> to vector<64x128xbf16>
    %cst_24 = arith.constant dense<0.000000e+00> : vector<64x128xf32>
    %96 = tpu.matmul %95, %88, %cst_24 {dimension_numbers = #tpu.dot_dimension_numbers<[1], [0], [0], [1], [0, 0, 1, 1], [], []>} : vector<64x128xbf16>, vector<128x128xbf16>, vector<64x128xf32> -> vector<64x128xf32>
    %97 = tpu.concatenate %90, %92, %94, %96 in 1 : vector<64x128xf32>, vector<64x128xf32>, vector<64x128xf32>, vector<64x128xf32> -> vector<64x512xf32>
    %98 = vector.shape_cast %97 : vector<64x512xf32> to vector<8x8x512xf32>
    %cst_25 = arith.constant dense<0.000000e+00> : vector<8x512xf32>
    %99 = vector.multi_reduction <add>, %98, %cst_25 [1] : vector<8x8x512xf32> to vector<8x512xf32>
    %c0_26 = arith.constant 0 : index
    %c0_27 = arith.constant 0 : index
    %100 = vector.load %arg6[%c0_26, %c0_27] : memref<512x64xf32, #tpu.memory_space<vmem>>, vector<512x64xf32>
    %cst_28 = arith.constant dense<0.000000e+00> : vector<8x64xf32>
    %101 = tpu.matmul %99, %100, %cst_28 {dimension_numbers = #tpu.dot_dimension_numbers<[1], [0], [0], [1], [0, 0, 1, 1], [], []>} : vector<8x512xf32>, vector<512x64xf32>, vector<8x64xf32> -> vector<8x64xf32>
    %c0_29 = arith.constant 0 : index
    %c0_30 = arith.constant 0 : index
    %102 = vector.load %arg8[%c0_29, %c0_30] : memref<64x16xf32, #tpu.memory_space<vmem>>, vector<64x16xf32>
    %cst_31 = arith.constant dense<0.000000e+00> : vector<8x16xf32>
    %103 = tpu.matmul %101, %102, %cst_31 {dimension_numbers = #tpu.dot_dimension_numbers<[1], [0], [0], [1], [0, 0, 1, 1], [], []>} : vector<8x64xf32>, vector<64x16xf32>, vector<8x16xf32> -> vector<8x16xf32>
    %c0_32 = arith.constant 0 : index
    %c0_33 = arith.constant 0 : index
    %104 = vector.load %arg9[%c0_32, %c0_33] : memref<16x16xf32, #tpu.memory_space<vmem>>, vector<16x16xf32>
    %cst_34 = arith.constant dense<0.000000e+00> : vector<8x16xf32>
    %105 = tpu.matmul %2, %104, %cst_34 {dimension_numbers = #tpu.dot_dimension_numbers<[1], [0], [0], [1], [0, 0, 1, 1], [], []>} : vector<8x16xf32>, vector<16x16xf32>, vector<8x16xf32> -> vector<8x16xf32>
    %106 = arith.addf %103, %105 : vector<8x16xf32>
    %c0_35 = arith.constant 0 : index
    %c0_36 = arith.constant 0 : index
    %107 = vector.load %arg10[%c0_35, %c0_36] : memref<1x16xf32, #tpu.memory_space<vmem>>, vector<1x16xf32>
    %108 = vector.broadcast %107 : vector<1x16xf32> to vector<8x16xf32>
    %109 = arith.addf %106, %108 : vector<8x16xf32>
    %cst_37 = arith.constant 1.000000e-01 : f32
    %110 = vector.broadcast %cst_37 : f32 to vector<8x16xf32>
    %111 = arith.mulf %110, %109 : vector<8x16xf32>
    %112 = arith.maximumf %109, %111 : vector<8x16xf32>
    %c0_38 = arith.constant 0 : index
    %c0_39 = arith.constant 0 : index
    %113 = vector.load %arg11[%c0_38, %c0_39] : memref<16x64xf32, #tpu.memory_space<vmem>>, vector<16x64xf32>
    %cst_40 = arith.constant dense<0.000000e+00> : vector<8x64xf32>
    %114 = tpu.matmul %112, %113, %cst_40 {dimension_numbers = #tpu.dot_dimension_numbers<[1], [0], [0], [1], [0, 0, 1, 1], [], []>} : vector<8x16xf32>, vector<16x64xf32>, vector<8x64xf32> -> vector<8x64xf32>
    %c0_41 = arith.constant 0 : index
    %c0_42 = arith.constant 0 : index
    %115 = vector.load %arg12[%c0_41, %c0_42] : memref<1x64xf32, #tpu.memory_space<vmem>>, vector<1x64xf32>
    %116 = vector.broadcast %115 : vector<1x64xf32> to vector<8x64xf32>
    %117 = arith.addf %114, %116 : vector<8x64xf32>
    %118 = arith.negf %117 : vector<8x64xf32>
    %119 = math.exp %118 : vector<8x64xf32>
    %cst_43 = arith.constant 1.000000e+00 : f32
    %120 = vector.broadcast %cst_43 : f32 to vector<8x64xf32>
    %121 = arith.addf %120, %119 : vector<8x64xf32>
    %122 = arith.divf %120, %121 : vector<8x64xf32>
    %c0_44 = arith.constant 0 : index
    %c0_45 = arith.constant 0 : index
    %123 = vector.load %arg7[%c0_44, %c0_45] : memref<64x512xf32, #tpu.memory_space<vmem>>, vector<64x512xf32>
    %cst_46 = arith.constant dense<0.000000e+00> : vector<8x512xf32>
    %124 = tpu.matmul %122, %123, %cst_46 {dimension_numbers = #tpu.dot_dimension_numbers<[1], [0], [0], [1], [0, 0, 1, 1], [], []>} : vector<8x64xf32>, vector<64x512xf32>, vector<8x512xf32> -> vector<8x512xf32>
    %125 = vector.shape_cast %124 : vector<8x512xf32> to vector<8x1x512xf32>
    %cst_47 = arith.constant 1.000000e+00 : f32
    %126 = vector.broadcast %cst_47 : f32 to vector<8x1x512xf32>
    %127 = arith.addf %126, %125 : vector<8x1x512xf32>
    %128 = vector.broadcast %127 : vector<8x1x512xf32> to vector<8x8x512xf32>
    %129 = arith.mulf %98, %128 : vector<8x8x512xf32>
    %c0_48 = arith.constant 0 : index
    %c0_49 = arith.constant 0 : index
    %c0_50 = arith.constant 0 : index
    %130 = vector.load %arg1[%c0_48, %c0_49, %c0_50] : memref<8x8x512xf32, #tpu.memory_space<vmem>>, vector<8x8x512xf32>
    %131 = arith.addf %129, %130 : vector<8x8x512xf32>
    %c0_51 = arith.constant 0 : index
    %c0_52 = arith.constant 0 : index
    %c0_53 = arith.constant 0 : index
    %132 = vector.load %arg13[%c0_51, %c0_52, %c0_53] : memref<8x8x512xf32, #tpu.memory_space<vmem>>, vector<8x8x512xf32>
    tpu.vector_store %arg13[%c0_51, %c0_52, %c0_53], %131 {strides = array<i32>} : memref<8x8x512xf32, #tpu.memory_space<vmem>>, vector<8x8x512xf32>,
    return
  }
  func.func @transform_0(%arg0: i32) -> (i32, i32, i32) {
    %c0_i32 = arith.constant 0 : i32
    %c0_i32_0 = arith.constant 0 : i32
    %c0_i32_1 = arith.constant 0 : i32
    return %arg0, %c0_i32, %c0_i32_0 : i32, i32, i32
  }
  func.func @transform_1(%arg0: i32) -> (i32, i32, i32) {
    %c0_i32 = arith.constant 0 : i32
    %c0_i32_0 = arith.constant 0 : i32
    %c0_i32_1 = arith.constant 0 : i32
    return %arg0, %c0_i32, %c0_i32_0 : i32, i32, i32
  }
  func.func @transform_2(%arg0: i32) -> (i32, i32) {
    %c0_i32 = arith.constant 0 : i32
    %c0_i32_0 = arith.constant 0 : i32
    %c0_i32_1 = arith.constant 0 : i32
    return %c0_i32, %c0_i32_0 : i32, i32
  }
  func.func @transform_3(%arg0: i32) -> (i32, i32) {
    %c0_i32 = arith.constant 0 : i32
    %c0_i32_0 = arith.constant 0 : i32
    %c0_i32_1 = arith.constant 0 : i32
    return %c0_i32, %c0_i32_0 : i32, i32
  }
  func.func @transform_4(%arg0: i32) -> (i32, i32) {
    %c0_i32 = arith.constant 0 : i32
    %c0_i32_0 = arith.constant 0 : i32
    %c0_i32_1 = arith.constant 0 : i32
    return %c0_i32, %c0_i32_0 : i32, i32
  }
  func.func @transform_5(%arg0: i32) -> (i32, i32) {
    %c0_i32 = arith.constant 0 : i32
    %c0_i32_0 = arith.constant 0 : i32
    %c0_i32_1 = arith.constant 0 : i32
    return %c0_i32, %c0_i32_0 : i32, i32
  }
  func.func @transform_6(%arg0: i32) -> (i32, i32) {
    %c0_i32 = arith.constant 0 : i32
    %c0_i32_0 = arith.constant 0 : i32
    %c0_i32_1 = arith.constant 0 : i32
    return %c0_i32, %c0_i32_0 : i32, i32
  }
  func.func @transform_7(%arg0: i32) -> (i32, i32) {
    %c0_i32 = arith.constant 0 : i32
    %c0_i32_0 = arith.constant 0 : i32
    %c0_i32_1 = arith.constant 0 : i32
    return %c0_i32, %c0_i32_0 : i32, i32
  }
  func.func @transform_8(%arg0: i32) -> (i32, i32) {
    %c0_i32 = arith.constant 0 : i32
    %c0_i32_0 = arith.constant 0 : i32
    %c0_i32_1 = arith.constant 0 : i32
    return %c0_i32, %c0_i32_0 : i32, i32
  }
  func.func @transform_9(%arg0: i32) -> (i32, i32) {
    %c0_i32 = arith.constant 0 : i32
    %c0_i32_0 = arith.constant 0 : i32
    %c0_i32_1 = arith.constant 0 : i32
    return %c0_i32, %c0_i32_0 : i32, i32
  }
  func.func @transform_10(%arg0: i32) -> (i32, i32) {
    %c0_i32 = arith.constant 0 : i32
    %c0_i32_0 = arith.constant 0 : i32
    %c0_i32_1 = arith.constant 0 : i32
    return %c0_i32, %c0_i32_0 : i32, i32
  }
  func.func @transform_11(%arg0: i32) -> (i32, i32) {
    %c0_i32 = arith.constant 0 : i32
    %c0_i32_0 = arith.constant 0 : i32
    %c0_i32_1 = arith.constant 0 : i32
    return %c0_i32, %c0_i32_0 : i32, i32
  }
  func.func @transform_12(%arg0: i32) -> (i32, i32, i32) {
    %c0_i32 = arith.constant 0 : i32
    %c0_i32_0 = arith.constant 0 : i32
    %c0_i32_1 = arith.constant 0 : i32
    return %arg0, %c0_i32, %c0_i32_0 : i32, i32, i32
  }
}

</mosaic_0001>

<llo_original>
// kernel: tpu_custom_call.1
$region0: #{tpu_custom_call.1}
  #allocation0 [shape = 'u32[]', space=smem, size = 0x4, offset = 0x4, fixed_abs, tag = 'smem constant byte address 0x4 - core index']
  #allocation1 [shape = 'u32[144,128]{1,0:T(1,128)}', space=vmem, size = 0x12000, scoped, tag = 'internal scratch']
  %s0 = inlined_call_operand.vmem [shape: f32[16,8,512], index: 0, kind: input, shape index: {}]
  %s1 = inlined_call_operand.vmem [shape: f32[16,1,16], index: 1, kind: input, shape index: {}]
  %s2 = inlined_call_operand.hbm [shape: f32[16,64], index: 2, kind: input, shape index: {}]
  %s3 = inlined_call_operand.hbm [shape: bf16[64,4608], index: 3, kind: input, shape index: {}]
  %s4 = inlined_call_operand.vmem [shape: bf16[128,128], index: 4, kind: input, shape index: {}]
  %s5 = inlined_call_operand.vmem [shape: f32[512,64], index: 5, kind: input, shape index: {}]
  %s6 = inlined_call_operand.vmem [shape: f32[64,512], index: 6, kind: input, shape index: {}]
  %s7 = inlined_call_operand.vmem [shape: f32[64,16], index: 7, kind: input, shape index: {}]
  %s8 = inlined_call_operand.hbm [shape: f32[16,16], index: 8, kind: input, shape index: {}]
  %s9 = inlined_call_operand.vmem [shape: f32[1,16], index: 9, kind: input, shape index: {}]
  %s10 = inlined_call_operand.vmem [shape: f32[16,64], index: 10, kind: input, shape index: {}]
  %s11 = inlined_call_operand.vmem [shape: f32[1,64], index: 11, kind: input, shape index: {}]
  %s12 = inlined_call_operand.hbm [shape: f32[16,8,512], index: 12, kind: output, shape index: {}]
  %s13 = sld [smem:[#allocation0]]
  $region93: #{tpu_custom_call.1} parent=0
    _
  %s15 = ssub.s32 1, %s13
  %s16 = scalar_select 0, %s15, %s13
  $region1: #{tpu_custom_call.1} parent=0
    #allocation2 [shape = 'u8[8192]{0}', space=vmem, size = 0x2000, scoped, tag = 'input window, operand 2, single buffered']
    #allocation3 [shape = 's32[2]{0}', space=sflag, size = 0x8, scoped, tag = 'scoped memory for tpu_custom_call.1']
    #allocation4 [shape = 's32[2]{0}', space=sflag, size = 0x8, scoped, tag = 'scoped memory for tpu_custom_call.1']
    #allocation5 [shape = 'u8[589824]{0}', space=vmem, size = 0x90000, scoped, tag = 'input window, operand 3, single buffered']
    #allocation6 [shape = 's32[1]{0}', space=sflag, size = 0x4, scoped, tag = 'scoped memory for tpu_custom_call.1']
    #allocation7 [shape = 'u8[8192]{0}', space=vmem, size = 0x2000, scoped, tag = 'input window, operand 8, single buffered']
    #allocation8 [shape = 'u8[262144]{0}', space=vmem, size = 0x40000, scoped, tag = 'output window, operand 0']
    %17 = vsyncpa [#allocation3], 0
    %18 = vsyncpa [#allocation6], 0
    %19 = vsyncpa [#allocation4], 0
    %s20 = scalar_lea.sflag [#allocation4], 1
    %21 = vsyncpa %s20, 0
    loop: start=0, step=1, limit=4
    $region2: #{tpu_custom_call.1} parent=1 // loop_pre_header
      _
    $region3: #{tpu_custom_call.1} parent=1 // loop_header
      %s23 = sphi 0, %s27
      %p24 = scmp.ge.s32.totalorder %s23, 4
      %s33 = sphi 0, %s35
      %s36 = sphi 0, %s33
      %s37 = sphi 0, %s36
      %s53 = sphi 0, %s37
      %s59 = sphi 0, %s61
      %s62 = sphi 0, %s59
      %s63 = sphi 0, %s62
      %s79 = sphi 0, %s63
      %s83 = sphi 0, %s83
      %s85 = sphi 0, %s83
      %s86 = sphi 0, %s85
      %s100 = sphi 0, %s86
      %s104 = sphi 0, %s104
      %s106 = sphi 0, %s104
      %s107 = sphi 0, %s106
      %s121 = sphi 0, %s107
      %s125 = sphi 0, %s125
      %s127 = sphi 0, %s125
      %s128 = sphi 0, %s127
      %s142 = sphi 0, %s128
      %s146 = sphi 0, %s146
      %s148 = sphi 0, %s146
      %s149 = sphi 0, %s148
      %s163 = sphi 0, %s149
      %s167 = sphi 0, %s167
      %s169 = sphi 0, %s167
      %s170 = sphi 0, %s169
      %s184 = sphi 0, %s170
      %s188 = sphi 0, %s188
      %s190 = sphi 0, %s188
      %s191 = sphi 0, %s190
      %s205 = sphi 0, %s191
      %s209 = sphi 0, %s209
      %s211 = sphi 0, %s209
      %s212 = sphi 0, %s211
      %s226 = sphi 0, %s212
      %s230 = sphi 0, %s230
      %s232 = sphi 0, %s230
      %s233 = sphi 0, %s232
      %s247 = sphi 0, %s233
      %s251 = sphi 0, %s251
      %s253 = sphi 0, %s251
      %s254 = sphi 0, %s253
      %s268 = sphi 0, %s254
      %s272 = sphi 0, %s272
      %s274 = sphi 0, %s272
      %s275 = sphi 0, %s274
      %s289 = sphi 0, %s275
      %s295 = sphi 0, %s297
      %s298 = sphi 0, %s295
      %s299 = sphi 0, %s298
      %s315 = sphi 0, %s299
    $region4: #{tpu_custom_call.1} parent=1 // loop_header_branch
      %26 = sbr.rel (%p24) target = $region8
    $region5: #{tpu_custom_call.1} parent=1 // loop_body
      %s28 = ssub.s32 %s23, 1
      %s29 = ssub.s32 %s23, 2
      %s30 = sadd.s32 %s23, 1
      %s31 = ssub.s32 %s23, %s30
      %p32 = scmp.eq.s32.totalorder %s31, 0
      %s34 = sadd.s32 %s33, 1
      %s35 = scalar_select %p32, %s33, %s34
      %p38 = pneg %p32
      %p39 = scmp.eq.s32.totalorder %s23, 1
      %p40 = por %p38, %p39
      %p41 = scmp.ne.s32.totalorder %s33, %s36
      %p42 = scmp.eq.s32.totalorder %s23, 0
      %p43 = por %p41, %p42
      %p44 = scmp.ne.s32.totalorder %s33, %s36
      %p45 = scmp.eq.s32.totalorder %s28, 1
      %p46 = por %p44, %p45
      %p47 = scmp.ne.s32.totalorder %s36, %s37
      %p48 = scmp.eq.s32.totalorder %s28, 0
      %p49 = por %p47, %p48
      %p50 = scmp.ne.s32.totalorder %s36, %s37
      %p51 = scmp.eq.s32.totalorder %s29, 1
      %p52 = por %p50, %p51
      %p54 = scmp.ne.s32.totalorder %s37, %s53
      %p55 = scmp.eq.s32.totalorder %s29, 0
      %p56 = por %p54, %p55
      %s57 = ssub.s32 %s23, %s30
      %p58 = scmp.eq.s32.totalorder %s57, 0
      %s60 = sadd.s32 %s59, 1
      %s61 = scalar_select %p58, %s59, %s60
      %p64 = pneg %p58
      %p65 = scmp.eq.s32.totalorder %s23, 1
      %p66 = por %p64, %p65
      %p67 = scmp.ne.s32.totalorder %s59, %s62
      %p68 = scmp.eq.s32.totalorder %s23, 0
      %p69 = por %p67, %p68
      %p70 = scmp.ne.s32.totalorder %s59, %s62
      %p71 = scmp.eq.s32.totalorder %s28, 1
      %p72 = por %p70, %p71
      %p73 = scmp.ne.s32.totalorder %s62, %s63
      %p74 = scmp.eq.s32.totalorder %s28, 0
      %p75 = por %p73, %p74
      %p76 = scmp.ne.s32.totalorder %s62, %s63
      %p77 = scmp.eq.s32.totalorder %s29, 1
      %p78 = por %p76, %p77
      %p80 = scmp.ne.s32.totalorder %s63, %s79
      %p81 = scmp.eq.s32.totalorder %s29, 0
      %p82 = por %p80, %p81
      %s84 = sadd.s32 %s83, 1
      %p87 = scmp.eq.s32.totalorder %s23, 1
      %p88 = scmp.ne.s32.totalorder %s83, %s85
      %p89 = scmp.eq.s32.totalorder %s23, 0
      %p90 = por %p88, %p89
      %p91 = scmp.ne.s32.totalorder %s83, %s85
      %p92 = scmp.eq.s32.totalorder %s28, 1
      %p93 = por %p91, %p92
      %p94 = scmp.ne.s32.totalorder %s85, %s86
      %p95 = scmp.eq.s32.totalorder %s28, 0
      %p96 = por %p94, %p95
      %p97 = scmp.ne.s32.totalorder %s85, %s86
      %p98 = scmp.eq.s32.totalorder %s29, 1
      %p99 = por %p97, %p98
      %p101 = scmp.ne.s32.totalorder %s86, %s100
      %p102 = scmp.eq.s32.totalorder %s29, 0
      %p103 = por %p101, %p102
      %s105 = sadd.s32 %s104, 1
      %p108 = scmp.eq.s32.totalorder %s23, 1
      %p109 = scmp.ne.s32.totalorder %s104, %s106
      %p110 = scmp.eq.s32.totalorder %s23, 0
      %p111 = por %p109, %p110
      %p112 = scmp.ne.s32.totalorder %s104, %s106
      %p113 = scmp.eq.s32.totalorder %s28, 1
      %p114 = por %p112, %p113
      %p115 = scmp.ne.s32.totalorder %s106, %s107
      %p116 = scmp.eq.s32.totalorder %s28, 0
      %p117 = por %p115, %p116
      %p118 = scmp.ne.s32.totalorder %s106, %s107
      %p119 = scmp.eq.s32.totalorder %s29, 1
      %p120 = por %p118, %p119
      %p122 = scmp.ne.s32.totalorder %s107, %s121
      %p123 = scmp.eq.s32.totalorder %s29, 0
      %p124 = por %p122, %p123
      %s126 = sadd.s32 %s125, 1
      %p129 = scmp.eq.s32.totalorder %s23, 1
      %p130 = scmp.ne.s32.totalorder %s125, %s127
      %p131 = scmp.eq.s32.totalorder %s23, 0
      %p132 = por %p130, %p131
      %p133 = scmp.ne.s32.totalorder %s125, %s127
      %p134 = scmp.eq.s32.totalorder %s28, 1
      %p135 = por %p133, %p134
      %p136 = scmp.ne.s32.totalorder %s127, %s128
      %p137 = scmp.eq.s32.totalorder %s28, 0
      %p138 = por %p136, %p137
      %p139 = scmp.ne.s32.totalorder %s127, %s128
      %p140 = scmp.eq.s32.totalorder %s29, 1
      %p141 = por %p139, %p140
      %p143 = scmp.ne.s32.totalorder %s128, %s142
      %p144 = scmp.eq.s32.totalorder %s29, 0
      %p145 = por %p143, %p144
      %s147 = sadd.s32 %s146, 1
      %p150 = scmp.eq.s32.totalorder %s23, 1
      %p151 = scmp.ne.s32.totalorder %s146, %s148
      %p152 = scmp.eq.s32.totalorder %s23, 0
      %p153 = por %p151, %p152
      %p154 = scmp.ne.s32.totalorder %s146, %s148
      %p155 = scmp.eq.s32.totalorder %s28, 1
      %p156 = por %p154, %p155
      %p157 = scmp.ne.s32.totalorder %s148, %s149
      %p158 = scmp.eq.s32.totalorder %s28, 0
      %p159 = por %p157, %p158
      %p160 = scmp.ne.s32.totalorder %s148, %s149
      %p161 = scmp.eq.s32.totalorder %s29, 1
      %p162 = por %p160, %p161
      %p164 = scmp.ne.s32.totalorder %s149, %s163
      %p165 = scmp.eq.s32.totalorder %s29, 0
      %p166 = por %p164, %p165
      %s168 = sadd.s32 %s167, 1
      %p171 = scmp.eq.s32.totalorder %s23, 1
      %p172 = scmp.ne.s32.totalorder %s167, %s169
      %p173 = scmp.eq.s32.totalorder %s23, 0
      %p174 = por %p172, %p173
      %p175 = scmp.ne.s32.totalorder %s167, %s169
      %p176 = scmp.eq.s32.totalorder %s28, 1
      %p177 = por %p175, %p176
      %p178 = scmp.ne.s32.totalorder %s169, %s170
      %p179 = scmp.eq.s32.totalorder %s28, 0
      %p180 = por %p178, %p179
      %p181 = scmp.ne.s32.totalorder %s169, %s170
      %p182 = scmp.eq.s32.totalorder %s29, 1
      %p183 = por %p181, %p182
      %p185 = scmp.ne.s32.totalorder %s170, %s184
      %p186 = scmp.eq.s32.totalorder %s29, 0
      %p187 = por %p185, %p186
      %s189 = sadd.s32 %s188, 1
      %p192 = scmp.eq.s32.totalorder %s23, 1
      %p193 = scmp.ne.s32.totalorder %s188, %s190
      %p194 = scmp.eq.s32.totalorder %s23, 0
      %p195 = por %p193, %p194
      %p196 = scmp.ne.s32.totalorder %s188, %s190
      %p197 = scmp.eq.s32.totalorder %s28, 1
      %p198 = por %p196, %p197
      %p199 = scmp.ne.s32.totalorder %s190, %s191
      %p200 = scmp.eq.s32.totalorder %s28, 0
      %p201 = por %p199, %p200
      %p202 = scmp.ne.s32.totalorder %s190, %s191
      %p203 = scmp.eq.s32.totalorder %s29, 1
      %p204 = por %p202, %p203
      %p206 = scmp.ne.s32.totalorder %s191, %s205
      %p207 = scmp.eq.s32.totalorder %s29, 0
      %p208 = por %p206, %p207
      %s210 = sadd.s32 %s209, 1
      %p213 = scmp.eq.s32.totalorder %s23, 1
      %p214 = scmp.ne.s32.totalorder %s209, %s211
      %p215 = scmp.eq.s32.totalorder %s23, 0
      %p216 = por %p214, %p215
      %p217 = scmp.ne.s32.totalorder %s209, %s211
      %p218 = scmp.eq.s32.totalorder %s28, 1
      %p219 = por %p217, %p218
      %p220 = scmp.ne.s32.totalorder %s211, %s212
      %p221 = scmp.eq.s32.totalorder %s28, 0
      %p222 = por %p220, %p221
      %p223 = scmp.ne.s32.totalorder %s211, %s212
      %p224 = scmp.eq.s32.totalorder %s29, 1
      %p225 = por %p223, %p224
      %p227 = scmp.ne.s32.totalorder %s212, %s226
      %p228 = scmp.eq.s32.totalorder %s29, 0
      %p229 = por %p227, %p228
      %s231 = sadd.s32 %s230, 1
      %p234 = scmp.eq.s32.totalorder %s23, 1
      %p235 = scmp.ne.s32.totalorder %s230, %s232
      %p236 = scmp.eq.s32.totalorder %s23, 0
      %p237 = por %p235, %p236
      %p238 = scmp.ne.s32.totalorder %s230, %s232
      %p239 = scmp.eq.s32.totalorder %s28, 1
      %p240 = por %p238, %p239
      %p241 = scmp.ne.s32.totalorder %s232, %s233
      %p242 = scmp.eq.s32.totalorder %s28, 0
      %p243 = por %p241, %p242
      %p244 = scmp.ne.s32.totalorder %s232, %s233
      %p245 = scmp.eq.s32.totalorder %s29, 1
      %p246 = por %p244, %p245
      %p248 = scmp.ne.s32.totalorder %s233, %s247
      %p249 = scmp.eq.s32.totalorder %s29, 0
      %p250 = por %p248, %p249
      %s252 = sadd.s32 %s251, 1
      %p255 = scmp.eq.s32.totalorder %s23, 1
      %p256 = scmp.ne.s32.totalorder %s251, %s253
      %p257 = scmp.eq.s32.totalorder %s23, 0
      %p258 = por %p256, %p257
      %p259 = scmp.ne.s32.totalorder %s251, %s253
      %p260 = scmp.eq.s32.totalorder %s28, 1
      %p261 = por %p259, %p260
      %p262 = scmp.ne.s32.totalorder %s253, %s254
      %p263 = scmp.eq.s32.totalorder %s28, 0
      %p264 = por %p262, %p263
      %p265 = scmp.ne.s32.totalorder %s253, %s254
      %p266 = scmp.eq.s32.totalorder %s29, 1
      %p267 = por %p265, %p266
      %p269 = scmp.ne.s32.totalorder %s254, %s268
      %p270 = scmp.eq.s32.totalorder %s29, 0
      %p271 = por %p269, %p270
      %s273 = sadd.s32 %s272, 1
      %p276 = scmp.eq.s32.totalorder %s23, 1
      %p277 = scmp.ne.s32.totalorder %s272, %s274
      %p278 = scmp.eq.s32.totalorder %s23, 0
      %p279 = por %p277, %p278
      %p280 = scmp.ne.s32.totalorder %s272, %s274
      %p281 = scmp.eq.s32.totalorder %s28, 1
      %p282 = por %p280, %p281
      %p283 = scmp.ne.s32.totalorder %s274, %s275
      %p284 = scmp.eq.s32.totalorder %s28, 0
      %p285 = por %p283, %p284
      %p286 = scmp.ne.s32.totalorder %s274, %s275
      %p287 = scmp.eq.s32.totalorder %s29, 1
      %p288 = por %p286, %p287
      %p290 = scmp.ne.s32.totalorder %s275, %s289
      %p291 = scmp.eq.s32.totalorder %s29, 0
      %p292 = por %p290, %p291
      %s293 = ssub.s32 %s23, %s30
      %p294 = scmp.eq.s32.totalorder %s293, 0
      %s296 = sadd.s32 %s295, 1
      %s297 = scalar_select %p294, %s295, %s296
      %p300 = pneg %p294
      %p301 = scmp.eq.s32.totalorder %s23, 1
      %p302 = por %p300, %p301
      %p303 = scmp.ne.s32.totalorder %s295, %s298
      %p304 = scmp.eq.s32.totalorder %s23, 0
      %p305 = por %p303, %p304
      %p306 = scmp.ne.s32.totalorder %s295, %s298
      %p307 = scmp.eq.s32.totalorder %s28, 1
      %p308 = por %p306, %p307
      %p309 = scmp.ne.s32.totalorder %s298, %s299
      %p310 = scmp.eq.s32.totalorder %s28, 0
      %p311 = por %p309, %p310
      %p312 = scmp.ne.s32.totalorder %s298, %s299
      %p313 = scmp.eq.s32.totalorder %s29, 1
      %p314 = por %p312, %p313
      %p316 = scmp.ne.s32.totalorder %s299, %s315
      %p317 = scmp.eq.s32.totalorder %s29, 0
      %p318 = por %p316, %p317
      %p319 = scmp.le.s32.totalorder 1, %s23
      %p320 = scmp.lt.s32.totalorder %s23, 3
      %p321 = pnand %p319, %p320
      %p322 = pneg %p321
      // Predicated region
      $region9: #{tpu_custom_call.1} parent=5 // pred_check
        _
      $region10: #{tpu_custom_call.1} parent=5 // pred_check_branch
        %324 = sbr.rel (%p321) target = $region12
      $region11: #{tpu_custom_call.1} parent=5 // pred_region
        %s325 = ssub.s32 %s23, 1
        // Predicated region
        $region13: #{tpu_custom_call.1} parent=11 // pred_check
          %p326 = pneg %p96
        $region14: #{tpu_custom_call.1} parent=11 // pred_check_branch
          %328 = sbr.rel (%p326) target = $region16
        $region15: #{tpu_custom_call.1} parent=11 // pred_region
          %s330 = ssub.s32 256, 256
          %331 = vsyncadd [#allocation3], %s330
          %s332 = sshll.u32 [#allocation2], 4
          %s333 = int_to_ptr.vmem [resolvable:$true] %s332
          %338 = dma.hbm_to_vmem [thread:$0]  %s2, 256, %s333, [#allocation3], 128, 128, 8
        $region16: #{tpu_custom_call.1} parent=11 // pred_fallthru
          _
        // Predicated region
        $region17: #{tpu_custom_call.1} parent=11 // pred_check
          %p339 = pneg %p117
        $region18: #{tpu_custom_call.1} parent=11 // pred_check_branch
          %341 = sbr.rel (%p339) target = $region20
        $region19: #{tpu_custom_call.1} parent=11 // pred_region
          %s343 = ssub.s32 18432, 18432
          %344 = vsyncadd [#allocation6], %s343
          %s345 = sshll.u32 [#allocation5], 4
          %s346 = int_to_ptr.vmem [resolvable:$true] %s345
          %351 = dma.hbm_to_vmem [thread:$0]  %s3, 18432, %s346, [#allocation6], 2304, 2304, 144
        $region20: #{tpu_custom_call.1} parent=11 // pred_fallthru
          _
        // Predicated region
        $region21: #{tpu_custom_call.1} parent=11 // pred_check
          %p352 = pneg %p138
        $region22: #{tpu_custom_call.1} parent=11 // pred_check_branch
          %354 = sbr.rel (%p352) target = $region24
        $region23: #{tpu_custom_call.1} parent=11 // pred_region
          _
        $region24: #{tpu_custom_call.1} parent=11 // pred_fallthru
          _
        // Predicated region
        $region25: #{tpu_custom_call.1} parent=11 // pred_check
          %p355 = pneg %p159
        $region26: #{tpu_custom_call.1} parent=11 // pred_check_branch
          %357 = sbr.rel (%p355) target = $region28
        $region27: #{tpu_custom_call.1} parent=11 // pred_region
          _
        $region28: #{tpu_custom_call.1} parent=11 // pred_fallthru
          _
        // Predicated region
        $region29: #{tpu_custom_call.1} parent=11 // pred_check
          %p358 = pneg %p180
        $region30: #{tpu_custom_call.1} parent=11 // pred_check_branch
          %360 = sbr.rel (%p358) target = $region32
        $region31: #{tpu_custom_call.1} parent=11 // pred_region
          _
        $region32: #{tpu_custom_call.1} parent=11 // pred_fallthru
          _
        // Predicated region
        $region33: #{tpu_custom_call.1} parent=11 // pred_check
          %p361 = pneg %p201
        $region34: #{tpu_custom_call.1} parent=11 // pred_check_branch
          %363 = sbr.rel (%p361) target = $region36
        $region35: #{tpu_custom_call.1} parent=11 // pred_region
          _
        $region36: #{tpu_custom_call.1} parent=11 // pred_fallthru
          _
        // Predicated region
        $region37: #{tpu_custom_call.1} parent=11 // pred_check
          %p364 = pneg %p222
        $region38: #{tpu_custom_call.1} parent=11 // pred_check_branch
          %366 = sbr.rel (%p364) target = $region40
        $region39: #{tpu_custom_call.1} parent=11 // pred_region
          %s368 = ssub.s32 256, 256
          %369 = vsyncadd [#allocation6], %s368
          %s370 = sshll.u32 [#allocation7], 4
          %s371 = int_to_ptr.vmem [resolvable:$true] %s370
          %376 = dma.hbm_to_vmem [thread:$0]  %s8, 256, %s371, [#allocation6], 128, 128, 8
        $region40: #{tpu_custom_call.1} parent=11 // pred_fallthru
          _
        // Predicated region
        $region41: #{tpu_custom_call.1} parent=11 // pred_check
          %p377 = pneg %p243
        $region42: #{tpu_custom_call.1} parent=11 // pred_check_branch
          %379 = sbr.rel (%p377) target = $region44
        $region43: #{tpu_custom_call.1} parent=11 // pred_region
          _
        $region44: #{tpu_custom_call.1} parent=11 // pred_fallthru
          _
        // Predicated region
        $region45: #{tpu_custom_call.1} parent=11 // pred_check
          %p380 = pneg %p264
        $region46: #{tpu_custom_call.1} parent=11 // pred_check_branch
          %382 = sbr.rel (%p380) target = $region48
        $region47: #{tpu_custom_call.1} parent=11 // pred_region
          _
        $region48: #{tpu_custom_call.1} parent=11 // pred_fallthru
          _
        // Predicated region
        $region49: #{tpu_custom_call.1} parent=11 // pred_check
          %p383 = pneg %p285
        $region50: #{tpu_custom_call.1} parent=11 // pred_check_branch
          %385 = sbr.rel (%p383) target = $region52
        $region51: #{tpu_custom_call.1} parent=11 // pred_region
          _
        $region52: #{tpu_custom_call.1} parent=11 // pred_fallthru
          _
      $region12: #{tpu_custom_call.1} parent=5 // pred_fallthru
        _
      %p386 = scmp.lt.s32.totalorder %s23, 2
      // Predicated region
      $region53: #{tpu_custom_call.1} parent=5 // pred_check
        %p387 = pneg %p386
      $region54: #{tpu_custom_call.1} parent=5 // pred_check_branch
        %389 = sbr.rel (%p387) target = $region56
      $region55: #{tpu_custom_call.1} parent=5 // pred_region
        // Predicated region
        $region57: #{tpu_custom_call.1} parent=55 // pred_check
          %p390 = pneg %p43
        $region58: #{tpu_custom_call.1} parent=55 // pred_check_branch
          %392 = sbr.rel (%p390) target = $region60
        $region59: #{tpu_custom_call.1} parent=55 // pred_region
          %s393 = smul.u32 8, %s23
          %p394 = scmp.lt.s32.totalorder %s393, 15
          %s395 = scalar_select %p394, %s393, 15
          %s396 = smul.addr %s395, 4
          %s397 = smul.addr %s396, 8
          %s398 = scalar_lea.vmem %s0, %s397
          %s399 = smul.u32 8, %s23
        $region60: #{tpu_custom_call.1} parent=55 // pred_fallthru
          _
        // Predicated region
        $region61: #{tpu_custom_call.1} parent=55 // pred_check
          %p400 = pneg %p69
        $region62: #{tpu_custom_call.1} parent=55 // pred_check_branch
          %402 = sbr.rel (%p400) target = $region64
        $region63: #{tpu_custom_call.1} parent=55 // pred_region
          %s403 = smul.u32 8, %s23
          %p404 = scmp.lt.s32.totalorder %s403, 15
          %s405 = scalar_select %p404, %s403, 15
          %s406 = scalar_lea.vmem %s1, %s405
          %s407 = smul.u32 8, %s23
        $region64: #{tpu_custom_call.1} parent=55 // pred_fallthru
          _
      $region56: #{tpu_custom_call.1} parent=5 // pred_fallthru
        _
      %p408 = scmp.le.s32.totalorder 1, %s23
      %p409 = scmp.lt.s32.totalorder %s23, 3
      %p410 = pnand %p408, %p409
      %p411 = pneg %p410
      // Predicated region
      $region65: #{tpu_custom_call.1} parent=5 // pred_check
        _
      $region66: #{tpu_custom_call.1} parent=5 // pred_check_branch
        %413 = sbr.rel (%p410) target = $region68
      $region67: #{tpu_custom_call.1} parent=5 // pred_region
        %s414 = ssub.s32 %s23, 1
        // Predicated region
        $region69: #{tpu_custom_call.1} parent=67 // pred_check
          %p415 = pneg %p96
        $region70: #{tpu_custom_call.1} parent=67 // pred_check_branch
          %417 = sbr.rel (%p415) target = $region72
        $region71: #{tpu_custom_call.1} parent=67 // pred_region
          %418 = dma.done [#allocation3], 256
        $region72: #{tpu_custom_call.1} parent=67 // pred_fallthru
          _
        // Predicated region
        $region73: #{tpu_custom_call.1} parent=67 // pred_check
          %p419 = pneg %p117
        $region74: #{tpu_custom_call.1} parent=67 // pred_check_branch
          %421 = sbr.rel (%p419) target = $region76
        $region75: #{tpu_custom_call.1} parent=67 // pred_region
          %422 = dma.done [#allocation6], 18432
        $region76: #{tpu_custom_call.1} parent=67 // pred_fallthru
          _
        // Predicated region
        $region77: #{tpu_custom_call.1} parent=67 // pred_check
          %p423 = pneg %p222
        $region78: #{tpu_custom_call.1} parent=67 // pred_check_branch
          %425 = sbr.rel (%p423) target = $region80
        $region79: #{tpu_custom_call.1} parent=67 // pred_region
          %426 = dma.done [#allocation6], 256
        $region80: #{tpu_custom_call.1} parent=67 // pred_fallthru
          _
        %s427 = smul.u32 8, %s28
        %p428 = scmp.lt.s32.totalorder %s427, 15
        %s429 = scalar_select %p428, %s427, 15
        %s430 = smul.addr %s429, 4
        %s431 = smul.addr %s430, 8
        %s432 = scalar_lea.vmem %s0, %s431
        %p433 = pneg %p49
        %p434 = pneg %p46
        %s435 = smul.u32 8, %s28
        %p436 = scmp.lt.s32.totalorder %s435, 15
        %s437 = scalar_select %p436, %s435, 15
        %s438 = scalar_lea.vmem %s1, %s437
        %p439 = pneg %p75
        %p440 = pneg %p72
        %p441 = pneg %p96
        %p442 = pneg %p93
        %p443 = pneg %p117
        %p444 = pneg %p114
        %p445 = pneg %p138
        %p446 = pneg %p135
        %p447 = pneg %p159
        %p448 = pneg %p156
        %p449 = pneg %p180
        %p450 = pneg %p177
        %p451 = pneg %p201
        %p452 = pneg %p198
        %p453 = pneg %p222
        %p454 = pneg %p219
        %p455 = pneg %p243
        %p456 = pneg %p240
        %p457 = pneg %p264
        %p458 = pneg %p261
        %p459 = pneg %p285
        %p460 = pneg %p282
        %p461 = pneg %p311
        %p462 = pneg %p308
        %s463 = sand.u32 %s298, 1
        %s464 = scalar_lea.sflag [#allocation4], %s463
        %s465 = sand.u32 %s298, 1
        %s466 = smul.addr %s465, 256
        %s467 = scalar_lea.vmem [#allocation8], %s466
        %s468 = smul.u32 8, %s28
        %p469 = scmp.lt.s32.totalorder %s468, 15
        %s470 = scalar_select %p469, %s468, 15
        %s471 = smul.addr %s470, 4
        %s472 = smul.addr %s471, 8
        %s473 = scalar_lea.vmem %s0, %s472
        %s474 = smul.u32 8, %s28
        %s475 = smul.u32 8, %s28
        %p476 = scmp.lt.s32.totalorder %s475, 15
        %s477 = scalar_select %p476, %s475, 15
        %s478 = scalar_lea.vmem %s1, %s477
        %s479 = smul.u32 8, %s28
        %s480 = smul.u32 8, %s28
        %v482 = vld [vmem:[%s473] sm:$0xff]
        %v483 = vld [vmem:[%s473 + $0x8] sm:$0xff]
        %v484 = vld [vmem:[%s473 + $0x10] sm:$0xff]
        %v485 = vld [vmem:[%s473 + $0x18] sm:$0xff]
        %v486 = vld [vmem:[%s473 + $0x20] sm:$0xff]
        %v487 = vld [vmem:[%s473 + $0x28] sm:$0xff]
        %v488 = vld [vmem:[%s473 + $0x30] sm:$0xff]
        %v489 = vld [vmem:[%s473 + $0x38] sm:$0xff]
        %v490 = vld [vmem:[%s473 + $0x40] sm:$0xff]
        %v491 = vld [vmem:[%s473 + $0x48] sm:$0xff]
        %v492 = vld [vmem:[%s473 + $0x50] sm:$0xff]
        %v493 = vld [vmem:[%s473 + $0x58] sm:$0xff]
        %v494 = vld [vmem:[%s473 + $0x60] sm:$0xff]
        %v495 = vld [vmem:[%s473 + $0x68] sm:$0xff]
        %v496 = vld [vmem:[%s473 + $0x70] sm:$0xff]
        %v497 = vld [vmem:[%s473 + $0x78] sm:$0xff]
        %v498 = vld [vmem:[%s473 + $0x80] sm:$0xff]
        %v499 = vld [vmem:[%s473 + $0x88] sm:$0xff]
        %v500 = vld [vmem:[%s473 + $0x90] sm:$0xff]
        %v501 = vld [vmem:[%s473 + $0x98] sm:$0xff]
        %v502 = vld [vmem:[%s473 + $0xa0] sm:$0xff]
        %v503 = vld [vmem:[%s473 + $0xa8] sm:$0xff]
        %v504 = vld [vmem:[%s473 + $0xb0] sm:$0xff]
        %v505 = vld [vmem:[%s473 + $0xb8] sm:$0xff]
        %v506 = vld [vmem:[%s473 + $0xc0] sm:$0xff]
        %v507 = vld [vmem:[%s473 + $0xc8] sm:$0xff]
        %v508 = vld [vmem:[%s473 + $0xd0] sm:$0xff]
        %v509 = vld [vmem:[%s473 + $0xd8] sm:$0xff]
        %v510 = vld [vmem:[%s473 + $0xe0] sm:$0xff]
        %v511 = vld [vmem:[%s473 + $0xe8] sm:$0xff]
        %v512 = vld [vmem:[%s473 + $0xf0] sm:$0xff]
        %v513 = vld [vmem:[%s473 + $0xf8] sm:$0xff]
        %v514 = vld [vmem:[%s478] sm:$0x1]
        %v515 = vld [vmem:[%s478 + $0x1] sm:$0x1]
        %v516 = vld [vmem:[%s478 + $0x2] sm:$0x1]
        %v517 = vld [vmem:[%s478 + $0x3] sm:$0x1]
        %v518 = vld [vmem:[%s478 + $0x4] sm:$0x1]
        %v519 = vld [vmem:[%s478 + $0x5] sm:$0x1]
        %v520 = vld [vmem:[%s478 + $0x6] sm:$0x1]
        %v521 = vld [vmem:[%s478 + $0x7] sm:$0x1]
        %v522 = vld [vmem:[#allocation2] sm:$0xff]
        %v523 = vld [vmem:[#allocation2 + $0x8] sm:$0xff]
        %v532 = vcombine.low %v514, %v515
        %v533 = vcombine.low %v516, %v517
        %v534 = vcombine.low %v518, %v519
        %v535 = vcombine.low %v520, %v521
        %v537 = vunpack.c.l.s4 1966171168
        %v538 = vunpack.c.0.s8 %v537
        %v539 = vlaneseq
        %v540 = vshrl.u32 %v539, 7
        %v541 = vsub.s32 %v538, %v540
        %v542 = vrot.slane %v532, %v541
        %v544 = vunpack.c.l.s4 1966171168
        %v545 = vunpack.c.0.s8 %v544
        %v546 = vlaneseq
        %v547 = vshrl.u32 %v546, 7
        %v548 = vsub.s32 %v545, %v547
        %v549 = vrot.slane %v533, %v548
        %v551 = vunpack.c.l.s4 1966171168
        %v552 = vunpack.c.0.s8 %v551
        %v553 = vlaneseq
        %v554 = vshrl.u32 %v553, 7
        %v555 = vsub.s32 %v552, %v554
        %v556 = vrot.slane %v534, %v555
        %v558 = vunpack.c.l.s4 1966171168
        %v559 = vunpack.c.0.s8 %v558
        %v560 = vlaneseq
        %v561 = vshrl.u32 %v560, 7
        %v562 = vsub.s32 %v559, %v561
        %v563 = vrot.slane %v535, %v562
        %v564 = vcombine.low %v542, %v549
        %v565 = vcombine.low %v556, %v563
        %v567 = vunpack.c.l.s4 1966171168
        %v568 = vunpack.c.0.s8 %v567
        %v569 = vlaneseq
        %v570 = vshrl.u32 %v569, 7
        %v571 = vsub.s32 %v568, %v570
        %v572 = vrot.slane %v564, %v571
        %v574 = vunpack.c.l.s4 1966171168
        %v575 = vunpack.c.0.s8 %v574
        %v576 = vlaneseq
        %v577 = vshrl.u32 %v576, 7
        %v578 = vsub.s32 %v575, %v577
        %v579 = vrot.slane %v565, %v578
        %v580 = vcombine.low %v572, %v579
        %vm581 = vcmask 130048
        %v582 = vsel %vm581, %v580, 0
        %584 = vmatprep.subr.mxu0 0.0
        %585 = vmatpush1.msra.mxu0 0.0
        %586 = vmatprep.subr.mxu0 0.0
        %587 = vmatpush1.msra.mxu0 0.0
        %588 = vmatprep.subr.mxu0 0.0
        %589 = vmatpush1.msra.mxu0 0.0
        %590 = vmatprep.subr.mxu0 0.0
        %591 = vmatpush1.msra.mxu0 0.0
        %592 = vmatprep.subr.mxu0 0.0
        %593 = vmatpush1.msra.mxu0 0.0
        %594 = vmatprep.subr.mxu0 0.0
        %595 = vmatpush1.msra.mxu0 0.0
        %596 = vmatprep.subr.mxu0 0.0
        %597 = vmatpush1.msra.mxu0 0.0
        %598 = vmatprep.subr.mxu0 0.0
        %599 = vmatpush1.msra.mxu0 0.0
        %600 = vmatprep.subr.mxu0 0.0
        %601 = vmatpush1.msra.mxu0 0.0
        %602 = vmatprep.subr.mxu0 0.0
        %603 = vmatpush1.msra.mxu0 0.0
        %604 = vmatprep.subr.mxu0 0.0
        %605 = vmatpush1.msra.mxu0 0.0
        %606 = vmatprep.subr.mxu0 0.0
        %607 = vmatpush1.msra.mxu0 0.0
        %608 = vmatprep.subr.mxu0 0.0
        %609 = vmatpush1.msra.mxu0 0.0
        %610 = vmatprep.subr.mxu0 0.0
        %611 = vmatpush1.msra.mxu0 0.0
        %612 = vmatprep.subr.mxu0 0.0
        %613 = vmatpush1.msra.mxu0 %v523
        %614 = vmatprep.subr.mxu0 0.0
        %615 = vmatpush1.msra.mxu0 %v522
        %616 = vmatprep.subr.mxu0 0.0
        %617 = vmatpush2.msra.mxu0 0.0
        %618 = vmatprep.subr.mxu0 0.0
        %619 = vmatpush2.msra.mxu0 0.0
        %620 = vmatprep.subr.mxu0 0.0
        %621 = vmatpush2.msra.mxu0 0.0
        %622 = vmatprep.subr.mxu0 0.0
        %623 = vmatpush2.msra.mxu0 0.0
        %624 = vmatprep.subr.mxu0 0.0
        %625 = vmatpush2.msra.mxu0 0.0
        %626 = vmatprep.subr.mxu0 0.0
        %627 = vmatpush2.msra.mxu0 0.0
        %628 = vmatprep.subr.mxu0 0.0
        %629 = vmatpush2.msra.mxu0 0.0
        %630 = vmatprep.subr.mxu0 0.0
        %631 = vmatpush2.msra.mxu0 0.0
        %632 = vmatprep.subr.mxu0 0.0
        %633 = vmatpush2.msra.mxu0 0.0
        %634 = vmatprep.subr.mxu0 0.0
        %635 = vmatpush2.msra.mxu0 0.0
        %636 = vmatprep.subr.mxu0 0.0
        %637 = vmatpush2.msra.mxu0 0.0
        %638 = vmatprep.subr.mxu0 0.0
        %639 = vmatpush2.msra.mxu0 0.0
        %640 = vmatprep.subr.mxu0 0.0
        %641 = vmatpush2.msra.mxu0 0.0
        %642 = vmatprep.subr.mxu0 0.0
        %643 = vmatpush2.msra.mxu0 0.0
        %644 = vmatprep.subr.mxu0 0.0
        %645 = vmatpush2.msra.mxu0 0.0
        %646 = vmatprep.subr.mxu0 0.0
        %647 = vmatpush2.msra.mxu0 0.0
        %648 = vmatprep.mubr.f32.mxu0 0.0
        %649 = vmatmul.mubr.f32.gmra.mxu0 %v582
        %v650 = vpop.f32.mrf.mxu0
        %v651 = vadd.f32 0.0, %v650
        %v652 = vpop.f32.mrf.mxu0
        %653 = vdwg.mxu0
        %v654 = vmul.f32 %v651, 0.1
        %v655 = vmax.f32 %v651, %v654
        %v656 = vpack.c.bf16 %v655, %v655
        %v657 = vld [vmem:[#allocation5] sm:$0xff]
        %v658 = vld [vmem:[#allocation5 + $0x8] sm:$0xff]
        %v659 = vld [vmem:[#allocation5 + $0x10] sm:$0xff]
        %v660 = vld [vmem:[#allocation5 + $0x18] sm:$0xff]
        %v661 = vld [vmem:[#allocation5 + $0x20] sm:$0xff]
        %v662 = vld [vmem:[#allocation5 + $0x28] sm:$0xff]
        %v663 = vld [vmem:[#allocation5 + $0x30] sm:$0xff]
        %v664 = vld [vmem:[#allocation5 + $0x38] sm:$0xff]
        %v665 = vld [vmem:[#allocation5 + $0x40] sm:$0xff]
        %v666 = vld [vmem:[#allocation5 + $0x48] sm:$0xff]
        %v667 = vld [vmem:[#allocation5 + $0x50] sm:$0xff]
        %v668 = vld [vmem:[#allocation5 + $0x58] sm:$0xff]
        %v669 = vld [vmem:[#allocation5 + $0x60] sm:$0xff]
        %v670 = vld [vmem:[#allocation5 + $0x68] sm:$0xff]
        %v671 = vld [vmem:[#allocation5 + $0x70] sm:$0xff]
        %v672 = vld [vmem:[#allocation5 + $0x78] sm:$0xff]
        %v673 = vld [vmem:[#allocation5 + $0x80] sm:$0xff]
        %v674 = vld [vmem:[#allocation5 + $0x88] sm:$0xff]
        %v675 = vld [vmem:[#allocation5 + $0x90] sm:$0xff]
        %v676 = vld [vmem:[#allocation5 + $0x98] sm:$0xff]
        %v677 = vld [vmem:[#allocation5 + $0xa0] sm:$0xff]
        %v678 = vld [vmem:[#allocation5 + $0xa8] sm:$0xff]
        %v679 = vld [vmem:[#allocation5 + $0xb0] sm:$0xff]
        %v680 = vld [vmem:[#allocation5 + $0xb8] sm:$0xff]
        %v681 = vld [vmem:[#allocation5 + $0xc0] sm:$0xff]
        %v682 = vld [vmem:[#allocation5 + $0xc8] sm:$0xff]
        %v683 = vld [vmem:[#allocation5 + $0xd0] sm:$0xff]
        %v684 = vld [vmem:[#allocation5 + $0xd8] sm:$0xff]
        %v685 = vld [vmem:[#allocation5 + $0xe0] sm:$0xff]
        %v686 = vld [vmem:[#allocation5 + $0xe8] sm:$0xff]
        %v687 = vld [vmem:[#allocation5 + $0xf0] sm:$0xff]
        %v688 = vld [vmem:[#allocation5 + $0xf8] sm:$0xff]
        %v689 = vld [vmem:[#allocation5 + $0x100] sm:$0xff]
        %v690 = vld [vmem:[#allocation5 + $0x108] sm:$0xff]
        %v691 = vld [vmem:[#allocation5 + $0x110] sm:$0xff]
        %v692 = vld [vmem:[#allocation5 + $0x118] sm:$0xff]
        %v693 = vld [vmem:[#allocation5 + $0x120] sm:$0xff]
        %v694 = vld [vmem:[#allocation5 + $0x128] sm:$0xff]
        %v695 = vld [vmem:[#allocation5 + $0x130] sm:$0xff]
        %v696 = vld [vmem:[#allocation5 + $0x138] sm:$0xff]
        %v697 = vld [vmem:[#allocation5 + $0x140] sm:$0xff]
        %v698 = vld [vmem:[#allocation5 + $0x148] sm:$0xff]
        %v699 = vld [vmem:[#allocation5 + $0x150] sm:$0xff]
        %v700 = vld [vmem:[#allocation5 + $0x158] sm:$0xff]
        %v701 = vld [vmem:[#allocation5 + $0x160] sm:$0xff]
        %v702 = vld [vmem:[#allocation5 + $0x168] sm:$0xff]
        %v703 = vld [vmem:[#allocation5 + $0x170] sm:$0xff]
        %v704 = vld [vmem:[#allocation5 + $0x178] sm:$0xff]
        %v705 = vld [vmem:[#allocation5 + $0x180] sm:$0xff]
        %v706 = vld [vmem:[#allocation5 + $0x188] sm:$0xff]
        %v707 = vld [vmem:[#allocation5 + $0x190] sm:$0xff]
        %v708 = vld [vmem:[#allocation5 + $0x198] sm:$0xff]
        %v709 = vld [vmem:[#allocation5 + $0x1a0] sm:$0xff]
        %v710 = vld [vmem:[#allocation5 + $0x1a8] sm:$0xff]
        %v711 = vld [vmem:[#allocation5 + $0x1b0] sm:$0xff]
        %v712 = vld [vmem:[#allocation5 + $0x1b8] sm:$0xff]
        %v713 = vld [vmem:[#allocation5 + $0x1c0] sm:$0xff]
        %v714 = vld [vmem:[#allocation5 + $0x1c8] sm:$0xff]
        %v715 = vld [vmem:[#allocation5 + $0x1d0] sm:$0xff]
        %v716 = vld [vmem:[#allocation5 + $0x1d8] sm:$0xff]
        %v717 = vld [vmem:[#allocation5 + $0x1e0] sm:$0xff]
        %v718 = vld [vmem:[#allocation5 + $0x1e8] sm:$0xff]
        %v719 = vld [vmem:[#allocation5 + $0x1f0] sm:$0xff]
        %v720 = vld [vmem:[#allocation5 + $0x1f8] sm:$0xff]
        %v721 = vld [vmem:[#allocation5 + $0x200] sm:$0xff]
        %v722 = vld [vmem:[#allocation5 + $0x208] sm:$0xff]
        %v723 = vld [vmem:[#allocation5 + $0x210] sm:$0xff]
        %v724 = vld [vmem:[#allocation5 + $0x218] sm:$0xff]
        %v725 = vld [vmem:[#allocation5 + $0x220] sm:$0xff]
        %v726 = vld [vmem:[#allocation5 + $0x228] sm:$0xff]
        %v727 = vld [vmem:[#allocation5 + $0x230] sm:$0xff]
        %v728 = vld [vmem:[#allocation5 + $0x238] sm:$0xff]
        %v729 = vld [vmem:[#allocation5 + $0x240] sm:$0xff]
        %v730 = vld [vmem:[#allocation5 + $0x248] sm:$0xff]
        %v731 = vld [vmem:[#allocation5 + $0x250] sm:$0xff]
        %v732 = vld [vmem:[#allocation5 + $0x258] sm:$0xff]
        %v733 = vld [vmem:[#allocation5 + $0x260] sm:$0xff]
        %v734 = vld [vmem:[#allocation5 + $0x268] sm:$0xff]
        %v735 = vld [vmem:[#allocation5 + $0x270] sm:$0xff]
        %v736 = vld [vmem:[#allocation5 + $0x278] sm:$0xff]
        %v737 = vld [vmem:[#allocation5 + $0x280] sm:$0xff]
        %v738 = vld [vmem:[#allocation5 + $0x288] sm:$0xff]
        %v739 = vld [vmem:[#allocation5 + $0x290] sm:$0xff]
        %v740 = vld [vmem:[#allocation5 + $0x298] sm:$0xff]
        %v741 = vld [vmem:[#allocation5 + $0x2a0] sm:$0xff]
        %v742 = vld [vmem:[#allocation5 + $0x2a8] sm:$0xff]
        %v743 = vld [vmem:[#allocation5 + $0x2b0] sm:$0xff]
        %v744 = vld [vmem:[#allocation5 + $0x2b8] sm:$0xff]
        %v745 = vld [vmem:[#allocation5 + $0x2c0] sm:$0xff]
        %v746 = vld [vmem:[#allocation5 + $0x2c8] sm:$0xff]
        %v747 = vld [vmem:[#allocation5 + $0x2d0] sm:$0xff]
        %v748 = vld [vmem:[#allocation5 + $0x2d8] sm:$0xff]
        %v749 = vld [vmem:[#allocation5 + $0x2e0] sm:$0xff]
        %v750 = vld [vmem:[#allocation5 + $0x2e8] sm:$0xff]
        %v751 = vld [vmem:[#allocation5 + $0x2f0] sm:$0xff]
        %v752 = vld [vmem:[#allocation5 + $0x2f8] sm:$0xff]
        %v753 = vld [vmem:[#allocation5 + $0x300] sm:$0xff]
        %v754 = vld [vmem:[#allocation5 + $0x308] sm:$0xff]
        %v755 = vld [vmem:[#allocation5 + $0x310] sm:$0xff]
        %v756 = vld [vmem:[#allocation5 + $0x318] sm:$0xff]
        %v757 = vld [vmem:[#allocation5 + $0x320] sm:$0xff]
        %v758 = vld [vmem:[#allocation5 + $0x328] sm:$0xff]
        %v759 = vld [vmem:[#allocation5 + $0x330] sm:$0xff]
        %v760 = vld [vmem:[#allocation5 + $0x338] sm:$0xff]
        %v761 = vld [vmem:[#allocation5 + $0x340] sm:$0xff]
        %v762 = vld [vmem:[#allocation5 + $0x348] sm:$0xff]
        %v763 = vld [vmem:[#allocation5 + $0x350] sm:$0xff]
        %v764 = vld [vmem:[#allocation5 + $0x358] sm:$0xff]
        %v765 = vld [vmem:[#allocation5 + $0x360] sm:$0xff]
        %v766 = vld [vmem:[#allocation5 + $0x368] sm:$0xff]
        %v767 = vld [vmem:[#allocation5 + $0x370] sm:$0xff]
        %v768 = vld [vmem:[#allocation5 + $0x378] sm:$0xff]
        %v769 = vld [vmem:[#allocation5 + $0x380] sm:$0xff]
        %v770 = vld [vmem:[#allocation5 + $0x388] sm:$0xff]
        %v771 = vld [vmem:[#allocation5 + $0x390] sm:$0xff]
        %v772 = vld [vmem:[#allocation5 + $0x398] sm:$0xff]
        %v773 = vld [vmem:[#allocation5 + $0x3a0] sm:$0xff]
        %v774 = vld [vmem:[#allocation5 + $0x3a8] sm:$0xff]
        %v775 = vld [vmem:[#allocation5 + $0x3b0] sm:$0xff]
        %v776 = vld [vmem:[#allocation5 + $0x3b8] sm:$0xff]
        %v777 = vld [vmem:[#allocation5 + $0x3c0] sm:$0xff]
        %v778 = vld [vmem:[#allocation5 + $0x3c8] sm:$0xff]
        %v779 = vld [vmem:[#allocation5 + $0x3d0] sm:$0xff]
        %v780 = vld [vmem:[#allocation5 + $0x3d8] sm:$0xff]
        %v781 = vld [vmem:[#allocation5 + $0x3e0] sm:$0xff]
        %v782 = vld [vmem:[#allocation5 + $0x3e8] sm:$0xff]
        %v783 = vld [vmem:[#allocation5 + $0x3f0] sm:$0xff]
        %v784 = vld [vmem:[#allocation5 + $0x3f8] sm:$0xff]
        %v785 = vld [vmem:[#allocation5 + $0x400] sm:$0xff]
        %v786 = vld [vmem:[#allocation5 + $0x408] sm:$0xff]
        %v787 = vld [vmem:[#allocation5 + $0x410] sm:$0xff]
        %v788 = vld [vmem:[#allocation5 + $0x418] sm:$0xff]
        %v789 = vld [vmem:[#allocation5 + $0x420] sm:$0xff]
        %v790 = vld [vmem:[#allocation5 + $0x428] sm:$0xff]
        %v791 = vld [vmem:[#allocation5 + $0x430] sm:$0xff]
        %v792 = vld [vmem:[#allocation5 + $0x438] sm:$0xff]
        %v793 = vld [vmem:[#allocation5 + $0x440] sm:$0xff]
        %v794 = vld [vmem:[#allocation5 + $0x448] sm:$0xff]
        %v795 = vld [vmem:[#allocation5 + $0x450] sm:$0xff]
        %v796 = vld [vmem:[#allocation5 + $0x458] sm:$0xff]
        %v797 = vld [vmem:[#allocation5 + $0x460] sm:$0xff]
        %v798 = vld [vmem:[#allocation5 + $0x468] sm:$0xff]
        %v799 = vld [vmem:[#allocation5 + $0x470] sm:$0xff]
        %v800 = vld [vmem:[#allocation5 + $0x478] sm:$0xff]
        %v945 = vunpack.c.l.b16 %v657
        %v946 = vunpack.c.h.b16 %v657
        %v947 = vunpack.c.l.b16 %v658
        %v948 = vunpack.c.h.b16 %v658
        %v949 = vunpack.c.l.b16 %v659
        %v950 = vunpack.c.h.b16 %v659
        %v951 = vunpack.c.l.b16 %v660
        %v952 = vunpack.c.h.b16 %v660
        %v953 = vunpack.c.l.b16 %v661
        %v954 = vunpack.c.h.b16 %v661
        %v955 = vunpack.c.l.b16 %v662
        %v956 = vunpack.c.h.b16 %v662
        %v957 = vunpack.c.l.b16 %v663
        %v958 = vunpack.c.h.b16 %v663
        %v959 = vunpack.c.l.b16 %v664
        %v960 = vunpack.c.h.b16 %v664
        %v961 = vunpack.c.l.b16 %v665
        %v962 = vunpack.c.h.b16 %v665
        %v963 = vunpack.c.l.b16 %v666
        %v964 = vunpack.c.h.b16 %v666
        %v965 = vunpack.c.l.b16 %v667
        %v966 = vunpack.c.h.b16 %v667
        %v967 = vunpack.c.l.b16 %v668
        %v968 = vunpack.c.h.b16 %v668
        %v969 = vunpack.c.l.b16 %v669
        %v970 = vunpack.c.h.b16 %v669
        %v971 = vunpack.c.l.b16 %v670
        %v972 = vunpack.c.h.b16 %v670
        %v973 = vunpack.c.l.b16 %v671
        %v974 = vunpack.c.h.b16 %v671
        %v975 = vunpack.c.l.b16 %v672
        %v976 = vunpack.c.h.b16 %v672
        %v977 = vunpack.c.l.b16 %v673
        %v978 = vunpack.c.h.b16 %v673
        %v979 = vunpack.c.l.b16 %v674
        %v980 = vunpack.c.h.b16 %v674
        %v981 = vunpack.c.l.b16 %v675
        %v982 = vunpack.c.h.b16 %v675
        %v983 = vunpack.c.l.b16 %v676
        %v984 = vunpack.c.h.b16 %v676
        %v985 = vunpack.c.l.b16 %v677
        %v986 = vunpack.c.h.b16 %v677
        %v987 = vunpack.c.l.b16 %v678
        %v988 = vunpack.c.h.b16 %v678
        %v989 = vunpack.c.l.b16 %v679
        %v990 = vunpack.c.h.b16 %v679
        %v991 = vunpack.c.l.b16 %v680
        %v992 = vunpack.c.h.b16 %v680
        %v993 = vunpack.c.l.b16 %v681
        %v994 = vunpack.c.h.b16 %v681
        %v995 = vunpack.c.l.b16 %v682
        %v996 = vunpack.c.h.b16 %v682
        %v997 = vunpack.c.l.b16 %v683
        %v998 = vunpack.c.h.b16 %v683
        %v999 = vunpack.c.l.b16 %v684
        %v1000 = vunpack.c.h.b16 %v684
        %v1001 = vunpack.c.l.b16 %v685
        %v1002 = vunpack.c.h.b16 %v685
        %v1003 = vunpack.c.l.b16 %v686
        %v1004 = vunpack.c.h.b16 %v686
        %v1005 = vunpack.c.l.b16 %v687
        %v1006 = vunpack.c.h.b16 %v687
        %v1007 = vunpack.c.l.b16 %v688
        %v1008 = vunpack.c.h.b16 %v688
        %v1009 = vunpack.c.l.b16 %v689
        %v1010 = vunpack.c.h.b16 %v689
        %v1011 = vunpack.c.l.b16 %v690
        %v1012 = vunpack.c.h.b16 %v690
        %v1013 = vunpack.c.l.b16 %v691
        %v1014 = vunpack.c.h.b16 %v691
        %v1015 = vunpack.c.l.b16 %v692
        %v1016 = vunpack.c.h.b16 %v692
        %v1017 = vunpack.c.l.b16 %v693
        %v1018 = vunpack.c.h.b16 %v693
        %v1019 = vunpack.c.l.b16 %v694
        %v1020 = vunpack.c.h.b16 %v694
        %v1021 = vunpack.c.l.b16 %v695
        %v1022 = vunpack.c.h.b16 %v695
        %v1023 = vunpack.c.l.b16 %v696
        %v1024 = vunpack.c.h.b16 %v696
        %v1025 = vunpack.c.l.b16 %v697
        %v1026 = vunpack.c.h.b16 %v697
        %v1027 = vunpack.c.l.b16 %v698
        %v1028 = vunpack.c.h.b16 %v698
        %v1029 = vunpack.c.l.b16 %v699
        %v1030 = vunpack.c.h.b16 %v699
        %v1031 = vunpack.c.l.b16 %v700
        %v1032 = vunpack.c.h.b16 %v700
        %v1033 = vunpack.c.l.b16 %v701
        %v1034 = vunpack.c.h.b16 %v701
        %v1035 = vunpack.c.l.b16 %v702
        %v1036 = vunpack.c.h.b16 %v702
        %v1037 = vunpack.c.l.b16 %v703
        %v1038 = vunpack.c.h.b16 %v703
        %v1039 = vunpack.c.l.b16 %v704
        %v1040 = vunpack.c.h.b16 %v704
        %v1041 = vunpack.c.l.b16 %v705
        %v1042 = vunpack.c.h.b16 %v705
        %v1043 = vunpack.c.l.b16 %v706
        %v1044 = vunpack.c.h.b16 %v706
        %v1045 = vunpack.c.l.b16 %v707
        %v1046 = vunpack.c.h.b16 %v707
        %v1047 = vunpack.c.l.b16 %v708
        %v1048 = vunpack.c.h.b16 %v708
        %v1049 = vunpack.c.l.b16 %v709
        %v1050 = vunpack.c.h.b16 %v709
        %v1051 = vunpack.c.l.b16 %v710
        %v1052 = vunpack.c.h.b16 %v710
        %v1053 = vunpack.c.l.b16 %v711
        %v1054 = vunpack.c.h.b16 %v711
        %v1055 = vunpack.c.l.b16 %v712
        %v1056 = vunpack.c.h.b16 %v712
        %v1057 = vunpack.c.l.b16 %v713
        %v1058 = vunpack.c.h.b16 %v713
        %v1059 = vunpack.c.l.b16 %v714
        %v1060 = vunpack.c.h.b16 %v714
        %v1061 = vunpack.c.l.b16 %v715
        %v1062 = vunpack.c.h.b16 %v715
        %v1063 = vunpack.c.l.b16 %v716
        %v1064 = vunpack.c.h.b16 %v716
        %v1065 = vunpack.c.l.b16 %v717
        %v1066 = vunpack.c.h.b16 %v717
        %v1067 = vunpack.c.l.b16 %v718
        %v1068 = vunpack.c.h.b16 %v718
        %v1069 = vunpack.c.l.b16 %v719
        %v1070 = vunpack.c.h.b16 %v719
        %v1071 = vunpack.c.l.b16 %v720
        %v1072 = vunpack.c.h.b16 %v720
        %v1073 = vunpack.c.l.b16 %v721
        %v1074 = vunpack.c.h.b16 %v721
        %v1075 = vunpack.c.l.b16 %v722
        %v1076 = vunpack.c.h.b16 %v722
        %v1077 = vunpack.c.l.b16 %v723
        %v1078 = vunpack.c.h.b16 %v723
        %v1079 = vunpack.c.l.b16 %v724
        %v1080 = vunpack.c.h.b16 %v724
        %v1081 = vunpack.c.l.b16 %v725
        %v1082 = vunpack.c.h.b16 %v725
        %v1083 = vunpack.c.l.b16 %v726
        %v1084 = vunpack.c.h.b16 %v726
        %v1085 = vunpack.c.l.b16 %v727
        %v1086 = vunpack.c.h.b16 %v727
        %v1087 = vunpack.c.l.b16 %v728
        %v1088 = vunpack.c.h.b16 %v728
        %v1089 = vunpack.c.l.b16 %v729
        %v1090 = vunpack.c.h.b16 %v729
        %v1091 = vunpack.c.l.b16 %v730
        %v1092 = vunpack.c.h.b16 %v730
        %v1093 = vunpack.c.l.b16 %v731
        %v1094 = vunpack.c.h.b16 %v731
        %v1095 = vunpack.c.l.b16 %v732
        %v1096 = vunpack.c.h.b16 %v732
        %v1097 = vunpack.c.l.b16 %v733
        %v1098 = vunpack.c.h.b16 %v733
        %v1099 = vunpack.c.l.b16 %v734
        %v1100 = vunpack.c.h.b16 %v734
        %v1101 = vunpack.c.l.b16 %v735
        %v1102 = vunpack.c.h.b16 %v735
        %v1103 = vunpack.c.l.b16 %v736
        %v1104 = vunpack.c.h.b16 %v736
        %v1105 = vunpack.c.l.b16 %v737
        %v1106 = vunpack.c.h.b16 %v737
        %v1107 = vunpack.c.l.b16 %v738
        %v1108 = vunpack.c.h.b16 %v738
        %v1109 = vunpack.c.l.b16 %v739
        %v1110 = vunpack.c.h.b16 %v739
        %v1111 = vunpack.c.l.b16 %v740
        %v1112 = vunpack.c.h.b16 %v740
        %v1113 = vunpack.c.l.b16 %v741
        %v1114 = vunpack.c.h.b16 %v741
        %v1115 = vunpack.c.l.b16 %v742
        %v1116 = vunpack.c.h.b16 %v742
        %v1117 = vunpack.c.l.b16 %v743
        %v1118 = vunpack.c.h.b16 %v743
        %v1119 = vunpack.c.l.b16 %v744
        %v1120 = vunpack.c.h.b16 %v744
        %v1121 = vunpack.c.l.b16 %v745
        %v1122 = vunpack.c.h.b16 %v745
        %v1123 = vunpack.c.l.b16 %v746
        %v1124 = vunpack.c.h.b16 %v746
        %v1125 = vunpack.c.l.b16 %v747
        %v1126 = vunpack.c.h.b16 %v747
        %v1127 = vunpack.c.l.b16 %v748
        %v1128 = vunpack.c.h.b16 %v748
        %v1129 = vunpack.c.l.b16 %v749
        %v1130 = vunpack.c.h.b16 %v749
        %v1131 = vunpack.c.l.b16 %v750
        %v1132 = vunpack.c.h.b16 %v750
        %v1133 = vunpack.c.l.b16 %v751
        %v1134 = vunpack.c.h.b16 %v751
        %v1135 = vunpack.c.l.b16 %v752
        %v1136 = vunpack.c.h.b16 %v752
        %v1137 = vunpack.c.l.b16 %v753
        %v1138 = vunpack.c.h.b16 %v753
        %v1139 = vunpack.c.l.b16 %v754
        %v1140 = vunpack.c.h.b16 %v754
        %v1141 = vunpack.c.l.b16 %v755
        %v1142 = vunpack.c.h.b16 %v755
        %v1143 = vunpack.c.l.b16 %v756
        %v1144 = vunpack.c.h.b16 %v756
        %v1145 = vunpack.c.l.b16 %v757
        %v1146 = vunpack.c.h.b16 %v757
        %v1147 = vunpack.c.l.b16 %v758
        %v1148 = vunpack.c.h.b16 %v758
        %v1149 = vunpack.c.l.b16 %v759
        %v1150 = vunpack.c.h.b16 %v759
        %v1151 = vunpack.c.l.b16 %v760
        %v1152 = vunpack.c.h.b16 %v760
        %v1153 = vunpack.c.l.b16 %v761
        %v1154 = vunpack.c.h.b16 %v761
        %v1155 = vunpack.c.l.b16 %v762
        %v1156 = vunpack.c.h.b16 %v762
        %v1157 = vunpack.c.l.b16 %v763
        %v1158 = vunpack.c.h.b16 %v763
        %v1159 = vunpack.c.l.b16 %v764
        %v1160 = vunpack.c.h.b16 %v764
        %v1161 = vunpack.c.l.b16 %v765
        %v1162 = vunpack.c.h.b16 %v765
        %v1163 = vunpack.c.l.b16 %v766
        %v1164 = vunpack.c.h.b16 %v766
        %v1165 = vunpack.c.l.b16 %v767
        %v1166 = vunpack.c.h.b16 %v767
        %v1167 = vunpack.c.l.b16 %v768
        %v1168 = vunpack.c.h.b16 %v768
        %v1169 = vunpack.c.l.b16 %v769
        %v1170 = vunpack.c.h.b16 %v769
        %v1171 = vunpack.c.l.b16 %v770
        %v1172 = vunpack.c.h.b16 %v770
        %v1173 = vunpack.c.l.b16 %v771
        %v1174 = vunpack.c.h.b16 %v771
        %v1175 = vunpack.c.l.b16 %v772
        %v1176 = vunpack.c.h.b16 %v772
        %v1177 = vunpack.c.l.b16 %v773
        %v1178 = vunpack.c.h.b16 %v773
        %v1179 = vunpack.c.l.b16 %v774
        %v1180 = vunpack.c.h.b16 %v774
        %v1181 = vunpack.c.l.b16 %v775
        %v1182 = vunpack.c.h.b16 %v775
        %v1183 = vunpack.c.l.b16 %v776
        %v1184 = vunpack.c.h.b16 %v776
        %v1185 = vunpack.c.l.b16 %v777
        %v1186 = vunpack.c.h.b16 %v777
        %v1187 = vunpack.c.l.b16 %v778
        %v1188 = vunpack.c.h.b16 %v778
        %v1189 = vunpack.c.l.b16 %v779
        %v1190 = vunpack.c.h.b16 %v779
        %v1191 = vunpack.c.l.b16 %v780
        %v1192 = vunpack.c.h.b16 %v780
        %v1193 = vunpack.c.l.b16 %v781
        %v1194 = vunpack.c.h.b16 %v781
        %v1195 = vunpack.c.l.b16 %v782
        %v1196 = vunpack.c.h.b16 %v782
        %v1197 = vunpack.c.l.b16 %v783
        %v1198 = vunpack.c.h.b16 %v783
        %v1199 = vunpack.c.l.b16 %v784
        %v1200 = vunpack.c.h.b16 %v784
        %v1201 = vunpack.c.l.b16 %v785
        %v1202 = vunpack.c.h.b16 %v785
        %v1203 = vunpack.c.l.b16 %v786
        %v1204 = vunpack.c.h.b16 %v786
        %v1205 = vunpack.c.l.b16 %v787
        %v1206 = vunpack.c.h.b16 %v787
        %v1207 = vunpack.c.l.b16 %v788
        %v1208 = vunpack.c.h.b16 %v788
        %v1209 = vunpack.c.l.b16 %v789
        %v1210 = vunpack.c.h.b16 %v789
        %v1211 = vunpack.c.l.b16 %v790
        %v1212 = vunpack.c.h.b16 %v790
        %v1213 = vunpack.c.l.b16 %v791
        %v1214 = vunpack.c.h.b16 %v791
        %v1215 = vunpack.c.l.b16 %v792
        %v1216 = vunpack.c.h.b16 %v792
        %v1217 = vunpack.c.l.b16 %v793
        %v1218 = vunpack.c.h.b16 %v793
        %v1219 = vunpack.c.l.b16 %v794
        %v1220 = vunpack.c.h.b16 %v794
        %v1221 = vunpack.c.l.b16 %v795
        %v1222 = vunpack.c.h.b16 %v795
        %v1223 = vunpack.c.l.b16 %v796
        %v1224 = vunpack.c.h.b16 %v796
        %v1225 = vunpack.c.l.b16 %v797
        %v1226 = vunpack.c.h.b16 %v797
        %v1227 = vunpack.c.l.b16 %v798
        %v1228 = vunpack.c.h.b16 %v798
        %v1229 = vunpack.c.l.b16 %v799
        %v1230 = vunpack.c.h.b16 %v799
        %v1231 = vunpack.c.l.b16 %v800
        %v1232 = vunpack.c.h.b16 %v800
        %v1233 = vpack.c.b16 %v981, %v945
        %v1234 = vpack.c.b16 %v982, %v946
        %v1235 = vpack.c.b16 %v983, %v947
        %v1236 = vpack.c.b16 %v984, %v948
        %v1237 = vpack.c.b16 %v985, %v949
        %v1238 = vpack.c.b16 %v986, %v950
        %v1239 = vpack.c.b16 %v987, %v951
        %v1240 = vpack.c.b16 %v988, %v952
        %v1241 = vpack.c.b16 %v989, %v953
        %v1242 = vpack.c.b16 %v990, %v954
        %v1243 = vpack.c.b16 %v991, %v955
        %v1244 = vpack.c.b16 %v992, %v956
        %v1245 = vpack.c.b16 %v993, %v957
        %v1246 = vpack.c.b16 %v994, %v958
        %v1247 = vpack.c.b16 %v995, %v959
        %v1248 = vpack.c.b16 %v996, %v960
        %v1249 = vpack.c.b16 %v997, %v961
        %v1250 = vpack.c.b16 %v998, %v962
        %v1251 = vpack.c.b16 %v999, %v963
        %v1252 = vpack.c.b16 %v1000, %v964
        %v1253 = vpack.c.b16 %v1001, %v965
        %v1254 = vpack.c.b16 %v1002, %v966
        %v1255 = vpack.c.b16 %v1003, %v967
        %v1256 = vpack.c.b16 %v1004, %v968
        %v1257 = vpack.c.b16 %v1005, %v969
        %v1258 = vpack.c.b16 %v1006, %v970
        %v1259 = vpack.c.b16 %v1007, %v971
        %v1260 = vpack.c.b16 %v1008, %v972
        %v1261 = vpack.c.b16 %v1009, %v973
        %v1262 = vpack.c.b16 %v1010, %v974
        %v1263 = vpack.c.b16 %v1011, %v975
        %v1264 = vpack.c.b16 %v1012, %v976
        %v1265 = vpack.c.b16 %v1013, %v977
        %v1266 = vpack.c.b16 %v1014, %v978
        %v1267 = vpack.c.b16 %v1015, %v979
        %v1268 = vpack.c.b16 %v1016, %v980
        %v1269 = vpack.c.b16 %v1053, %v1017
        %v1270 = vpack.c.b16 %v1054, %v1018
        %v1271 = vpack.c.b16 %v1055, %v1019
        %v1272 = vpack.c.b16 %v1056, %v1020
        %v1273 = vpack.c.b16 %v1057, %v1021
        %v1274 = vpack.c.b16 %v1058, %v1022
        %v1275 = vpack.c.b16 %v1059, %v1023
        %v1276 = vpack.c.b16 %v1060, %v1024
        %v1277 = vpack.c.b16 %v1061, %v1025
        %v1278 = vpack.c.b16 %v1062, %v1026
        %v1279 = vpack.c.b16 %v1063, %v1027
        %v1280 = vpack.c.b16 %v1064, %v1028
        %v1281 = vpack.c.b16 %v1065, %v1029
        %v1282 = vpack.c.b16 %v1066, %v1030
        %v1283 = vpack.c.b16 %v1067, %v1031
        %v1284 = vpack.c.b16 %v1068, %v1032
        %v1285 = vpack.c.b16 %v1069, %v1033
        %v1286 = vpack.c.b16 %v1070, %v1034
        %v1287 = vpack.c.b16 %v1071, %v1035
        %v1288 = vpack.c.b16 %v1072, %v1036
        %v1289 = vpack.c.b16 %v1073, %v1037
        %v1290 = vpack.c.b16 %v1074, %v1038
        %v1291 = vpack.c.b16 %v1075, %v1039
        %v1292 = vpack.c.b16 %v1076, %v1040
        %v1293 = vpack.c.b16 %v1077, %v1041
        %v1294 = vpack.c.b16 %v1078, %v1042
        %v1295 = vpack.c.b16 %v1079, %v1043
        %v1296 = vpack.c.b16 %v1080, %v1044
        %v1297 = vpack.c.b16 %v1081, %v1045
        %v1298 = vpack.c.b16 %v1082, %v1046
        %v1299 = vpack.c.b16 %v1083, %v1047
        %v1300 = vpack.c.b16 %v1084, %v1048
        %v1301 = vpack.c.b16 %v1085, %v1049
        %v1302 = vpack.c.b16 %v1086, %v1050
        %v1303 = vpack.c.b16 %v1087, %v1051
        %v1304 = vpack.c.b16 %v1088, %v1052
        %v1305 = vpack.c.b16 %v1125, %v1089
        %v1306 = vpack.c.b16 %v1126, %v1090
        %v1307 = vpack.c.b16 %v1127, %v1091
        %v1308 = vpack.c.b16 %v1128, %v1092
        %v1309 = vpack.c.b16 %v1129, %v1093
        %v1310 = vpack.c.b16 %v1130, %v1094
        %v1311 = vpack.c.b16 %v1131, %v1095
        %v1312 = vpack.c.b16 %v1132, %v1096
        %v1313 = vpack.c.b16 %v1133, %v1097
        %v1314 = vpack.c.b16 %v1134, %v1098
        %v1315 = vpack.c.b16 %v1135, %v1099
        %v1316 = vpack.c.b16 %v1136, %v1100
        %v1317 = vpack.c.b16 %v1137, %v1101
        %v1318 = vpack.c.b16 %v1138, %v1102
        %v1319 = vpack.c.b16 %v1139, %v1103
        %v1320 = vpack.c.b16 %v1140, %v1104
        %v1321 = vpack.c.b16 %v1141, %v1105
        %v1322 = vpack.c.b16 %v1142, %v1106
        %v1323 = vpack.c.b16 %v1143, %v1107
        %v1324 = vpack.c.b16 %v1144, %v1108
        %v1325 = vpack.c.b16 %v1145, %v1109
        %v1326 = vpack.c.b16 %v1146, %v1110
        %v1327 = vpack.c.b16 %v1147, %v1111
        %v1328 = vpack.c.b16 %v1148, %v1112
        %v1329 = vpack.c.b16 %v1149, %v1113
        %v1330 = vpack.c.b16 %v1150, %v1114
        %v1331 = vpack.c.b16 %v1151, %v1115
        %v1332 = vpack.c.b16 %v1152, %v1116
        %v1333 = vpack.c.b16 %v1153, %v1117
        %v1334 = vpack.c.b16 %v1154, %v1118
        %v1335 = vpack.c.b16 %v1155, %v1119
        %v1336 = vpack.c.b16 %v1156, %v1120
        %v1337 = vpack.c.b16 %v1157, %v1121
        %v1338 = vpack.c.b16 %v1158, %v1122
        %v1339 = vpack.c.b16 %v1159, %v1123
        %v1340 = vpack.c.b16 %v1160, %v1124
        %v1341 = vpack.c.b16 %v1197, %v1161
        %v1342 = vpack.c.b16 %v1198, %v1162
        %v1343 = vpack.c.b16 %v1199, %v1163
        %v1344 = vpack.c.b16 %v1200, %v1164
        %v1345 = vpack.c.b16 %v1201, %v1165
        %v1346 = vpack.c.b16 %v1202, %v1166
        %v1347 = vpack.c.b16 %v1203, %v1167
        %v1348 = vpack.c.b16 %v1204, %v1168
        %v1349 = vpack.c.b16 %v1205, %v1169
        %v1350 = vpack.c.b16 %v1206, %v1170
        %v1351 = vpack.c.b16 %v1207, %v1171
        %v1352 = vpack.c.b16 %v1208, %v1172
        %v1353 = vpack.c.b16 %v1209, %v1173
        %v1354 = vpack.c.b16 %v1210, %v1174
        %v1355 = vpack.c.b16 %v1211, %v1175
        %v1356 = vpack.c.b16 %v1212, %v1176
        %v1357 = vpack.c.b16 %v1213, %v1177
        %v1358 = vpack.c.b16 %v1214, %v1178
        %v1359 = vpack.c.b16 %v1215, %v1179
        %v1360 = vpack.c.b16 %v1216, %v1180
        %v1361 = vpack.c.b16 %v1217, %v1181
        %v1362 = vpack.c.b16 %v1218, %v1182
        %v1363 = vpack.c.b16 %v1219, %v1183
        %v1364 = vpack.c.b16 %v1220, %v1184
        %v1365 = vpack.c.b16 %v1221, %v1185
        %v1366 = vpack.c.b16 %v1222, %v1186
        %v1367 = vpack.c.b16 %v1223, %v1187
        %v1368 = vpack.c.b16 %v1224, %v1188
        %v1369 = vpack.c.b16 %v1225, %v1189
        %v1370 = vpack.c.b16 %v1226, %v1190
        %v1371 = vpack.c.b16 %v1227, %v1191
        %v1372 = vpack.c.b16 %v1228, %v1192
        %v1373 = vpack.c.b16 %v1229, %v1193
        %v1374 = vpack.c.b16 %v1230, %v1194
        %v1375 = vpack.c.b16 %v1231, %v1195
        %v1376 = vpack.c.b16 %v1232, %v1196
        %vm1521 = vcmask 523264
        %v1523 = vsel %vm1521, %v656, 0
        %1525 = vmatprep.subr.bf16.mxu0 0
        %1526 = vmatpush1.bf16.msra.mxu0 0
        %1527 = vmatprep.subr.bf16.mxu0 0
        %1528 = vmatpush1.bf16.msra.mxu0 0
        %1529 = vmatprep.subr.bf16.mxu0 0
        %1530 = vmatpush1.bf16.msra.mxu0 0
        %1531 = vmatprep.subr.bf16.mxu0 0
        %1532 = vmatpush1.bf16.msra.mxu0 0
        %1533 = vmatprep.subr.bf16.mxu0 %v1342
        %1534 = vmatpush1.bf16.msra.mxu0 %v1341
        %1535 = vmatprep.subr.bf16.mxu0 %v1306
        %1536 = vmatpush1.bf16.msra.mxu0 %v1305
        %1537 = vmatprep.subr.bf16.mxu0 %v1270
        %1538 = vmatpush1.bf16.msra.mxu0 %v1269
        %1539 = vmatprep.subr.bf16.mxu0 %v1234
        %1540 = vmatpush1.bf16.msra.mxu0 %v1233
        %1541 = vmatprep.subr.bf16.mxu0 0
        %1542 = vmatpush2.bf16.msra.mxu0 0
        %1543 = vmatprep.subr.bf16.mxu0 0
        %1544 = vmatpush2.bf16.msra.mxu0 0
        %1545 = vmatprep.subr.bf16.mxu0 0
        %1546 = vmatpush2.bf16.msra.mxu0 0
        %1547 = vmatprep.subr.bf16.mxu0 0
        %1548 = vmatpush2.bf16.msra.mxu0 0
        %1549 = vmatprep.subr.bf16.mxu0 0
        %1550 = vmatpush2.bf16.msra.mxu0 0
        %1551 = vmatprep.subr.bf16.mxu0 0
        %1552 = vmatpush2.bf16.msra.mxu0 0
        %1553 = vmatprep.subr.bf16.mxu0 0
        %1554 = vmatpush2.bf16.msra.mxu0 0
        %1555 = vmatprep.subr.bf16.mxu0 0
        %1556 = vmatpush2.bf16.msra.mxu0 0
        %1557 = vmatprep.mubr.bf16.mxu0 0
        %1558 = vmatmul.mubr.bf16.gmra.mxu0 %v1523
        %v1559 = vpop.f32.mrf.mxu0
        %v1560 = vadd.f32 0.0, %v1559
        %v1561 = vpop.f32.mrf.mxu0
        %v1562 = vadd.f32 0.0, %v1561
        %v1563 = vpop.f32.mrf.mxu0
        %v1564 = vpop.f32.mrf.mxu0
        %1565 = vdwg.mxu0
        %1566 = vmatprep.subr.bf16.mxu0 0
        %1567 = vmatpush1.bf16.msra.mxu0 0
        %1568 = vmatprep.subr.bf16.mxu0 0
        %1569 = vmatpush1.bf16.msra.mxu0 0
        %1570 = vmatprep.subr.bf16.mxu0 0
        %1571 = vmatpush1.bf16.msra.mxu0 0
        %1572 = vmatprep.subr.bf16.mxu0 0
        %1573 = vmatpush1.bf16.msra.mxu0 0
        %1574 = vmatprep.subr.bf16.mxu0 %v1344
        %1575 = vmatpush1.bf16.msra.mxu0 %v1343
        %1576 = vmatprep.subr.bf16.mxu0 %v1308
        %1577 = vmatpush1.bf16.msra.mxu0 %v1307
        %1578 = vmatprep.subr.bf16.mxu0 %v1272
        %1579 = vmatpush1.bf16.msra.mxu0 %v1271
        %1580 = vmatprep.subr.bf16.mxu0 %v1236
        %1581 = vmatpush1.bf16.msra.mxu0 %v1235
        %1582 = vmatprep.subr.bf16.mxu0 0
        %1583 = vmatpush2.bf16.msra.mxu0 0
        %1584 = vmatprep.subr.bf16.mxu0 0
        %1585 = vmatpush2.bf16.msra.mxu0 0
        %1586 = vmatprep.subr.bf16.mxu0 0
        %1587 = vmatpush2.bf16.msra.mxu0 0
        %1588 = vmatprep.subr.bf16.mxu0 0
        %1589 = vmatpush2.bf16.msra.mxu0 0
        %1590 = vmatprep.subr.bf16.mxu0 0
        %1591 = vmatpush2.bf16.msra.mxu0 0
        %1592 = vmatprep.subr.bf16.mxu0 0
        %1593 = vmatpush2.bf16.msra.mxu0 0
        %1594 = vmatprep.subr.bf16.mxu0 0
        %1595 = vmatpush2.bf16.msra.mxu0 0
        %1596 = vmatprep.subr.bf16.mxu0 0
        %1597 = vmatpush2.bf16.msra.mxu0 0
        %1598 = vmatprep.mubr.bf16.mxu0 0
        %1599 = vmatmul.mubr.bf16.gmra.mxu0 %v1523
        %v1600 = vpop.f32.mrf.mxu0
        %v1601 = vadd.f32 0.0, %v1600
        %v1602 = vpop.f32.mrf.mxu0
        %v1603 = vadd.f32 0.0, %v1602
        %v1604 = vpop.f32.mrf.mxu0
        %v1605 = vpop.f32.mrf.mxu0
        %1606 = vdwg.mxu0
        %1607 = vmatprep.subr.bf16.mxu0 0
        %1608 = vmatpush1.bf16.msra.mxu0 0
        %1609 = vmatprep.subr.bf16.mxu0 0
        %1610 = vmatpush1.bf16.msra.mxu0 0
        %1611 = vmatprep.subr.bf16.mxu0 0
        %1612 = vmatpush1.bf16.msra.mxu0 0
        %1613 = vmatprep.subr.bf16.mxu0 0
        %1614 = vmatpush1.bf16.msra.mxu0 0
        %1615 = vmatprep.subr.bf16.mxu0 %v1346
        %1616 = vmatpush1.bf16.msra.mxu0 %v1345
        %1617 = vmatprep.subr.bf16.mxu0 %v1310
        %1618 = vmatpush1.bf16.msra.mxu0 %v1309
        %1619 = vmatprep.subr.bf16.mxu0 %v1274
        %1620 = vmatpush1.bf16.msra.mxu0 %v1273
        %1621 = vmatprep.subr.bf16.mxu0 %v1238
        %1622 = vmatpush1.bf16.msra.mxu0 %v1237
        %1623 = vmatprep.subr.bf16.mxu0 0
        %1624 = vmatpush2.bf16.msra.mxu0 0
        %1625 = vmatprep.subr.bf16.mxu0 0
        %1626 = vmatpush2.bf16.msra.mxu0 0
        %1627 = vmatprep.subr.bf16.mxu0 0
        %1628 = vmatpush2.bf16.msra.mxu0 0
        %1629 = vmatprep.subr.bf16.mxu0 0
        %1630 = vmatpush2.bf16.msra.mxu0 0
        %1631 = vmatprep.subr.bf16.mxu0 0
        %1632 = vmatpush2.bf16.msra.mxu0 0
        %1633 = vmatprep.subr.bf16.mxu0 0
        %1634 = vmatpush2.bf16.msra.mxu0 0
        %1635 = vmatprep.subr.bf16.mxu0 0
        %1636 = vmatpush2.bf16.msra.mxu0 0
        %1637 = vmatprep.subr.bf16.mxu0 0
        %1638 = vmatpush2.bf16.msra.mxu0 0
        %1639 = vmatprep.mubr.bf16.mxu0 0
        %1640 = vmatmul.mubr.bf16.gmra.mxu0 %v1523
        %v1641 = vpop.f32.mrf.mxu0
        %v1642 = vadd.f32 0.0, %v1641
        %v1643 = vpop.f32.mrf.mxu0
        %v1644 = vadd.f32 0.0, %v1643
        %v1645 = vpop.f32.mrf.mxu0
        %v1646 = vpop.f32.mrf.mxu0
        %1647 = vdwg.mxu0
        %1648 = vmatprep.subr.bf16.mxu0 0
        %1649 = vmatpush1.bf16.msra.mxu0 0
        %1650 = vmatprep.subr.bf16.mxu0 0
        %1651 = vmatpush1.bf16.msra.mxu0 0
        %1652 = vmatprep.subr.bf16.mxu0 0
        %1653 = vmatpush1.bf16.msra.mxu0 0
        %1654 = vmatprep.subr.bf16.mxu0 0
        %1655 = vmatpush1.bf16.msra.mxu0 0
        %1656 = vmatprep.subr.bf16.mxu0 %v1348
        %1657 = vmatpush1.bf16.msra.mxu0 %v1347
        %1658 = vmatprep.subr.bf16.mxu0 %v1312
        %1659 = vmatpush1.bf16.msra.mxu0 %v1311
        %1660 = vmatprep.subr.bf16.mxu0 %v1276
        %1661 = vmatpush1.bf16.msra.mxu0 %v1275
        %1662 = vmatprep.subr.bf16.mxu0 %v1240
        %1663 = vmatpush1.bf16.msra.mxu0 %v1239
        %1664 = vmatprep.subr.bf16.mxu0 0
        %1665 = vmatpush2.bf16.msra.mxu0 0
        %1666 = vmatprep.subr.bf16.mxu0 0
        %1667 = vmatpush2.bf16.msra.mxu0 0
        %1668 = vmatprep.subr.bf16.mxu0 0
        %1669 = vmatpush2.bf16.msra.mxu0 0
        %1670 = vmatprep.subr.bf16.mxu0 0
        %1671 = vmatpush2.bf16.msra.mxu0 0
        %1672 = vmatprep.subr.bf16.mxu0 0
        %1673 = vmatpush2.bf16.msra.mxu0 0
        %1674 = vmatprep.subr.bf16.mxu0 0
        %1675 = vmatpush2.bf16.msra.mxu0 0
        %1676 = vmatprep.subr.bf16.mxu0 0
        %1677 = vmatpush2.bf16.msra.mxu0 0
        %1678 = vmatprep.subr.bf16.mxu0 0
        %1679 = vmatpush2.bf16.msra.mxu0 0
        %1680 = vmatprep.mubr.bf16.mxu0 0
        %1681 = vmatmul.mubr.bf16.gmra.mxu0 %v1523
        %v1682 = vpop.f32.mrf.mxu0
        %v1683 = vadd.f32 0.0, %v1682
        %v1684 = vpop.f32.mrf.mxu0
        %v1685 = vadd.f32 0.0, %v1684
        %v1686 = vpop.f32.mrf.mxu0
        %v1687 = vpop.f32.mrf.mxu0
        %1688 = vdwg.mxu0
        %1689 = vmatprep.subr.bf16.mxu0 0
        %1690 = vmatpush1.bf16.msra.mxu0 0
        %1691 = vmatprep.subr.bf16.mxu0 0
        %1692 = vmatpush1.bf16.msra.mxu0 0
        %1693 = vmatprep.subr.bf16.mxu0 0
        %1694 = vmatpush1.bf16.msra.mxu0 0
        %1695 = vmatprep.subr.bf16.mxu0 0
        %1696 = vmatpush1.bf16.msra.mxu0 0
        %1697 = vmatprep.subr.bf16.mxu0 %v1350
        %1698 = vmatpush1.bf16.msra.mxu0 %v1349
        %1699 = vmatprep.subr.bf16.mxu0 %v1314
        %1700 = vmatpush1.bf16.msra.mxu0 %v1313
        %1701 = vmatprep.subr.bf16.mxu0 %v1278
        %1702 = vmatpush1.bf16.msra.mxu0 %v1277
        %1703 = vmatprep.subr.bf16.mxu0 %v1242
        %1704 = vmatpush1.bf16.msra.mxu0 %v1241
        %1705 = vmatprep.subr.bf16.mxu0 0
        %1706 = vmatpush2.bf16.msra.mxu0 0
        %1707 = vmatprep.subr.bf16.mxu0 0
        %1708 = vmatpush2.bf16.msra.mxu0 0
        %1709 = vmatprep.subr.bf16.mxu0 0
        %1710 = vmatpush2.bf16.msra.mxu0 0
        %1711 = vmatprep.subr.bf16.mxu0 0
        %1712 = vmatpush2.bf16.msra.mxu0 0
        %1713 = vmatprep.subr.bf16.mxu0 0
        %1714 = vmatpush2.bf16.msra.mxu0 0
        %1715 = vmatprep.subr.bf16.mxu0 0
        %1716 = vmatpush2.bf16.msra.mxu0 0
        %1717 = vmatprep.subr.bf16.mxu0 0
        %1718 = vmatpush2.bf16.msra.mxu0 0
        %1719 = vmatprep.subr.bf16.mxu0 0
        %1720 = vmatpush2.bf16.msra.mxu0 0
        %1721 = vmatprep.mubr.bf16.mxu0 0
        %1722 = vmatmul.mubr.bf16.gmra.mxu0 %v1523
        %v1723 = vpop.f32.mrf.mxu0
        %v1724 = vadd.f32 0.0, %v1723
        %v1725 = vpop.f32.mrf.mxu0
        %v1726 = vadd.f32 0.0, %v1725
        %v1727 = vpop.f32.mrf.mxu0
        %v1728 = vpop.f32.mrf.mxu0
        %1729 = vdwg.mxu0
        %1730 = vmatprep.subr.bf16.mxu0 0
        %1731 = vmatpush1.bf16.msra.mxu0 0
        %1732 = vmatprep.subr.bf16.mxu0 0
        %1733 = vmatpush1.bf16.msra.mxu0 0
        %1734 = vmatprep.subr.bf16.mxu0 0
        %1735 = vmatpush1.bf16.msra.mxu0 0
        %1736 = vmatprep.subr.bf16.mxu0 0
        %1737 = vmatpush1.bf16.msra.mxu0 0
        %1738 = vmatprep.subr.bf16.mxu0 %v1352
        %1739 = vmatpush1.bf16.msra.mxu0 %v1351
        %1740 = vmatprep.subr.bf16.mxu0 %v1316
        %1741 = vmatpush1.bf16.msra.mxu0 %v1315
        %1742 = vmatprep.subr.bf16.mxu0 %v1280
        %1743 = vmatpush1.bf16.msra.mxu0 %v1279
        %1744 = vmatprep.subr.bf16.mxu0 %v1244
        %1745 = vmatpush1.bf16.msra.mxu0 %v1243
        %1746 = vmatprep.subr.bf16.mxu0 0
        %1747 = vmatpush2.bf16.msra.mxu0 0
        %1748 = vmatprep.subr.bf16.mxu0 0
        %1749 = vmatpush2.bf16.msra.mxu0 0
        %1750 = vmatprep.subr.bf16.mxu0 0
        %1751 = vmatpush2.bf16.msra.mxu0 0
        %1752 = vmatprep.subr.bf16.mxu0 0
        %1753 = vmatpush2.bf16.msra.mxu0 0
        %1754 = vmatprep.subr.bf16.mxu0 0
        %1755 = vmatpush2.bf16.msra.mxu0 0
        %1756 = vmatprep.subr.bf16.mxu0 0
        %1757 = vmatpush2.bf16.msra.mxu0 0
        %1758 = vmatprep.subr.bf16.mxu0 0
        %1759 = vmatpush2.bf16.msra.mxu0 0
        %1760 = vmatprep.subr.bf16.mxu0 0
        %1761 = vmatpush2.bf16.msra.mxu0 0
        %1762 = vmatprep.mubr.bf16.mxu0 0
        %1763 = vmatmul.mubr.bf16.gmra.mxu0 %v1523
        %v1764 = vpop.f32.mrf.mxu0
        %v1765 = vadd.f32 0.0, %v1764
        %v1766 = vpop.f32.mrf.mxu0
        %v1767 = vadd.f32 0.0, %v1766
        %v1768 = vpop.f32.mrf.mxu0
        %v1769 = vpop.f32.mrf.mxu0
        %1770 = vdwg.mxu0
        %1771 = vmatprep.subr.bf16.mxu0 0
        %1772 = vmatpush1.bf16.msra.mxu0 0
        %1773 = vmatprep.subr.bf16.mxu0 0
        %1774 = vmatpush1.bf16.msra.mxu0 0
        %1775 = vmatprep.subr.bf16.mxu0 0
        %1776 = vmatpush1.bf16.msra.mxu0 0
        %1777 = vmatprep.subr.bf16.mxu0 0
        %1778 = vmatpush1.bf16.msra.mxu0 0
        %1779 = vmatprep.subr.bf16.mxu0 %v1354
        %1780 = vmatpush1.bf16.msra.mxu0 %v1353
        %1781 = vmatprep.subr.bf16.mxu0 %v1318
        %1782 = vmatpush1.bf16.msra.mxu0 %v1317
        %1783 = vmatprep.subr.bf16.mxu0 %v1282
        %1784 = vmatpush1.bf16.msra.mxu0 %v1281
        %1785 = vmatprep.subr.bf16.mxu0 %v1246
        %1786 = vmatpush1.bf16.msra.mxu0 %v1245
        %1787 = vmatprep.subr.bf16.mxu0 0
        %1788 = vmatpush2.bf16.msra.mxu0 0
        %1789 = vmatprep.subr.bf16.mxu0 0
        %1790 = vmatpush2.bf16.msra.mxu0 0
        %1791 = vmatprep.subr.bf16.mxu0 0
        %1792 = vmatpush2.bf16.msra.mxu0 0
        %1793 = vmatprep.subr.bf16.mxu0 0
        %1794 = vmatpush2.bf16.msra.mxu0 0
        %1795 = vmatprep.subr.bf16.mxu0 0
        %1796 = vmatpush2.bf16.msra.mxu0 0
        %1797 = vmatprep.subr.bf16.mxu0 0
        %1798 = vmatpush2.bf16.msra.mxu0 0
        %1799 = vmatprep.subr.bf16.mxu0 0
        %1800 = vmatpush2.bf16.msra.mxu0 0
        %1801 = vmatprep.subr.bf16.mxu0 0
        %1802 = vmatpush2.bf16.msra.mxu0 0
        %1803 = vmatprep.mubr.bf16.mxu0 0
        %1804 = vmatmul.mubr.bf16.gmra.mxu0 %v1523
        %v1805 = vpop.f32.mrf.mxu0
        %v1806 = vadd.f32 0.0, %v1805
        %v1807 = vpop.f32.mrf.mxu0
        %v1808 = vadd.f32 0.0, %v1807
        %v1809 = vpop.f32.mrf.mxu0
        %v1810 = vpop.f32.mrf.mxu0
        %1811 = vdwg.mxu0
        %1812 = vmatprep.subr.bf16.mxu0 0
        %1813 = vmatpush1.bf16.msra.mxu0 0
        %1814 = vmatprep.subr.bf16.mxu0 0
        %1815 = vmatpush1.bf16.msra.mxu0 0
        %1816 = vmatprep.subr.bf16.mxu0 0
        %1817 = vmatpush1.bf16.msra.mxu0 0
        %1818 = vmatprep.subr.bf16.mxu0 0
        %1819 = vmatpush1.bf16.msra.mxu0 0
        %1820 = vmatprep.subr.bf16.mxu0 %v1356
        %1821 = vmatpush1.bf16.msra.mxu0 %v1355
        %1822 = vmatprep.subr.bf16.mxu0 %v1320
        %1823 = vmatpush1.bf16.msra.mxu0 %v1319
        %1824 = vmatprep.subr.bf16.mxu0 %v1284
        %1825 = vmatpush1.bf16.msra.mxu0 %v1283
        %1826 = vmatprep.subr.bf16.mxu0 %v1248
        %1827 = vmatpush1.bf16.msra.mxu0 %v1247
        %1828 = vmatprep.subr.bf16.mxu0 0
        %1829 = vmatpush2.bf16.msra.mxu0 0
        %1830 = vmatprep.subr.bf16.mxu0 0
        %1831 = vmatpush2.bf16.msra.mxu0 0
        %1832 = vmatprep.subr.bf16.mxu0 0
        %1833 = vmatpush2.bf16.msra.mxu0 0
        %1834 = vmatprep.subr.bf16.mxu0 0
        %1835 = vmatpush2.bf16.msra.mxu0 0
        %1836 = vmatprep.subr.bf16.mxu0 0
        %1837 = vmatpush2.bf16.msra.mxu0 0
        %1838 = vmatprep.subr.bf16.mxu0 0
        %1839 = vmatpush2.bf16.msra.mxu0 0
        %1840 = vmatprep.subr.bf16.mxu0 0
        %1841 = vmatpush2.bf16.msra.mxu0 0
        %1842 = vmatprep.subr.bf16.mxu0 0
        %1843 = vmatpush2.bf16.msra.mxu0 0
        %1844 = vmatprep.mubr.bf16.mxu0 0
        %1845 = vmatmul.mubr.bf16.gmra.mxu0 %v1523
        %v1846 = vpop.f32.mrf.mxu0
        %v1847 = vadd.f32 0.0, %v1846
        %v1848 = vpop.f32.mrf.mxu0
        %v1849 = vadd.f32 0.0, %v1848
        %v1850 = vpop.f32.mrf.mxu0
        %v1851 = vpop.f32.mrf.mxu0
        %1852 = vdwg.mxu0
        %1853 = vmatprep.subr.bf16.mxu0 0
        %1854 = vmatpush1.bf16.msra.mxu0 0
        %1855 = vmatprep.subr.bf16.mxu0 0
        %1856 = vmatpush1.bf16.msra.mxu0 0
        %1857 = vmatprep.subr.bf16.mxu0 0
        %1858 = vmatpush1.bf16.msra.mxu0 0
        %1859 = vmatprep.subr.bf16.mxu0 0
        %1860 = vmatpush1.bf16.msra.mxu0 0
        %1861 = vmatprep.subr.bf16.mxu0 %v1358
        %1862 = vmatpush1.bf16.msra.mxu0 %v1357
        %1863 = vmatprep.subr.bf16.mxu0 %v1322
        %1864 = vmatpush1.bf16.msra.mxu0 %v1321
        %1865 = vmatprep.subr.bf16.mxu0 %v1286
        %1866 = vmatpush1.bf16.msra.mxu0 %v1285
        %1867 = vmatprep.subr.bf16.mxu0 %v1250
        %1868 = vmatpush1.bf16.msra.mxu0 %v1249
        %1869 = vmatprep.subr.bf16.mxu0 0
        %1870 = vmatpush2.bf16.msra.mxu0 0
        %1871 = vmatprep.subr.bf16.mxu0 0
        %1872 = vmatpush2.bf16.msra.mxu0 0
        %1873 = vmatprep.subr.bf16.mxu0 0
        %1874 = vmatpush2.bf16.msra.mxu0 0
        %1875 = vmatprep.subr.bf16.mxu0 0
        %1876 = vmatpush2.bf16.msra.mxu0 0
        %1877 = vmatprep.subr.bf16.mxu0 0
        %1878 = vmatpush2.bf16.msra.mxu0 0
        %1879 = vmatprep.subr.bf16.mxu0 0
        %1880 = vmatpush2.bf16.msra.mxu0 0
        %1881 = vmatprep.subr.bf16.mxu0 0
        %1882 = vmatpush2.bf16.msra.mxu0 0
        %1883 = vmatprep.subr.bf16.mxu0 0
        %1884 = vmatpush2.bf16.msra.mxu0 0
        %1885 = vmatprep.mubr.bf16.mxu0 0
        %1886 = vmatmul.mubr.bf16.gmra.mxu0 %v1523
        %v1887 = vpop.f32.mrf.mxu0
        %v1888 = vadd.f32 0.0, %v1887
        %v1889 = vpop.f32.mrf.mxu0
        %v1890 = vadd.f32 0.0, %v1889
        %v1891 = vpop.f32.mrf.mxu0
        %v1892 = vpop.f32.mrf.mxu0
        %1893 = vdwg.mxu0
        %1894 = vmatprep.subr.bf16.mxu0 0
        %1895 = vmatpush1.bf16.msra.mxu0 0
        %1896 = vmatprep.subr.bf16.mxu0 0
        %1897 = vmatpush1.bf16.msra.mxu0 0
        %1898 = vmatprep.subr.bf16.mxu0 0
        %1899 = vmatpush1.bf16.msra.mxu0 0
        %1900 = vmatprep.subr.bf16.mxu0 0
        %1901 = vmatpush1.bf16.msra.mxu0 0
        %1902 = vmatprep.subr.bf16.mxu0 %v1360
        %1903 = vmatpush1.bf16.msra.mxu0 %v1359
        %1904 = vmatprep.subr.bf16.mxu0 %v1324
        %1905 = vmatpush1.bf16.msra.mxu0 %v1323
        %1906 = vmatprep.subr.bf16.mxu0 %v1288
        %1907 = vmatpush1.bf16.msra.mxu0 %v1287
        %1908 = vmatprep.subr.bf16.mxu0 %v1252
        %1909 = vmatpush1.bf16.msra.mxu0 %v1251
        %1910 = vmatprep.subr.bf16.mxu0 0
        %1911 = vmatpush2.bf16.msra.mxu0 0
        %1912 = vmatprep.subr.bf16.mxu0 0
        %1913 = vmatpush2.bf16.msra.mxu0 0
        %1914 = vmatprep.subr.bf16.mxu0 0
        %1915 = vmatpush2.bf16.msra.mxu0 0
        %1916 = vmatprep.subr.bf16.mxu0 0
        %1917 = vmatpush2.bf16.msra.mxu0 0
        %1918 = vmatprep.subr.bf16.mxu0 0
        %1919 = vmatpush2.bf16.msra.mxu0 0
        %1920 = vmatprep.subr.bf16.mxu0 0
        %1921 = vmatpush2.bf16.msra.mxu0 0
        %1922 = vmatprep.subr.bf16.mxu0 0
        %1923 = vmatpush2.bf16.msra.mxu0 0
        %1924 = vmatprep.subr.bf16.mxu0 0
        %1925 = vmatpush2.bf16.msra.mxu0 0
        %1926 = vmatprep.mubr.bf16.mxu0 0
        %1927 = vmatmul.mubr.bf16.gmra.mxu0 %v1523
        %v1928 = vpop.f32.mrf.mxu0
        %v1929 = vadd.f32 0.0, %v1928
        %v1930 = vpop.f32.mrf.mxu0
        %v1931 = vadd.f32 0.0, %v1930
        %v1932 = vpop.f32.mrf.mxu0
        %v1933 = vpop.f32.mrf.mxu0
        %1934 = vdwg.mxu0
        %1935 = vmatprep.subr.bf16.mxu0 0
        %1936 = vmatpush1.bf16.msra.mxu0 0
        %1937 = vmatprep.subr.bf16.mxu0 0
        %1938 = vmatpush1.bf16.msra.mxu0 0
        %1939 = vmatprep.subr.bf16.mxu0 0
        %1940 = vmatpush1.bf16.msra.mxu0 0
        %1941 = vmatprep.subr.bf16.mxu0 0
        %1942 = vmatpush1.bf16.msra.mxu0 0
        %1943 = vmatprep.subr.bf16.mxu0 %v1362
        %1944 = vmatpush1.bf16.msra.mxu0 %v1361
        %1945 = vmatprep.subr.bf16.mxu0 %v1326
        %1946 = vmatpush1.bf16.msra.mxu0 %v1325
        %1947 = vmatprep.subr.bf16.mxu0 %v1290
        %1948 = vmatpush1.bf16.msra.mxu0 %v1289
        %1949 = vmatprep.subr.bf16.mxu0 %v1254
        %1950 = vmatpush1.bf16.msra.mxu0 %v1253
        %1951 = vmatprep.subr.bf16.mxu0 0
        %1952 = vmatpush2.bf16.msra.mxu0 0
        %1953 = vmatprep.subr.bf16.mxu0 0
        %1954 = vmatpush2.bf16.msra.mxu0 0
        %1955 = vmatprep.subr.bf16.mxu0 0
        %1956 = vmatpush2.bf16.msra.mxu0 0
        %1957 = vmatprep.subr.bf16.mxu0 0
        %1958 = vmatpush2.bf16.msra.mxu0 0
        %1959 = vmatprep.subr.bf16.mxu0 0
        %1960 = vmatpush2.bf16.msra.mxu0 0
        %1961 = vmatprep.subr.bf16.mxu0 0
        %1962 = vmatpush2.bf16.msra.mxu0 0
        %1963 = vmatprep.subr.bf16.mxu0 0
        %1964 = vmatpush2.bf16.msra.mxu0 0
        %1965 = vmatprep.subr.bf16.mxu0 0
        %1966 = vmatpush2.bf16.msra.mxu0 0
        %1967 = vmatprep.mubr.bf16.mxu0 0
        %1968 = vmatmul.mubr.bf16.gmra.mxu0 %v1523
        %v1969 = vpop.f32.mrf.mxu0
        %v1970 = vadd.f32 0.0, %v1969
        %v1971 = vpop.f32.mrf.mxu0
        %v1972 = vadd.f32 0.0, %v1971
        %v1973 = vpop.f32.mrf.mxu0
        %v1974 = vpop.f32.mrf.mxu0
        %1975 = vdwg.mxu0
        %1976 = vmatprep.subr.bf16.mxu0 0
        %1977 = vmatpush1.bf16.msra.mxu0 0
        %1978 = vmatprep.subr.bf16.mxu0 0
        %1979 = vmatpush1.bf16.msra.mxu0 0
        %1980 = vmatprep.subr.bf16.mxu0 0
        %1981 = vmatpush1.bf16.msra.mxu0 0
        %1982 = vmatprep.subr.bf16.mxu0 0
        %1983 = vmatpush1.bf16.msra.mxu0 0
        %1984 = vmatprep.subr.bf16.mxu0 %v1364
        %1985 = vmatpush1.bf16.msra.mxu0 %v1363
        %1986 = vmatprep.subr.bf16.mxu0 %v1328
        %1987 = vmatpush1.bf16.msra.mxu0 %v1327
        %1988 = vmatprep.subr.bf16.mxu0 %v1292
        %1989 = vmatpush1.bf16.msra.mxu0 %v1291
        %1990 = vmatprep.subr.bf16.mxu0 %v1256
        %1991 = vmatpush1.bf16.msra.mxu0 %v1255
        %1992 = vmatprep.subr.bf16.mxu0 0
        %1993 = vmatpush2.bf16.msra.mxu0 0
        %1994 = vmatprep.subr.bf16.mxu0 0
        %1995 = vmatpush2.bf16.msra.mxu0 0
        %1996 = vmatprep.subr.bf16.mxu0 0
        %1997 = vmatpush2.bf16.msra.mxu0 0
        %1998 = vmatprep.subr.bf16.mxu0 0
        %1999 = vmatpush2.bf16.msra.mxu0 0
        %2000 = vmatprep.subr.bf16.mxu0 0
        %2001 = vmatpush2.bf16.msra.mxu0 0
        %2002 = vmatprep.subr.bf16.mxu0 0
        %2003 = vmatpush2.bf16.msra.mxu0 0
        %2004 = vmatprep.subr.bf16.mxu0 0
        %2005 = vmatpush2.bf16.msra.mxu0 0
        %2006 = vmatprep.subr.bf16.mxu0 0
        %2007 = vmatpush2.bf16.msra.mxu0 0
        %2008 = vmatprep.mubr.bf16.mxu0 0
        %2009 = vmatmul.mubr.bf16.gmra.mxu0 %v1523
        %v2010 = vpop.f32.mrf.mxu0
        %v2011 = vadd.f32 0.0, %v2010
        %v2012 = vpop.f32.mrf.mxu0
        %v2013 = vadd.f32 0.0, %v2012
        %v2014 = vpop.f32.mrf.mxu0
        %v2015 = vpop.f32.mrf.mxu0
        %2016 = vdwg.mxu0
        %2017 = vmatprep.subr.bf16.mxu0 0
        %2018 = vmatpush1.bf16.msra.mxu0 0
        %2019 = vmatprep.subr.bf16.mxu0 0
        %2020 = vmatpush1.bf16.msra.mxu0 0
        %2021 = vmatprep.subr.bf16.mxu0 0
        %2022 = vmatpush1.bf16.msra.mxu0 0
        %2023 = vmatprep.subr.bf16.mxu0 0
        %2024 = vmatpush1.bf16.msra.mxu0 0
        %2025 = vmatprep.subr.bf16.mxu0 %v1366
        %2026 = vmatpush1.bf16.msra.mxu0 %v1365
        %2027 = vmatprep.subr.bf16.mxu0 %v1330
        %2028 = vmatpush1.bf16.msra.mxu0 %v1329
        %2029 = vmatprep.subr.bf16.mxu0 %v1294
        %2030 = vmatpush1.bf16.msra.mxu0 %v1293
        %2031 = vmatprep.subr.bf16.mxu0 %v1258
        %2032 = vmatpush1.bf16.msra.mxu0 %v1257
        %2033 = vmatprep.subr.bf16.mxu0 0
        %2034 = vmatpush2.bf16.msra.mxu0 0
        %2035 = vmatprep.subr.bf16.mxu0 0
        %2036 = vmatpush2.bf16.msra.mxu0 0
        %2037 = vmatprep.subr.bf16.mxu0 0
        %2038 = vmatpush2.bf16.msra.mxu0 0
        %2039 = vmatprep.subr.bf16.mxu0 0
        %2040 = vmatpush2.bf16.msra.mxu0 0
        %2041 = vmatprep.subr.bf16.mxu0 0
        %2042 = vmatpush2.bf16.msra.mxu0 0
        %2043 = vmatprep.subr.bf16.mxu0 0
        %2044 = vmatpush2.bf16.msra.mxu0 0
        %2045 = vmatprep.subr.bf16.mxu0 0
        %2046 = vmatpush2.bf16.msra.mxu0 0
        %2047 = vmatprep.subr.bf16.mxu0 0
        %2048 = vmatpush2.bf16.msra.mxu0 0
        %2049 = vmatprep.mubr.bf16.mxu0 0
        %2050 = vmatmul.mubr.bf16.gmra.mxu0 %v1523
        %v2051 = vpop.f32.mrf.mxu0
        %v2052 = vadd.f32 0.0, %v2051
        %v2053 = vpop.f32.mrf.mxu0
        %v2054 = vadd.f32 0.0, %v2053
        %v2055 = vpop.f32.mrf.mxu0
        %v2056 = vpop.f32.mrf.mxu0
        %2057 = vdwg.mxu0
        %2058 = vmatprep.subr.bf16.mxu0 0
        %2059 = vmatpush1.bf16.msra.mxu0 0
        %2060 = vmatprep.subr.bf16.mxu0 0
        %2061 = vmatpush1.bf16.msra.mxu0 0
        %2062 = vmatprep.subr.bf16.mxu0 0
        %2063 = vmatpush1.bf16.msra.mxu0 0
        %2064 = vmatprep.subr.bf16.mxu0 0
        %2065 = vmatpush1.bf16.msra.mxu0 0
        %2066 = vmatprep.subr.bf16.mxu0 %v1368
        %2067 = vmatpush1.bf16.msra.mxu0 %v1367
        %2068 = vmatprep.subr.bf16.mxu0 %v1332
        %2069 = vmatpush1.bf16.msra.mxu0 %v1331
        %2070 = vmatprep.subr.bf16.mxu0 %v1296
        %2071 = vmatpush1.bf16.msra.mxu0 %v1295
        %2072 = vmatprep.subr.bf16.mxu0 %v1260
        %2073 = vmatpush1.bf16.msra.mxu0 %v1259
        %2074 = vmatprep.subr.bf16.mxu0 0
        %2075 = vmatpush2.bf16.msra.mxu0 0
        %2076 = vmatprep.subr.bf16.mxu0 0
        %2077 = vmatpush2.bf16.msra.mxu0 0
        %2078 = vmatprep.subr.bf16.mxu0 0
        %2079 = vmatpush2.bf16.msra.mxu0 0
        %2080 = vmatprep.subr.bf16.mxu0 0
        %2081 = vmatpush2.bf16.msra.mxu0 0
        %2082 = vmatprep.subr.bf16.mxu0 0
        %2083 = vmatpush2.bf16.msra.mxu0 0
        %2084 = vmatprep.subr.bf16.mxu0 0
        %2085 = vmatpush2.bf16.msra.mxu0 0
        %2086 = vmatprep.subr.bf16.mxu0 0
        %2087 = vmatpush2.bf16.msra.mxu0 0
        %2088 = vmatprep.subr.bf16.mxu0 0
        %2089 = vmatpush2.bf16.msra.mxu0 0
        %2090 = vmatprep.mubr.bf16.mxu0 0
        %2091 = vmatmul.mubr.bf16.gmra.mxu0 %v1523
        %v2092 = vpop.f32.mrf.mxu0
        %v2093 = vadd.f32 0.0, %v2092
        %v2094 = vpop.f32.mrf.mxu0
        %v2095 = vadd.f32 0.0, %v2094
        %v2096 = vpop.f32.mrf.mxu0
        %v2097 = vpop.f32.mrf.mxu0
        %2098 = vdwg.mxu0
        %2099 = vmatprep.subr.bf16.mxu0 0
        %2100 = vmatpush1.bf16.msra.mxu0 0
        %2101 = vmatprep.subr.bf16.mxu0 0
        %2102 = vmatpush1.bf16.msra.mxu0 0
        %2103 = vmatprep.subr.bf16.mxu0 0
        %2104 = vmatpush1.bf16.msra.mxu0 0
        %2105 = vmatprep.subr.bf16.mxu0 0
        %2106 = vmatpush1.bf16.msra.mxu0 0
        %2107 = vmatprep.subr.bf16.mxu0 %v1370
        %2108 = vmatpush1.bf16.msra.mxu0 %v1369
        %2109 = vmatprep.subr.bf16.mxu0 %v1334
        %2110 = vmatpush1.bf16.msra.mxu0 %v1333
        %2111 = vmatprep.subr.bf16.mxu0 %v1298
        %2112 = vmatpush1.bf16.msra.mxu0 %v1297
        %2113 = vmatprep.subr.bf16.mxu0 %v1262
        %2114 = vmatpush1.bf16.msra.mxu0 %v1261
        %2115 = vmatprep.subr.bf16.mxu0 0
        %2116 = vmatpush2.bf16.msra.mxu0 0
        %2117 = vmatprep.subr.bf16.mxu0 0
        %2118 = vmatpush2.bf16.msra.mxu0 0
        %2119 = vmatprep.subr.bf16.mxu0 0
        %2120 = vmatpush2.bf16.msra.mxu0 0
        %2121 = vmatprep.subr.bf16.mxu0 0
        %2122 = vmatpush2.bf16.msra.mxu0 0
        %2123 = vmatprep.subr.bf16.mxu0 0
        %2124 = vmatpush2.bf16.msra.mxu0 0
        %2125 = vmatprep.subr.bf16.mxu0 0
        %2126 = vmatpush2.bf16.msra.mxu0 0
        %2127 = vmatprep.subr.bf16.mxu0 0
        %2128 = vmatpush2.bf16.msra.mxu0 0
        %2129 = vmatprep.subr.bf16.mxu0 0
        %2130 = vmatpush2.bf16.msra.mxu0 0
        %2131 = vmatprep.mubr.bf16.mxu0 0
        %2132 = vmatmul.mubr.bf16.gmra.mxu0 %v1523
        %v2133 = vpop.f32.mrf.mxu0
        %v2134 = vadd.f32 0.0, %v2133
        %v2135 = vpop.f32.mrf.mxu0
        %v2136 = vadd.f32 0.0, %v2135
        %v2137 = vpop.f32.mrf.mxu0
        %v2138 = vpop.f32.mrf.mxu0
        %2139 = vdwg.mxu0
        %2140 = vmatprep.subr.bf16.mxu0 0
        %2141 = vmatpush1.bf16.msra.mxu0 0
        %2142 = vmatprep.subr.bf16.mxu0 0
        %2143 = vmatpush1.bf16.msra.mxu0 0
        %2144 = vmatprep.subr.bf16.mxu0 0
        %2145 = vmatpush1.bf16.msra.mxu0 0
        %2146 = vmatprep.subr.bf16.mxu0 0
        %2147 = vmatpush1.bf16.msra.mxu0 0
        %2148 = vmatprep.subr.bf16.mxu0 %v1372
        %2149 = vmatpush1.bf16.msra.mxu0 %v1371
        %2150 = vmatprep.subr.bf16.mxu0 %v1336
        %2151 = vmatpush1.bf16.msra.mxu0 %v1335
        %2152 = vmatprep.subr.bf16.mxu0 %v1300
        %2153 = vmatpush1.bf16.msra.mxu0 %v1299
        %2154 = vmatprep.subr.bf16.mxu0 %v1264
        %2155 = vmatpush1.bf16.msra.mxu0 %v1263
        %2156 = vmatprep.subr.bf16.mxu0 0
        %2157 = vmatpush2.bf16.msra.mxu0 0
        %2158 = vmatprep.subr.bf16.mxu0 0
        %2159 = vmatpush2.bf16.msra.mxu0 0
        %2160 = vmatprep.subr.bf16.mxu0 0
        %2161 = vmatpush2.bf16.msra.mxu0 0
        %2162 = vmatprep.subr.bf16.mxu0 0
        %2163 = vmatpush2.bf16.msra.mxu0 0
        %2164 = vmatprep.subr.bf16.mxu0 0
        %2165 = vmatpush2.bf16.msra.mxu0 0
        %2166 = vmatprep.subr.bf16.mxu0 0
        %2167 = vmatpush2.bf16.msra.mxu0 0
        %2168 = vmatprep.subr.bf16.mxu0 0
        %2169 = vmatpush2.bf16.msra.mxu0 0
        %2170 = vmatprep.subr.bf16.mxu0 0
        %2171 = vmatpush2.bf16.msra.mxu0 0
        %2172 = vmatprep.mubr.bf16.mxu0 0
        %2173 = vmatmul.mubr.bf16.gmra.mxu0 %v1523
        %v2174 = vpop.f32.mrf.mxu0
        %v2175 = vadd.f32 0.0, %v2174
        %v2176 = vpop.f32.mrf.mxu0
        %v2177 = vadd.f32 0.0, %v2176
        %v2178 = vpop.f32.mrf.mxu0
        %v2179 = vpop.f32.mrf.mxu0
        %2180 = vdwg.mxu0
        %2181 = vmatprep.subr.bf16.mxu0 0
        %2182 = vmatpush1.bf16.msra.mxu0 0
        %2183 = vmatprep.subr.bf16.mxu0 0
        %2184 = vmatpush1.bf16.msra.mxu0 0
        %2185 = vmatprep.subr.bf16.mxu0 0
        %2186 = vmatpush1.bf16.msra.mxu0 0
        %2187 = vmatprep.subr.bf16.mxu0 0
        %2188 = vmatpush1.bf16.msra.mxu0 0
        %2189 = vmatprep.subr.bf16.mxu0 %v1374
        %2190 = vmatpush1.bf16.msra.mxu0 %v1373
        %2191 = vmatprep.subr.bf16.mxu0 %v1338
        %2192 = vmatpush1.bf16.msra.mxu0 %v1337
        %2193 = vmatprep.subr.bf16.mxu0 %v1302
        %2194 = vmatpush1.bf16.msra.mxu0 %v1301
        %2195 = vmatprep.subr.bf16.mxu0 %v1266
        %2196 = vmatpush1.bf16.msra.mxu0 %v1265
        %2197 = vmatprep.subr.bf16.mxu0 0
        %2198 = vmatpush2.bf16.msra.mxu0 0
        %2199 = vmatprep.subr.bf16.mxu0 0
        %2200 = vmatpush2.bf16.msra.mxu0 0
        %2201 = vmatprep.subr.bf16.mxu0 0
        %2202 = vmatpush2.bf16.msra.mxu0 0
        %2203 = vmatprep.subr.bf16.mxu0 0
        %2204 = vmatpush2.bf16.msra.mxu0 0
        %2205 = vmatprep.subr.bf16.mxu0 0
        %2206 = vmatpush2.bf16.msra.mxu0 0
        %2207 = vmatprep.subr.bf16.mxu0 0
        %2208 = vmatpush2.bf16.msra.mxu0 0
        %2209 = vmatprep.subr.bf16.mxu0 0
        %2210 = vmatpush2.bf16.msra.mxu0 0
        %2211 = vmatprep.subr.bf16.mxu0 0
        %2212 = vmatpush2.bf16.msra.mxu0 0
        %2213 = vmatprep.mubr.bf16.mxu0 0
        %2214 = vmatmul.mubr.bf16.gmra.mxu0 %v1523
        %v2215 = vpop.f32.mrf.mxu0
        %v2216 = vadd.f32 0.0, %v2215
        %v2217 = vpop.f32.mrf.mxu0
        %v2218 = vadd.f32 0.0, %v2217
        %v2219 = vpop.f32.mrf.mxu0
        %v2220 = vpop.f32.mrf.mxu0
        %2221 = vdwg.mxu0
        %2222 = vmatprep.subr.bf16.mxu0 0
        %2223 = vmatpush1.bf16.msra.mxu0 0
        %2224 = vmatprep.subr.bf16.mxu0 0
        %2225 = vmatpush1.bf16.msra.mxu0 0
        %2226 = vmatprep.subr.bf16.mxu0 0
        %2227 = vmatpush1.bf16.msra.mxu0 0
        %2228 = vmatprep.subr.bf16.mxu0 0
        %2229 = vmatpush1.bf16.msra.mxu0 0
        %2230 = vmatprep.subr.bf16.mxu0 %v1376
        %2231 = vmatpush1.bf16.msra.mxu0 %v1375
        %2232 = vmatprep.subr.bf16.mxu0 %v1340
        %2233 = vmatpush1.bf16.msra.mxu0 %v1339
        %2234 = vmatprep.subr.bf16.mxu0 %v1304
        %2235 = vmatpush1.bf16.msra.mxu0 %v1303
        %2236 = vmatprep.subr.bf16.mxu0 %v1268
        %2237 = vmatpush1.bf16.msra.mxu0 %v1267
        %2238 = vmatprep.subr.bf16.mxu0 0
        %2239 = vmatpush2.bf16.msra.mxu0 0
        %2240 = vmatprep.subr.bf16.mxu0 0
        %2241 = vmatpush2.bf16.msra.mxu0 0
        %2242 = vmatprep.subr.bf16.mxu0 0
        %2243 = vmatpush2.bf16.msra.mxu0 0
        %2244 = vmatprep.subr.bf16.mxu0 0
        %2245 = vmatpush2.bf16.msra.mxu0 0
        %2246 = vmatprep.subr.bf16.mxu0 0
        %2247 = vmatpush2.bf16.msra.mxu0 0
        %2248 = vmatprep.subr.bf16.mxu0 0
        %2249 = vmatpush2.bf16.msra.mxu0 0
        %2250 = vmatprep.subr.bf16.mxu0 0
        %2251 = vmatpush2.bf16.msra.mxu0 0
        %2252 = vmatprep.subr.bf16.mxu0 0
        %2253 = vmatpush2.bf16.msra.mxu0 0
        %2254 = vmatprep.mubr.bf16.mxu0 0
        %2255 = vmatmul.mubr.bf16.gmra.mxu0 %v1523
        %v2256 = vpop.f32.mrf.mxu0
        %v2257 = vadd.f32 0.0, %v2256
        %v2258 = vpop.f32.mrf.mxu0
        %v2259 = vadd.f32 0.0, %v2258
        %v2260 = vpop.f32.mrf.mxu0
        %v2261 = vpop.f32.mrf.mxu0
        %2262 = vdwg.mxu0
        %v2263 = vlaneseq
        %v2264 = vand.u32 %v2263, 127
        %v2265 = vadd.s32 %v2264, 128
        %v2266 = vadd.s32 %v2264, 256
        %v2267 = vadd.s32 %v2264, 384
        %vm2268 = vcmp.ge.s32.totalorder %v2264, 64
        %vm2269 = vcmp.ge.s32.totalorder %v2265, 64
        %vm2270 = vcmp.ge.s32.totalorder %v2266, 64
        %vm2271 = vcmp.ge.s32.totalorder %v2267, 64
        %2272 = vrot.lane.b32.xlu0 %v482, 64
        %v2273 = vpop.permute.xlu0 %2272
        %2274 = vrot.lane.b32.xlu0 %v486, 64
        %v2275 = vpop.permute.xlu0 %2274
        %2276 = vrot.lane.b32.xlu0 %v490, 64
        %v2277 = vpop.permute.xlu0 %2276
        %2278 = vrot.lane.b32.xlu0 %v494, 64
        %v2279 = vpop.permute.xlu0 %2278
        %2280 = vrot.lane.b32.xlu0 %v498, 64
        %v2281 = vpop.permute.xlu0 %2280
        %2282 = vrot.lane.b32.xlu0 %v502, 64
        %v2283 = vpop.permute.xlu0 %2282
        %2284 = vrot.lane.b32.xlu0 %v506, 64
        %v2285 = vpop.permute.xlu0 %2284
        %2286 = vrot.lane.b32.xlu0 %v510, 64
        %v2287 = vpop.permute.xlu0 %2286
        %2288 = vrot.lane.b32.xlu0 %v483, 64
        %v2289 = vpop.permute.xlu0 %2288
        %2290 = vrot.lane.b32.xlu0 %v487, 64
        %v2291 = vpop.permute.xlu0 %2290
        %2292 = vrot.lane.b32.xlu0 %v491, 64
        %v2293 = vpop.permute.xlu0 %2292
        %2294 = vrot.lane.b32.xlu0 %v495, 64
        %v2295 = vpop.permute.xlu0 %2294
        %2296 = vrot.lane.b32.xlu0 %v499, 64
        %v2297 = vpop.permute.xlu0 %2296
        %2298 = vrot.lane.b32.xlu0 %v503, 64
        %v2299 = vpop.permute.xlu0 %2298
        %2300 = vrot.lane.b32.xlu0 %v507, 64
        %v2301 = vpop.permute.xlu0 %2300
        %2302 = vrot.lane.b32.xlu0 %v511, 64
        %v2303 = vpop.permute.xlu0 %2302
        %2304 = vrot.lane.b32.xlu0 %v484, 64
        %v2305 = vpop.permute.xlu0 %2304
        %2306 = vrot.lane.b32.xlu0 %v488, 64
        %v2307 = vpop.permute.xlu0 %2306
        %2308 = vrot.lane.b32.xlu0 %v492, 64
        %v2309 = vpop.permute.xlu0 %2308
        %2310 = vrot.lane.b32.xlu0 %v496, 64
        %v2311 = vpop.permute.xlu0 %2310
        %2312 = vrot.lane.b32.xlu0 %v500, 64
        %v2313 = vpop.permute.xlu0 %2312
        %2314 = vrot.lane.b32.xlu0 %v504, 64
        %v2315 = vpop.permute.xlu0 %2314
        %2316 = vrot.lane.b32.xlu0 %v508, 64
        %v2317 = vpop.permute.xlu0 %2316
        %2318 = vrot.lane.b32.xlu0 %v512, 64
        %v2319 = vpop.permute.xlu0 %2318
        %2320 = vrot.lane.b32.xlu0 %v485, 64
        %v2321 = vpop.permute.xlu0 %2320
        %2322 = vrot.lane.b32.xlu0 %v489, 64
        %v2323 = vpop.permute.xlu0 %2322
        %2324 = vrot.lane.b32.xlu0 %v493, 64
        %v2325 = vpop.permute.xlu0 %2324
        %2326 = vrot.lane.b32.xlu0 %v497, 64
        %v2327 = vpop.permute.xlu0 %2326
        %2328 = vrot.lane.b32.xlu0 %v501, 64
        %v2329 = vpop.permute.xlu0 %2328
        %2330 = vrot.lane.b32.xlu0 %v505, 64
        %v2331 = vpop.permute.xlu0 %2330
        %2332 = vrot.lane.b32.xlu0 %v509, 64
        %v2333 = vpop.permute.xlu0 %2332
        %2334 = vrot.lane.b32.xlu0 %v513, 64
        %v2335 = vpop.permute.xlu0 %2334
        %vm2336 = vcmp.lt.s32.totalorder %v2264, 64
        %v2337 = vsel %vm2336, %v2305, %v2321
        %v2338 = vsel %vm2336, %v2307, %v2323
        %v2339 = vsel %vm2336, %v2309, %v2325
        %v2340 = vsel %vm2336, %v2311, %v2327
        %v2341 = vsel %vm2336, %v2313, %v2329
        %v2342 = vsel %vm2336, %v2315, %v2331
        %v2343 = vsel %vm2336, %v2317, %v2333
        %v2344 = vsel %vm2336, %v2319, %v2335
        %v2345 = vsel %vm2336, %v2289, %v2305
        %v2346 = vsel %vm2336, %v2291, %v2307
        %v2347 = vsel %vm2336, %v2293, %v2309
        %v2348 = vsel %vm2336, %v2295, %v2311
        %v2349 = vsel %vm2336, %v2297, %v2313
        %v2350 = vsel %vm2336, %v2299, %v2315
        %v2351 = vsel %vm2336, %v2301, %v2317
        %v2352 = vsel %vm2336, %v2303, %v2319
        %v2353 = vsel %vm2336, %v2273, %v2289
        %v2354 = vsel %vm2336, %v2275, %v2291
        %v2355 = vsel %vm2336, %v2277, %v2293
        %v2356 = vsel %vm2336, %v2279, %v2295
        %v2357 = vsel %vm2336, %v2281, %v2297
        %v2358 = vsel %vm2336, %v2283, %v2299
        %v2359 = vsel %vm2336, %v2285, %v2301
        %v2360 = vsel %vm2336, %v2287, %v2303
        %v2361 = vsel %vm2336, %v2321, %v2273
        %v2362 = vsel %vm2336, %v2323, %v2275
        %v2363 = vsel %vm2336, %v2325, %v2277
        %v2364 = vsel %vm2336, %v2327, %v2279
        %v2365 = vsel %vm2336, %v2329, %v2281
        %v2366 = vsel %vm2336, %v2331, %v2283
        %v2367 = vsel %vm2336, %v2333, %v2285
        %v2368 = vsel %vm2336, %v2335, %v2287
        %v2369 = vsel %vm2268, %v2361, 0.0
        %v2370 = vsel %vm2269, %v2353, 0.0
        %v2371 = vsel %vm2270, %v2345, 0.0
        %v2372 = vsel %vm2271, %v2337, 0.0
        %v2373 = vsel %vm2268, %v2362, 0.0
        %v2374 = vsel %vm2269, %v2354, 0.0
        %v2375 = vsel %vm2270, %v2346, 0.0
        %v2376 = vsel %vm2271, %v2338, 0.0
        %v2377 = vsel %vm2268, %v2363, 0.0
        %v2378 = vsel %vm2269, %v2355, 0.0
        %v2379 = vsel %vm2270, %v2347, 0.0
        %v2380 = vsel %vm2271, %v2339, 0.0
        %v2381 = vsel %vm2268, %v2364, 0.0
        %v2382 = vsel %vm2269, %v2356, 0.0
        %v2383 = vsel %vm2270, %v2348, 0.0
        %v2384 = vsel %vm2271, %v2340, 0.0
        %v2385 = vsel %vm2268, %v2365, 0.0
        %v2386 = vsel %vm2269, %v2357, 0.0
        %v2387 = vsel %vm2270, %v2349, 0.0
        %v2388 = vsel %vm2271, %v2341, 0.0
        %v2389 = vsel %vm2268, %v2366, 0.0
        %v2390 = vsel %vm2269, %v2358, 0.0
        %v2391 = vsel %vm2270, %v2350, 0.0
        %v2392 = vsel %vm2271, %v2342, 0.0
        %v2393 = vsel %vm2268, %v2367, 0.0
        %v2394 = vsel %vm2269, %v2359, 0.0
        %v2395 = vsel %vm2270, %v2351, 0.0
        %v2396 = vsel %vm2271, %v2343, 0.0
        %v2397 = vsel %vm2268, %v2368, 0.0
        %v2398 = vsel %vm2269, %v2360, 0.0
        %v2399 = vsel %vm2270, %v2352, 0.0
        %v2400 = vsel %vm2271, %v2344, 0.0
        %vm2401 = vcmp.lt.s32.totalorder %v2264, 448
        %vm2402 = vcmp.lt.s32.totalorder %v2265, 448
        %vm2403 = vcmp.lt.s32.totalorder %v2266, 448
        %vm2404 = vcmp.lt.s32.totalorder %v2267, 448
        %v2405 = vsel %vm2401, %v2353, 0.0
        %v2406 = vsel %vm2402, %v2345, 0.0
        %v2407 = vsel %vm2403, %v2337, 0.0
        %v2408 = vsel %vm2404, %v2361, 0.0
        %v2409 = vsel %vm2401, %v2354, 0.0
        %v2410 = vsel %vm2402, %v2346, 0.0
        %v2411 = vsel %vm2403, %v2338, 0.0
        %v2412 = vsel %vm2404, %v2362, 0.0
        %v2413 = vsel %vm2401, %v2355, 0.0
        %v2414 = vsel %vm2402, %v2347, 0.0
        %v2415 = vsel %vm2403, %v2339, 0.0
        %v2416 = vsel %vm2404, %v2363, 0.0
        %v2417 = vsel %vm2401, %v2356, 0.0
        %v2418 = vsel %vm2402, %v2348, 0.0
        %v2419 = vsel %vm2403, %v2340, 0.0
        %v2420 = vsel %vm2404, %v2364, 0.0
        %v2421 = vsel %vm2401, %v2357, 0.0
        %v2422 = vsel %vm2402, %v2349, 0.0
        %v2423 = vsel %vm2403, %v2341, 0.0
        %v2424 = vsel %vm2404, %v2365, 0.0
        %v2425 = vsel %vm2401, %v2358, 0.0
        %v2426 = vsel %vm2402, %v2350, 0.0
        %v2427 = vsel %vm2403, %v2342, 0.0
        %v2428 = vsel %vm2404, %v2366, 0.0
        %v2429 = vsel %vm2401, %v2359, 0.0
        %v2430 = vsel %vm2402, %v2351, 0.0
        %v2431 = vsel %vm2403, %v2343, 0.0
        %v2432 = vsel %vm2404, %v2367, 0.0
        %v2433 = vsel %vm2401, %v2360, 0.0
        %v2434 = vsel %vm2402, %v2352, 0.0
        %v2435 = vsel %vm2403, %v2344, 0.0
        %v2436 = vsel %vm2404, %v2368, 0.0
        %v2441 = vcombine.low %v1560, %v1562
        %v2442 = vcombine.high %v1560, %v1562
        %v2443 = vcombine.low %v1601, %v1603
        %v2444 = vcombine.high %v1601, %v1603
        %v2446 = vunpack.c.l.s4 1966171168
        %v2447 = vunpack.c.0.s8 %v2446
        %v2448 = vlaneseq
        %v2449 = vshrl.u32 %v2448, 7
        %v2450 = vsub.s32 %v2447, %v2449
        %v2451 = vrot.slane %v2441, %v2450
        %v2453 = vunpack.c.l.s4 1966171168
        %v2454 = vunpack.c.0.s8 %v2453
        %v2455 = vlaneseq
        %v2456 = vshrl.u32 %v2455, 7
        %v2457 = vsub.s32 %v2454, %v2456
        %v2458 = vrot.slane %v2442, %v2457
        %v2460 = vunpack.c.l.s4 1966171168
        %v2461 = vunpack.c.0.s8 %v2460
        %v2462 = vlaneseq
        %v2463 = vshrl.u32 %v2462, 7
        %v2464 = vsub.s32 %v2461, %v2463
        %v2465 = vrot.slane %v2443, %v2464
        %v2467 = vunpack.c.l.s4 1966171168
        %v2468 = vunpack.c.0.s8 %v2467
        %v2469 = vlaneseq
        %v2470 = vshrl.u32 %v2469, 7
        %v2471 = vsub.s32 %v2468, %v2470
        %v2472 = vrot.slane %v2444, %v2471
        %v2473 = vcombine.low %v2451, %v2465
        %v2474 = vcombine.high %v2451, %v2465
        %v2475 = vcombine.low %v2458, %v2472
        %v2476 = vcombine.high %v2458, %v2472
        %v2478 = vunpack.c.l.s4 1966171168
        %v2479 = vunpack.c.0.s8 %v2478
        %v2480 = vlaneseq
        %v2481 = vshrl.u32 %v2480, 7
        %v2482 = vsub.s32 %v2479, %v2481
        %v2483 = vrot.slane %v2473, %v2482
        %v2485 = vunpack.c.l.s4 1966171168
        %v2486 = vunpack.c.0.s8 %v2485
        %v2487 = vlaneseq
        %v2488 = vshrl.u32 %v2487, 7
        %v2489 = vsub.s32 %v2486, %v2488
        %v2490 = vrot.slane %v2475, %v2489
        %v2492 = vunpack.c.l.s4 1966171168
        %v2493 = vunpack.c.0.s8 %v2492
        %v2494 = vlaneseq
        %v2495 = vshrl.u32 %v2494, 7
        %v2496 = vsub.s32 %v2493, %v2495
        %v2497 = vrot.slane %v2474, %v2496
        %v2499 = vunpack.c.l.s4 1966171168
        %v2500 = vunpack.c.0.s8 %v2499
        %v2501 = vlaneseq
        %v2502 = vshrl.u32 %v2501, 7
        %v2503 = vsub.s32 %v2500, %v2502
        %v2504 = vrot.slane %v2476, %v2503
        %v2505 = vcombine.high %v2483, %v2483
        %v2506 = vcombine.high %v2490, %v2490
        %v2507 = vcombine.high %v2497, %v2497
        %v2508 = vcombine.high %v2504, %v2504
        %v2509 = vlaneseq
        %v2510 = vshrl.u32 %v2509, 7
        %v2511 = vsub.s32 0, %v2510
        %v2512 = vrot.slane %v2483, %v2511
        %v2513 = vlaneseq
        %v2514 = vshrl.u32 %v2513, 7
        %v2515 = vsub.s32 1, %v2514
        %v2516 = vrot.slane %v2483, %v2515
        %v2517 = vlaneseq
        %v2518 = vshrl.u32 %v2517, 7
        %v2519 = vsub.s32 2, %v2518
        %v2520 = vrot.slane %v2483, %v2519
        %v2521 = vlaneseq
        %v2522 = vshrl.u32 %v2521, 7
        %v2523 = vsub.s32 3, %v2522
        %v2524 = vrot.slane %v2483, %v2523
        %v2525 = vlaneseq
        %v2526 = vshrl.u32 %v2525, 7
        %v2527 = vsub.s32 0, %v2526
        %v2528 = vrot.slane %v2497, %v2527
        %v2529 = vlaneseq
        %v2530 = vshrl.u32 %v2529, 7
        %v2531 = vsub.s32 1, %v2530
        %v2532 = vrot.slane %v2497, %v2531
        %v2533 = vlaneseq
        %v2534 = vshrl.u32 %v2533, 7
        %v2535 = vsub.s32 2, %v2534
        %v2536 = vrot.slane %v2497, %v2535
        %v2537 = vlaneseq
        %v2538 = vshrl.u32 %v2537, 7
        %v2539 = vsub.s32 3, %v2538
        %v2540 = vrot.slane %v2497, %v2539
        %v2541 = vlaneseq
        %v2542 = vshrl.u32 %v2541, 7
        %v2543 = vsub.s32 0, %v2542
        %v2544 = vrot.slane %v2505, %v2543
        %v2545 = vlaneseq
        %v2546 = vshrl.u32 %v2545, 7
        %v2547 = vsub.s32 1, %v2546
        %v2548 = vrot.slane %v2505, %v2547
        %v2549 = vlaneseq
        %v2550 = vshrl.u32 %v2549, 7
        %v2551 = vsub.s32 2, %v2550
        %v2552 = vrot.slane %v2505, %v2551
        %v2553 = vlaneseq
        %v2554 = vshrl.u32 %v2553, 7
        %v2555 = vsub.s32 3, %v2554
        %v2556 = vrot.slane %v2505, %v2555
        %v2557 = vlaneseq
        %v2558 = vshrl.u32 %v2557, 7
        %v2559 = vsub.s32 0, %v2558
        %v2560 = vrot.slane %v2507, %v2559
        %v2561 = vlaneseq
        %v2562 = vshrl.u32 %v2561, 7
        %v2563 = vsub.s32 1, %v2562
        %v2564 = vrot.slane %v2507, %v2563
        %v2565 = vlaneseq
        %v2566 = vshrl.u32 %v2565, 7
        %v2567 = vsub.s32 2, %v2566
        %v2568 = vrot.slane %v2507, %v2567
        %v2569 = vlaneseq
        %v2570 = vshrl.u32 %v2569, 7
        %v2571 = vsub.s32 3, %v2570
        %v2572 = vrot.slane %v2507, %v2571
        %v2573 = vlaneseq
        %v2574 = vshrl.u32 %v2573, 7
        %v2575 = vsub.s32 0, %v2574
        %v2576 = vrot.slane %v2490, %v2575
        %v2577 = vlaneseq
        %v2578 = vshrl.u32 %v2577, 7
        %v2579 = vsub.s32 1, %v2578
        %v2580 = vrot.slane %v2490, %v2579
        %v2581 = vlaneseq
        %v2582 = vshrl.u32 %v2581, 7
        %v2583 = vsub.s32 2, %v2582
        %v2584 = vrot.slane %v2490, %v2583
        %v2585 = vlaneseq
        %v2586 = vshrl.u32 %v2585, 7
        %v2587 = vsub.s32 3, %v2586
        %v2588 = vrot.slane %v2490, %v2587
        %v2589 = vlaneseq
        %v2590 = vshrl.u32 %v2589, 7
        %v2591 = vsub.s32 0, %v2590
        %v2592 = vrot.slane %v2504, %v2591
        %v2593 = vlaneseq
        %v2594 = vshrl.u32 %v2593, 7
        %v2595 = vsub.s32 1, %v2594
        %v2596 = vrot.slane %v2504, %v2595
        %v2597 = vlaneseq
        %v2598 = vshrl.u32 %v2597, 7
        %v2599 = vsub.s32 2, %v2598
        %v2600 = vrot.slane %v2504, %v2599
        %v2601 = vlaneseq
        %v2602 = vshrl.u32 %v2601, 7
        %v2603 = vsub.s32 3, %v2602
        %v2604 = vrot.slane %v2504, %v2603
        %v2605 = vlaneseq
        %v2606 = vshrl.u32 %v2605, 7
        %v2607 = vsub.s32 0, %v2606
        %v2608 = vrot.slane %v2506, %v2607
        %v2609 = vlaneseq
        %v2610 = vshrl.u32 %v2609, 7
        %v2611 = vsub.s32 1, %v2610
        %v2612 = vrot.slane %v2506, %v2611
        %v2613 = vlaneseq
        %v2614 = vshrl.u32 %v2613, 7
        %v2615 = vsub.s32 2, %v2614
        %v2616 = vrot.slane %v2506, %v2615
        %v2617 = vlaneseq
        %v2618 = vshrl.u32 %v2617, 7
        %v2619 = vsub.s32 3, %v2618
        %v2620 = vrot.slane %v2506, %v2619
        %v2621 = vlaneseq
        %v2622 = vshrl.u32 %v2621, 7
        %v2623 = vsub.s32 0, %v2622
        %v2624 = vrot.slane %v2508, %v2623
        %v2625 = vlaneseq
        %v2626 = vshrl.u32 %v2625, 7
        %v2627 = vsub.s32 1, %v2626
        %v2628 = vrot.slane %v2508, %v2627
        %v2629 = vlaneseq
        %v2630 = vshrl.u32 %v2629, 7
        %v2631 = vsub.s32 2, %v2630
        %v2632 = vrot.slane %v2508, %v2631
        %v2633 = vlaneseq
        %v2634 = vshrl.u32 %v2633, 7
        %v2635 = vsub.s32 3, %v2634
        %v2636 = vrot.slane %v2508, %v2635
        %v2669 = vmul.f32 %v2512, %v2369
        %v2670 = vmul.f32 %v2516, %v2370
        %v2671 = vmul.f32 %v2520, %v2371
        %v2672 = vmul.f32 %v2524, %v2372
        %v2673 = vmul.f32 %v2528, %v2373
        %v2674 = vmul.f32 %v2532, %v2374
        %v2675 = vmul.f32 %v2536, %v2375
        %v2676 = vmul.f32 %v2540, %v2376
        %v2677 = vmul.f32 %v2544, %v2377
        %v2678 = vmul.f32 %v2548, %v2378
        %v2679 = vmul.f32 %v2552, %v2379
        %v2680 = vmul.f32 %v2556, %v2380
        %v2681 = vmul.f32 %v2560, %v2381
        %v2682 = vmul.f32 %v2564, %v2382
        %v2683 = vmul.f32 %v2568, %v2383
        %v2684 = vmul.f32 %v2572, %v2384
        %v2685 = vmul.f32 %v2576, %v2385
        %v2686 = vmul.f32 %v2580, %v2386
        %v2687 = vmul.f32 %v2584, %v2387
        %v2688 = vmul.f32 %v2588, %v2388
        %v2689 = vmul.f32 %v2592, %v2389
        %v2690 = vmul.f32 %v2596, %v2390
        %v2691 = vmul.f32 %v2600, %v2391
        %v2692 = vmul.f32 %v2604, %v2392
        %v2693 = vmul.f32 %v2608, %v2393
        %v2694 = vmul.f32 %v2612, %v2394
        %v2695 = vmul.f32 %v2616, %v2395
        %v2696 = vmul.f32 %v2620, %v2396
        %v2697 = vmul.f32 %v2624, %v2397
        %v2698 = vmul.f32 %v2628, %v2398
        %v2699 = vmul.f32 %v2632, %v2399
        %v2700 = vmul.f32 %v2636, %v2400
        %v2705 = vcombine.low %v1642, %v1644
        %v2706 = vcombine.high %v1642, %v1644
        %v2707 = vcombine.low %v1683, %v1685
        %v2708 = vcombine.high %v1683, %v1685
        %v2710 = vunpack.c.l.s4 1966171168
        %v2711 = vunpack.c.0.s8 %v2710
        %v2712 = vlaneseq
        %v2713 = vshrl.u32 %v2712, 7
        %v2714 = vsub.s32 %v2711, %v2713
        %v2715 = vrot.slane %v2705, %v2714
        %v2717 = vunpack.c.l.s4 1966171168
        %v2718 = vunpack.c.0.s8 %v2717
        %v2719 = vlaneseq
        %v2720 = vshrl.u32 %v2719, 7
        %v2721 = vsub.s32 %v2718, %v2720
        %v2722 = vrot.slane %v2706, %v2721
        %v2724 = vunpack.c.l.s4 1966171168
        %v2725 = vunpack.c.0.s8 %v2724
        %v2726 = vlaneseq
        %v2727 = vshrl.u32 %v2726, 7
        %v2728 = vsub.s32 %v2725, %v2727
        %v2729 = vrot.slane %v2707, %v2728
        %v2731 = vunpack.c.l.s4 1966171168
        %v2732 = vunpack.c.0.s8 %v2731
        %v2733 = vlaneseq
        %v2734 = vshrl.u32 %v2733, 7
        %v2735 = vsub.s32 %v2732, %v2734
        %v2736 = vrot.slane %v2708, %v2735
        %v2737 = vcombine.low %v2715, %v2729
        %v2738 = vcombine.high %v2715, %v2729
        %v2739 = vcombine.low %v2722, %v2736
        %v2740 = vcombine.high %v2722, %v2736
        %v2742 = vunpack.c.l.s4 1966171168
        %v2743 = vunpack.c.0.s8 %v2742
        %v2744 = vlaneseq
        %v2745 = vshrl.u32 %v2744, 7
        %v2746 = vsub.s32 %v2743, %v2745
        %v2747 = vrot.slane %v2737, %v2746
        %v2749 = vunpack.c.l.s4 1966171168
        %v2750 = vunpack.c.0.s8 %v2749
        %v2751 = vlaneseq
        %v2752 = vshrl.u32 %v2751, 7
        %v2753 = vsub.s32 %v2750, %v2752
        %v2754 = vrot.slane %v2739, %v2753
        %v2756 = vunpack.c.l.s4 1966171168
        %v2757 = vunpack.c.0.s8 %v2756
        %v2758 = vlaneseq
        %v2759 = vshrl.u32 %v2758, 7
        %v2760 = vsub.s32 %v2757, %v2759
        %v2761 = vrot.slane %v2738, %v2760
        %v2763 = vunpack.c.l.s4 1966171168
        %v2764 = vunpack.c.0.s8 %v2763
        %v2765 = vlaneseq
        %v2766 = vshrl.u32 %v2765, 7
        %v2767 = vsub.s32 %v2764, %v2766
        %v2768 = vrot.slane %v2740, %v2767
        %v2769 = vcombine.high %v2747, %v2747
        %v2770 = vcombine.high %v2754, %v2754
        %v2771 = vcombine.high %v2761, %v2761
        %v2772 = vcombine.high %v2768, %v2768
        %v2773 = vlaneseq
        %v2774 = vshrl.u32 %v2773, 7
        %v2775 = vsub.s32 0, %v2774
        %v2776 = vrot.slane %v2747, %v2775
        %v2777 = vlaneseq
        %v2778 = vshrl.u32 %v2777, 7
        %v2779 = vsub.s32 1, %v2778
        %v2780 = vrot.slane %v2747, %v2779
        %v2781 = vlaneseq
        %v2782 = vshrl.u32 %v2781, 7
        %v2783 = vsub.s32 2, %v2782
        %v2784 = vrot.slane %v2747, %v2783
        %v2785 = vlaneseq
        %v2786 = vshrl.u32 %v2785, 7
        %v2787 = vsub.s32 3, %v2786
        %v2788 = vrot.slane %v2747, %v2787
        %v2789 = vlaneseq
        %v2790 = vshrl.u32 %v2789, 7
        %v2791 = vsub.s32 0, %v2790
        %v2792 = vrot.slane %v2761, %v2791
        %v2793 = vlaneseq
        %v2794 = vshrl.u32 %v2793, 7
        %v2795 = vsub.s32 1, %v2794
        %v2796 = vrot.slane %v2761, %v2795
        %v2797 = vlaneseq
        %v2798 = vshrl.u32 %v2797, 7
        %v2799 = vsub.s32 2, %v2798
        %v2800 = vrot.slane %v2761, %v2799
        %v2801 = vlaneseq
        %v2802 = vshrl.u32 %v2801, 7
        %v2803 = vsub.s32 3, %v2802
        %v2804 = vrot.slane %v2761, %v2803
        %v2805 = vlaneseq
        %v2806 = vshrl.u32 %v2805, 7
        %v2807 = vsub.s32 0, %v2806
        %v2808 = vrot.slane %v2769, %v2807
        %v2809 = vlaneseq
        %v2810 = vshrl.u32 %v2809, 7
        %v2811 = vsub.s32 1, %v2810
        %v2812 = vrot.slane %v2769, %v2811
        %v2813 = vlaneseq
        %v2814 = vshrl.u32 %v2813, 7
        %v2815 = vsub.s32 2, %v2814
        %v2816 = vrot.slane %v2769, %v2815
        %v2817 = vlaneseq
        %v2818 = vshrl.u32 %v2817, 7
        %v2819 = vsub.s32 3, %v2818
        %v2820 = vrot.slane %v2769, %v2819
        %v2821 = vlaneseq
        %v2822 = vshrl.u32 %v2821, 7
        %v2823 = vsub.s32 0, %v2822
        %v2824 = vrot.slane %v2771, %v2823
        %v2825 = vlaneseq
        %v2826 = vshrl.u32 %v2825, 7
        %v2827 = vsub.s32 1, %v2826
        %v2828 = vrot.slane %v2771, %v2827
        %v2829 = vlaneseq
        %v2830 = vshrl.u32 %v2829, 7
        %v2831 = vsub.s32 2, %v2830
        %v2832 = vrot.slane %v2771, %v2831
        %v2833 = vlaneseq
        %v2834 = vshrl.u32 %v2833, 7
        %v2835 = vsub.s32 3, %v2834
        %v2836 = vrot.slane %v2771, %v2835
        %v2837 = vlaneseq
        %v2838 = vshrl.u32 %v2837, 7
        %v2839 = vsub.s32 0, %v2838
        %v2840 = vrot.slane %v2754, %v2839
        %v2841 = vlaneseq
        %v2842 = vshrl.u32 %v2841, 7
        %v2843 = vsub.s32 1, %v2842
        %v2844 = vrot.slane %v2754, %v2843
        %v2845 = vlaneseq
        %v2846 = vshrl.u32 %v2845, 7
        %v2847 = vsub.s32 2, %v2846
        %v2848 = vrot.slane %v2754, %v2847
        %v2849 = vlaneseq
        %v2850 = vshrl.u32 %v2849, 7
        %v2851 = vsub.s32 3, %v2850
        %v2852 = vrot.slane %v2754, %v2851
        %v2853 = vlaneseq
        %v2854 = vshrl.u32 %v2853, 7
        %v2855 = vsub.s32 0, %v2854
        %v2856 = vrot.slane %v2768, %v2855
        %v2857 = vlaneseq
        %v2858 = vshrl.u32 %v2857, 7
        %v2859 = vsub.s32 1, %v2858
        %v2860 = vrot.slane %v2768, %v2859
        %v2861 = vlaneseq
        %v2862 = vshrl.u32 %v2861, 7
        %v2863 = vsub.s32 2, %v2862
        %v2864 = vrot.slane %v2768, %v2863
        %v2865 = vlaneseq
        %v2866 = vshrl.u32 %v2865, 7
        %v2867 = vsub.s32 3, %v2866
        %v2868 = vrot.slane %v2768, %v2867
        %v2869 = vlaneseq
        %v2870 = vshrl.u32 %v2869, 7
        %v2871 = vsub.s32 0, %v2870
        %v2872 = vrot.slane %v2770, %v2871
        %v2873 = vlaneseq
        %v2874 = vshrl.u32 %v2873, 7
        %v2875 = vsub.s32 1, %v2874
        %v2876 = vrot.slane %v2770, %v2875
        %v2877 = vlaneseq
        %v2878 = vshrl.u32 %v2877, 7
        %v2879 = vsub.s32 2, %v2878
        %v2880 = vrot.slane %v2770, %v2879
        %v2881 = vlaneseq
        %v2882 = vshrl.u32 %v2881, 7
        %v2883 = vsub.s32 3, %v2882
        %v2884 = vrot.slane %v2770, %v2883
        %v2885 = vlaneseq
        %v2886 = vshrl.u32 %v2885, 7
        %v2887 = vsub.s32 0, %v2886
        %v2888 = vrot.slane %v2772, %v2887
        %v2889 = vlaneseq
        %v2890 = vshrl.u32 %v2889, 7
        %v2891 = vsub.s32 1, %v2890
        %v2892 = vrot.slane %v2772, %v2891
        %v2893 = vlaneseq
        %v2894 = vshrl.u32 %v2893, 7
        %v2895 = vsub.s32 2, %v2894
        %v2896 = vrot.slane %v2772, %v2895
        %v2897 = vlaneseq
        %v2898 = vshrl.u32 %v2897, 7
        %v2899 = vsub.s32 3, %v2898
        %v2900 = vrot.slane %v2772, %v2899
        %v2933 = vmul.f32 %v2776, %v482
        %v2934 = vmul.f32 %v2780, %v483
        %v2935 = vmul.f32 %v2784, %v484
        %v2936 = vmul.f32 %v2788, %v485
        %v2937 = vmul.f32 %v2792, %v486
        %v2938 = vmul.f32 %v2796, %v487
        %v2939 = vmul.f32 %v2800, %v488
        %v2940 = vmul.f32 %v2804, %v489
        %v2941 = vmul.f32 %v2808, %v490
        %v2942 = vmul.f32 %v2812, %v491
        %v2943 = vmul.f32 %v2816, %v492
        %v2944 = vmul.f32 %v2820, %v493
        %v2945 = vmul.f32 %v2824, %v494
        %v2946 = vmul.f32 %v2828, %v495
        %v2947 = vmul.f32 %v2832, %v496
        %v2948 = vmul.f32 %v2836, %v497
        %v2949 = vmul.f32 %v2840, %v498
        %v2950 = vmul.f32 %v2844, %v499
        %v2951 = vmul.f32 %v2848, %v500
        %v2952 = vmul.f32 %v2852, %v501
        %v2953 = vmul.f32 %v2856, %v502
        %v2954 = vmul.f32 %v2860, %v503
        %v2955 = vmul.f32 %v2864, %v504
        %v2956 = vmul.f32 %v2868, %v505
        %v2957 = vmul.f32 %v2872, %v506
        %v2958 = vmul.f32 %v2876, %v507
        %v2959 = vmul.f32 %v2880, %v508
        %v2960 = vmul.f32 %v2884, %v509
        %v2961 = vmul.f32 %v2888, %v510
        %v2962 = vmul.f32 %v2892, %v511
        %v2963 = vmul.f32 %v2896, %v512
        %v2964 = vmul.f32 %v2900, %v513
        %v2965 = vadd.f32 %v2669, %v2933
        %v2966 = vadd.f32 %v2670, %v2934
        %v2967 = vadd.f32 %v2671, %v2935
        %v2968 = vadd.f32 %v2672, %v2936
        %v2969 = vadd.f32 %v2673, %v2937
        %v2970 = vadd.f32 %v2674, %v2938
        %v2971 = vadd.f32 %v2675, %v2939
        %v2972 = vadd.f32 %v2676, %v2940
        %v2973 = vadd.f32 %v2677, %v2941
        %v2974 = vadd.f32 %v2678, %v2942
        %v2975 = vadd.f32 %v2679, %v2943
        %v2976 = vadd.f32 %v2680, %v2944
        %v2977 = vadd.f32 %v2681, %v2945
        %v2978 = vadd.f32 %v2682, %v2946
        %v2979 = vadd.f32 %v2683, %v2947
        %v2980 = vadd.f32 %v2684, %v2948
        %v2981 = vadd.f32 %v2685, %v2949
        %v2982 = vadd.f32 %v2686, %v2950
        %v2983 = vadd.f32 %v2687, %v2951
        %v2984 = vadd.f32 %v2688, %v2952
        %v2985 = vadd.f32 %v2689, %v2953
        %v2986 = vadd.f32 %v2690, %v2954
        %v2987 = vadd.f32 %v2691, %v2955
        %v2988 = vadd.f32 %v2692, %v2956
        %v2989 = vadd.f32 %v2693, %v2957
        %v2990 = vadd.f32 %v2694, %v2958
        %v2991 = vadd.f32 %v2695, %v2959
        %v2992 = vadd.f32 %v2696, %v2960
        %v2993 = vadd.f32 %v2697, %v2961
        %v2994 = vadd.f32 %v2698, %v2962
        %v2995 = vadd.f32 %v2699, %v2963
        %v2996 = vadd.f32 %v2700, %v2964
        %v3001 = vcombine.low %v1724, %v1726
        %v3002 = vcombine.high %v1724, %v1726
        %v3003 = vcombine.low %v1765, %v1767
        %v3004 = vcombine.high %v1765, %v1767
        %v3006 = vunpack.c.l.s4 1966171168
        %v3007 = vunpack.c.0.s8 %v3006
        %v3008 = vlaneseq
        %v3009 = vshrl.u32 %v3008, 7
        %v3010 = vsub.s32 %v3007, %v3009
        %v3011 = vrot.slane %v3001, %v3010
        %v3013 = vunpack.c.l.s4 1966171168
        %v3014 = vunpack.c.0.s8 %v3013
        %v3015 = vlaneseq
        %v3016 = vshrl.u32 %v3015, 7
        %v3017 = vsub.s32 %v3014, %v3016
        %v3018 = vrot.slane %v3002, %v3017
        %v3020 = vunpack.c.l.s4 1966171168
        %v3021 = vunpack.c.0.s8 %v3020
        %v3022 = vlaneseq
        %v3023 = vshrl.u32 %v3022, 7
        %v3024 = vsub.s32 %v3021, %v3023
        %v3025 = vrot.slane %v3003, %v3024
        %v3027 = vunpack.c.l.s4 1966171168
        %v3028 = vunpack.c.0.s8 %v3027
        %v3029 = vlaneseq
        %v3030 = vshrl.u32 %v3029, 7
        %v3031 = vsub.s32 %v3028, %v3030
        %v3032 = vrot.slane %v3004, %v3031
        %v3033 = vcombine.low %v3011, %v3025
        %v3034 = vcombine.high %v3011, %v3025
        %v3035 = vcombine.low %v3018, %v3032
        %v3036 = vcombine.high %v3018, %v3032
        %v3038 = vunpack.c.l.s4 1966171168
        %v3039 = vunpack.c.0.s8 %v3038
        %v3040 = vlaneseq
        %v3041 = vshrl.u32 %v3040, 7
        %v3042 = vsub.s32 %v3039, %v3041
        %v3043 = vrot.slane %v3033, %v3042
        %v3045 = vunpack.c.l.s4 1966171168
        %v3046 = vunpack.c.0.s8 %v3045
        %v3047 = vlaneseq
        %v3048 = vshrl.u32 %v3047, 7
        %v3049 = vsub.s32 %v3046, %v3048
        %v3050 = vrot.slane %v3035, %v3049
        %v3052 = vunpack.c.l.s4 1966171168
        %v3053 = vunpack.c.0.s8 %v3052
        %v3054 = vlaneseq
        %v3055 = vshrl.u32 %v3054, 7
        %v3056 = vsub.s32 %v3053, %v3055
        %v3057 = vrot.slane %v3034, %v3056
        %v3059 = vunpack.c.l.s4 1966171168
        %v3060 = vunpack.c.0.s8 %v3059
        %v3061 = vlaneseq
        %v3062 = vshrl.u32 %v3061, 7
        %v3063 = vsub.s32 %v3060, %v3062
        %v3064 = vrot.slane %v3036, %v3063
        %v3065 = vcombine.high %v3043, %v3043
        %v3066 = vcombine.high %v3050, %v3050
        %v3067 = vcombine.high %v3057, %v3057
        %v3068 = vcombine.high %v3064, %v3064
        %v3069 = vlaneseq
        %v3070 = vshrl.u32 %v3069, 7
        %v3071 = vsub.s32 0, %v3070
        %v3072 = vrot.slane %v3043, %v3071
        %v3073 = vlaneseq
        %v3074 = vshrl.u32 %v3073, 7
        %v3075 = vsub.s32 1, %v3074
        %v3076 = vrot.slane %v3043, %v3075
        %v3077 = vlaneseq
        %v3078 = vshrl.u32 %v3077, 7
        %v3079 = vsub.s32 2, %v3078
        %v3080 = vrot.slane %v3043, %v3079
        %v3081 = vlaneseq
        %v3082 = vshrl.u32 %v3081, 7
        %v3083 = vsub.s32 3, %v3082
        %v3084 = vrot.slane %v3043, %v3083
        %v3085 = vlaneseq
        %v3086 = vshrl.u32 %v3085, 7
        %v3087 = vsub.s32 0, %v3086
        %v3088 = vrot.slane %v3057, %v3087
        %v3089 = vlaneseq
        %v3090 = vshrl.u32 %v3089, 7
        %v3091 = vsub.s32 1, %v3090
        %v3092 = vrot.slane %v3057, %v3091
        %v3093 = vlaneseq
        %v3094 = vshrl.u32 %v3093, 7
        %v3095 = vsub.s32 2, %v3094
        %v3096 = vrot.slane %v3057, %v3095
        %v3097 = vlaneseq
        %v3098 = vshrl.u32 %v3097, 7
        %v3099 = vsub.s32 3, %v3098
        %v3100 = vrot.slane %v3057, %v3099
        %v3101 = vlaneseq
        %v3102 = vshrl.u32 %v3101, 7
        %v3103 = vsub.s32 0, %v3102
        %v3104 = vrot.slane %v3065, %v3103
        %v3105 = vlaneseq
        %v3106 = vshrl.u32 %v3105, 7
        %v3107 = vsub.s32 1, %v3106
        %v3108 = vrot.slane %v3065, %v3107
        %v3109 = vlaneseq
        %v3110 = vshrl.u32 %v3109, 7
        %v3111 = vsub.s32 2, %v3110
        %v3112 = vrot.slane %v3065, %v3111
        %v3113 = vlaneseq
        %v3114 = vshrl.u32 %v3113, 7
        %v3115 = vsub.s32 3, %v3114
        %v3116 = vrot.slane %v3065, %v3115
        %v3117 = vlaneseq
        %v3118 = vshrl.u32 %v3117, 7
        %v3119 = vsub.s32 0, %v3118
        %v3120 = vrot.slane %v3067, %v3119
        %v3121 = vlaneseq
        %v3122 = vshrl.u32 %v3121, 7
        %v3123 = vsub.s32 1, %v3122
        %v3124 = vrot.slane %v3067, %v3123
        %v3125 = vlaneseq
        %v3126 = vshrl.u32 %v3125, 7
        %v3127 = vsub.s32 2, %v3126
        %v3128 = vrot.slane %v3067, %v3127
        %v3129 = vlaneseq
        %v3130 = vshrl.u32 %v3129, 7
        %v3131 = vsub.s32 3, %v3130
        %v3132 = vrot.slane %v3067, %v3131
        %v3133 = vlaneseq
        %v3134 = vshrl.u32 %v3133, 7
        %v3135 = vsub.s32 0, %v3134
        %v3136 = vrot.slane %v3050, %v3135
        %v3137 = vlaneseq
        %v3138 = vshrl.u32 %v3137, 7
        %v3139 = vsub.s32 1, %v3138
        %v3140 = vrot.slane %v3050, %v3139
        %v3141 = vlaneseq
        %v3142 = vshrl.u32 %v3141, 7
        %v3143 = vsub.s32 2, %v3142
        %v3144 = vrot.slane %v3050, %v3143
        %v3145 = vlaneseq
        %v3146 = vshrl.u32 %v3145, 7
        %v3147 = vsub.s32 3, %v3146
        %v3148 = vrot.slane %v3050, %v3147
        %v3149 = vlaneseq
        %v3150 = vshrl.u32 %v3149, 7
        %v3151 = vsub.s32 0, %v3150
        %v3152 = vrot.slane %v3064, %v3151
        %v3153 = vlaneseq
        %v3154 = vshrl.u32 %v3153, 7
        %v3155 = vsub.s32 1, %v3154
        %v3156 = vrot.slane %v3064, %v3155
        %v3157 = vlaneseq
        %v3158 = vshrl.u32 %v3157, 7
        %v3159 = vsub.s32 2, %v3158
        %v3160 = vrot.slane %v3064, %v3159
        %v3161 = vlaneseq
        %v3162 = vshrl.u32 %v3161, 7
        %v3163 = vsub.s32 3, %v3162
        %v3164 = vrot.slane %v3064, %v3163
        %v3165 = vlaneseq
        %v3166 = vshrl.u32 %v3165, 7
        %v3167 = vsub.s32 0, %v3166
        %v3168 = vrot.slane %v3066, %v3167
        %v3169 = vlaneseq
        %v3170 = vshrl.u32 %v3169, 7
        %v3171 = vsub.s32 1, %v3170
        %v3172 = vrot.slane %v3066, %v3171
        %v3173 = vlaneseq
        %v3174 = vshrl.u32 %v3173, 7
        %v3175 = vsub.s32 2, %v3174
        %v3176 = vrot.slane %v3066, %v3175
        %v3177 = vlaneseq
        %v3178 = vshrl.u32 %v3177, 7
        %v3179 = vsub.s32 3, %v3178
        %v3180 = vrot.slane %v3066, %v3179
        %v3181 = vlaneseq
        %v3182 = vshrl.u32 %v3181, 7
        %v3183 = vsub.s32 0, %v3182
        %v3184 = vrot.slane %v3068, %v3183
        %v3185 = vlaneseq
        %v3186 = vshrl.u32 %v3185, 7
        %v3187 = vsub.s32 1, %v3186
        %v3188 = vrot.slane %v3068, %v3187
        %v3189 = vlaneseq
        %v3190 = vshrl.u32 %v3189, 7
        %v3191 = vsub.s32 2, %v3190
        %v3192 = vrot.slane %v3068, %v3191
        %v3193 = vlaneseq
        %v3194 = vshrl.u32 %v3193, 7
        %v3195 = vsub.s32 3, %v3194
        %v3196 = vrot.slane %v3068, %v3195
        %v3229 = vmul.f32 %v3072, %v2405
        %v3230 = vmul.f32 %v3076, %v2406
        %v3231 = vmul.f32 %v3080, %v2407
        %v3232 = vmul.f32 %v3084, %v2408
        %v3233 = vmul.f32 %v3088, %v2409
        %v3234 = vmul.f32 %v3092, %v2410
        %v3235 = vmul.f32 %v3096, %v2411
        %v3236 = vmul.f32 %v3100, %v2412
        %v3237 = vmul.f32 %v3104, %v2413
        %v3238 = vmul.f32 %v3108, %v2414
        %v3239 = vmul.f32 %v3112, %v2415
        %v3240 = vmul.f32 %v3116, %v2416
        %v3241 = vmul.f32 %v3120, %v2417
        %v3242 = vmul.f32 %v3124, %v2418
        %v3243 = vmul.f32 %v3128, %v2419
        %v3244 = vmul.f32 %v3132, %v2420
        %v3245 = vmul.f32 %v3136, %v2421
        %v3246 = vmul.f32 %v3140, %v2422
        %v3247 = vmul.f32 %v3144, %v2423
        %v3248 = vmul.f32 %v3148, %v2424
        %v3249 = vmul.f32 %v3152, %v2425
        %v3250 = vmul.f32 %v3156, %v2426
        %v3251 = vmul.f32 %v3160, %v2427
        %v3252 = vmul.f32 %v3164, %v2428
        %v3253 = vmul.f32 %v3168, %v2429
        %v3254 = vmul.f32 %v3172, %v2430
        %v3255 = vmul.f32 %v3176, %v2431
        %v3256 = vmul.f32 %v3180, %v2432
        %v3257 = vmul.f32 %v3184, %v2433
        %v3258 = vmul.f32 %v3188, %v2434
        %v3259 = vmul.f32 %v3192, %v2435
        %v3260 = vmul.f32 %v3196, %v2436
        %v3261 = vadd.f32 %v2965, %v3229
        %v3262 = vadd.f32 %v2966, %v3230
        %v3263 = vadd.f32 %v2967, %v3231
        %v3264 = vadd.f32 %v2968, %v3232
        %v3265 = vadd.f32 %v2969, %v3233
        %v3266 = vadd.f32 %v2970, %v3234
        %v3267 = vadd.f32 %v2971, %v3235
        %v3268 = vadd.f32 %v2972, %v3236
        %v3269 = vadd.f32 %v2973, %v3237
        %v3270 = vadd.f32 %v2974, %v3238
        %v3271 = vadd.f32 %v2975, %v3239
        %v3272 = vadd.f32 %v2976, %v3240
        %v3273 = vadd.f32 %v2977, %v3241
        %v3274 = vadd.f32 %v2978, %v3242
        %v3275 = vadd.f32 %v2979, %v3243
        %v3276 = vadd.f32 %v2980, %v3244
        %v3277 = vadd.f32 %v2981, %v3245
        %v3278 = vadd.f32 %v2982, %v3246
        %v3279 = vadd.f32 %v2983, %v3247
        %v3280 = vadd.f32 %v2984, %v3248
        %v3281 = vadd.f32 %v2985, %v3249
        %v3282 = vadd.f32 %v2986, %v3250
        %v3283 = vadd.f32 %v2987, %v3251
        %v3284 = vadd.f32 %v2988, %v3252
        %v3285 = vadd.f32 %v2989, %v3253
        %v3286 = vadd.f32 %v2990, %v3254
        %v3287 = vadd.f32 %v2991, %v3255
        %v3288 = vadd.f32 %v2992, %v3256
        %v3289 = vadd.f32 %v2993, %v3257
        %v3290 = vadd.f32 %v2994, %v3258
        %v3291 = vadd.f32 %v2995, %v3259
        %v3292 = vadd.f32 %v2996, %v3260
        %v3297 = vcombine.low %v1806, %v1808
        %v3298 = vcombine.high %v1806, %v1808
        %v3299 = vcombine.low %v1847, %v1849
        %v3300 = vcombine.high %v1847, %v1849
        %v3302 = vunpack.c.l.s4 1966171168
        %v3303 = vunpack.c.0.s8 %v3302
        %v3304 = vlaneseq
        %v3305 = vshrl.u32 %v3304, 7
        %v3306 = vsub.s32 %v3303, %v3305
        %v3307 = vrot.slane %v3297, %v3306
        %v3309 = vunpack.c.l.s4 1966171168
        %v3310 = vunpack.c.0.s8 %v3309
        %v3311 = vlaneseq
        %v3312 = vshrl.u32 %v3311, 7
        %v3313 = vsub.s32 %v3310, %v3312
        %v3314 = vrot.slane %v3298, %v3313
        %v3316 = vunpack.c.l.s4 1966171168
        %v3317 = vunpack.c.0.s8 %v3316
        %v3318 = vlaneseq
        %v3319 = vshrl.u32 %v3318, 7
        %v3320 = vsub.s32 %v3317, %v3319
        %v3321 = vrot.slane %v3299, %v3320
        %v3323 = vunpack.c.l.s4 1966171168
        %v3324 = vunpack.c.0.s8 %v3323
        %v3325 = vlaneseq
        %v3326 = vshrl.u32 %v3325, 7
        %v3327 = vsub.s32 %v3324, %v3326
        %v3328 = vrot.slane %v3300, %v3327
        %v3329 = vcombine.low %v3307, %v3321
        %v3330 = vcombine.high %v3307, %v3321
        %v3331 = vcombine.low %v3314, %v3328
        %v3332 = vcombine.high %v3314, %v3328
        %v3334 = vunpack.c.l.s4 1966171168
        %v3335 = vunpack.c.0.s8 %v3334
        %v3336 = vlaneseq
        %v3337 = vshrl.u32 %v3336, 7
        %v3338 = vsub.s32 %v3335, %v3337
        %v3339 = vrot.slane %v3329, %v3338
        %v3341 = vunpack.c.l.s4 1966171168
        %v3342 = vunpack.c.0.s8 %v3341
        %v3343 = vlaneseq
        %v3344 = vshrl.u32 %v3343, 7
        %v3345 = vsub.s32 %v3342, %v3344
        %v3346 = vrot.slane %v3331, %v3345
        %v3348 = vunpack.c.l.s4 1966171168
        %v3349 = vunpack.c.0.s8 %v3348
        %v3350 = vlaneseq
        %v3351 = vshrl.u32 %v3350, 7
        %v3352 = vsub.s32 %v3349, %v3351
        %v3353 = vrot.slane %v3330, %v3352
        %v3355 = vunpack.c.l.s4 1966171168
        %v3356 = vunpack.c.0.s8 %v3355
        %v3357 = vlaneseq
        %v3358 = vshrl.u32 %v3357, 7
        %v3359 = vsub.s32 %v3356, %v3358
        %v3360 = vrot.slane %v3332, %v3359
        %v3361 = vcombine.high %v3339, %v3339
        %v3362 = vcombine.high %v3346, %v3346
        %v3363 = vcombine.high %v3353, %v3353
        %v3364 = vcombine.high %v3360, %v3360
        %v3365 = vlaneseq
        %v3366 = vshrl.u32 %v3365, 7
        %v3367 = vsub.s32 0, %v3366
        %v3368 = vrot.slane %v3339, %v3367
        %v3369 = vlaneseq
        %v3370 = vshrl.u32 %v3369, 7
        %v3371 = vsub.s32 1, %v3370
        %v3372 = vrot.slane %v3339, %v3371
        %v3373 = vlaneseq
        %v3374 = vshrl.u32 %v3373, 7
        %v3375 = vsub.s32 2, %v3374
        %v3376 = vrot.slane %v3339, %v3375
        %v3377 = vlaneseq
        %v3378 = vshrl.u32 %v3377, 7
        %v3379 = vsub.s32 3, %v3378
        %v3380 = vrot.slane %v3339, %v3379
        %v3381 = vlaneseq
        %v3382 = vshrl.u32 %v3381, 7
        %v3383 = vsub.s32 0, %v3382
        %v3384 = vrot.slane %v3353, %v3383
        %v3385 = vlaneseq
        %v3386 = vshrl.u32 %v3385, 7
        %v3387 = vsub.s32 1, %v3386
        %v3388 = vrot.slane %v3353, %v3387
        %v3389 = vlaneseq
        %v3390 = vshrl.u32 %v3389, 7
        %v3391 = vsub.s32 2, %v3390
        %v3392 = vrot.slane %v3353, %v3391
        %v3393 = vlaneseq
        %v3394 = vshrl.u32 %v3393, 7
        %v3395 = vsub.s32 3, %v3394
        %v3396 = vrot.slane %v3353, %v3395
        %v3397 = vlaneseq
        %v3398 = vshrl.u32 %v3397, 7
        %v3399 = vsub.s32 0, %v3398
        %v3400 = vrot.slane %v3361, %v3399
        %v3401 = vlaneseq
        %v3402 = vshrl.u32 %v3401, 7
        %v3403 = vsub.s32 1, %v3402
        %v3404 = vrot.slane %v3361, %v3403
        %v3405 = vlaneseq
        %v3406 = vshrl.u32 %v3405, 7
        %v3407 = vsub.s32 2, %v3406
        %v3408 = vrot.slane %v3361, %v3407
        %v3409 = vlaneseq
        %v3410 = vshrl.u32 %v3409, 7
        %v3411 = vsub.s32 3, %v3410
        %v3412 = vrot.slane %v3361, %v3411
        %v3413 = vlaneseq
        %v3414 = vshrl.u32 %v3413, 7
        %v3415 = vsub.s32 0, %v3414
        %v3416 = vrot.slane %v3363, %v3415
        %v3417 = vlaneseq
        %v3418 = vshrl.u32 %v3417, 7
        %v3419 = vsub.s32 1, %v3418
        %v3420 = vrot.slane %v3363, %v3419
        %v3421 = vlaneseq
        %v3422 = vshrl.u32 %v3421, 7
        %v3423 = vsub.s32 2, %v3422
        %v3424 = vrot.slane %v3363, %v3423
        %v3425 = vlaneseq
        %v3426 = vshrl.u32 %v3425, 7
        %v3427 = vsub.s32 3, %v3426
        %v3428 = vrot.slane %v3363, %v3427
        %v3429 = vlaneseq
        %v3430 = vshrl.u32 %v3429, 7
        %v3431 = vsub.s32 0, %v3430
        %v3432 = vrot.slane %v3346, %v3431
        %v3433 = vlaneseq
        %v3434 = vshrl.u32 %v3433, 7
        %v3435 = vsub.s32 1, %v3434
        %v3436 = vrot.slane %v3346, %v3435
        %v3437 = vlaneseq
        %v3438 = vshrl.u32 %v3437, 7
        %v3439 = vsub.s32 2, %v3438
        %v3440 = vrot.slane %v3346, %v3439
        %v3441 = vlaneseq
        %v3442 = vshrl.u32 %v3441, 7
        %v3443 = vsub.s32 3, %v3442
        %v3444 = vrot.slane %v3346, %v3443
        %v3445 = vlaneseq
        %v3446 = vshrl.u32 %v3445, 7
        %v3447 = vsub.s32 0, %v3446
        %v3448 = vrot.slane %v3360, %v3447
        %v3449 = vlaneseq
        %v3450 = vshrl.u32 %v3449, 7
        %v3451 = vsub.s32 1, %v3450
        %v3452 = vrot.slane %v3360, %v3451
        %v3453 = vlaneseq
        %v3454 = vshrl.u32 %v3453, 7
        %v3455 = vsub.s32 2, %v3454
        %v3456 = vrot.slane %v3360, %v3455
        %v3457 = vlaneseq
        %v3458 = vshrl.u32 %v3457, 7
        %v3459 = vsub.s32 3, %v3458
        %v3460 = vrot.slane %v3360, %v3459
        %v3461 = vlaneseq
        %v3462 = vshrl.u32 %v3461, 7
        %v3463 = vsub.s32 0, %v3462
        %v3464 = vrot.slane %v3362, %v3463
        %v3465 = vlaneseq
        %v3466 = vshrl.u32 %v3465, 7
        %v3467 = vsub.s32 1, %v3466
        %v3468 = vrot.slane %v3362, %v3467
        %v3469 = vlaneseq
        %v3470 = vshrl.u32 %v3469, 7
        %v3471 = vsub.s32 2, %v3470
        %v3472 = vrot.slane %v3362, %v3471
        %v3473 = vlaneseq
        %v3474 = vshrl.u32 %v3473, 7
        %v3475 = vsub.s32 3, %v3474
        %v3476 = vrot.slane %v3362, %v3475
        %v3477 = vlaneseq
        %v3478 = vshrl.u32 %v3477, 7
        %v3479 = vsub.s32 0, %v3478
        %v3480 = vrot.slane %v3364, %v3479
        %v3481 = vlaneseq
        %v3482 = vshrl.u32 %v3481, 7
        %v3483 = vsub.s32 1, %v3482
        %v3484 = vrot.slane %v3364, %v3483
        %v3485 = vlaneseq
        %v3486 = vshrl.u32 %v3485, 7
        %v3487 = vsub.s32 2, %v3486
        %v3488 = vrot.slane %v3364, %v3487
        %v3489 = vlaneseq
        %v3490 = vshrl.u32 %v3489, 7
        %v3491 = vsub.s32 3, %v3490
        %v3492 = vrot.slane %v3364, %v3491
        %v3525 = vmul.f32 %v3368, %v2369
        %v3526 = vmul.f32 %v3372, %v2370
        %v3527 = vmul.f32 %v3376, %v2371
        %v3528 = vmul.f32 %v3380, %v2372
        %v3529 = vmul.f32 %v3384, %v2373
        %v3530 = vmul.f32 %v3388, %v2374
        %v3531 = vmul.f32 %v3392, %v2375
        %v3532 = vmul.f32 %v3396, %v2376
        %v3533 = vmul.f32 %v3400, %v2377
        %v3534 = vmul.f32 %v3404, %v2378
        %v3535 = vmul.f32 %v3408, %v2379
        %v3536 = vmul.f32 %v3412, %v2380
        %v3537 = vmul.f32 %v3416, %v2381
        %v3538 = vmul.f32 %v3420, %v2382
        %v3539 = vmul.f32 %v3424, %v2383
        %v3540 = vmul.f32 %v3428, %v2384
        %v3541 = vmul.f32 %v3432, %v2385
        %v3542 = vmul.f32 %v3436, %v2386
        %v3543 = vmul.f32 %v3440, %v2387
        %v3544 = vmul.f32 %v3444, %v2388
        %v3545 = vmul.f32 %v3448, %v2389
        %v3546 = vmul.f32 %v3452, %v2390
        %v3547 = vmul.f32 %v3456, %v2391
        %v3548 = vmul.f32 %v3460, %v2392
        %v3549 = vmul.f32 %v3464, %v2393
        %v3550 = vmul.f32 %v3468, %v2394
        %v3551 = vmul.f32 %v3472, %v2395
        %v3552 = vmul.f32 %v3476, %v2396
        %v3553 = vmul.f32 %v3480, %v2397
        %v3554 = vmul.f32 %v3484, %v2398
        %v3555 = vmul.f32 %v3488, %v2399
        %v3556 = vmul.f32 %v3492, %v2400
        %v3561 = vcombine.low %v1888, %v1890
        %v3562 = vcombine.high %v1888, %v1890
        %v3563 = vcombine.low %v1929, %v1931
        %v3564 = vcombine.high %v1929, %v1931
        %v3566 = vunpack.c.l.s4 1966171168
        %v3567 = vunpack.c.0.s8 %v3566
        %v3568 = vlaneseq
        %v3569 = vshrl.u32 %v3568, 7
        %v3570 = vsub.s32 %v3567, %v3569
        %v3571 = vrot.slane %v3561, %v3570
        %v3573 = vunpack.c.l.s4 1966171168
        %v3574 = vunpack.c.0.s8 %v3573
        %v3575 = vlaneseq
        %v3576 = vshrl.u32 %v3575, 7
        %v3577 = vsub.s32 %v3574, %v3576
        %v3578 = vrot.slane %v3562, %v3577
        %v3580 = vunpack.c.l.s4 1966171168
        %v3581 = vunpack.c.0.s8 %v3580
        %v3582 = vlaneseq
        %v3583 = vshrl.u32 %v3582, 7
        %v3584 = vsub.s32 %v3581, %v3583
        %v3585 = vrot.slane %v3563, %v3584
        %v3587 = vunpack.c.l.s4 1966171168
        %v3588 = vunpack.c.0.s8 %v3587
        %v3589 = vlaneseq
        %v3590 = vshrl.u32 %v3589, 7
        %v3591 = vsub.s32 %v3588, %v3590
        %v3592 = vrot.slane %v3564, %v3591
        %v3593 = vcombine.low %v3571, %v3585
        %v3594 = vcombine.high %v3571, %v3585
        %v3595 = vcombine.low %v3578, %v3592
        %v3596 = vcombine.high %v3578, %v3592
        %v3598 = vunpack.c.l.s4 1966171168
        %v3599 = vunpack.c.0.s8 %v3598
        %v3600 = vlaneseq
        %v3601 = vshrl.u32 %v3600, 7
        %v3602 = vsub.s32 %v3599, %v3601
        %v3603 = vrot.slane %v3593, %v3602
        %v3605 = vunpack.c.l.s4 1966171168
        %v3606 = vunpack.c.0.s8 %v3605
        %v3607 = vlaneseq
        %v3608 = vshrl.u32 %v3607, 7
        %v3609 = vsub.s32 %v3606, %v3608
        %v3610 = vrot.slane %v3595, %v3609
        %v3612 = vunpack.c.l.s4 1966171168
        %v3613 = vunpack.c.0.s8 %v3612
        %v3614 = vlaneseq
        %v3615 = vshrl.u32 %v3614, 7
        %v3616 = vsub.s32 %v3613, %v3615
        %v3617 = vrot.slane %v3594, %v3616
        %v3619 = vunpack.c.l.s4 1966171168
        %v3620 = vunpack.c.0.s8 %v3619
        %v3621 = vlaneseq
        %v3622 = vshrl.u32 %v3621, 7
        %v3623 = vsub.s32 %v3620, %v3622
        %v3624 = vrot.slane %v3596, %v3623
        %v3625 = vcombine.high %v3603, %v3603
        %v3626 = vcombine.high %v3610, %v3610
        %v3627 = vcombine.high %v3617, %v3617
        %v3628 = vcombine.high %v3624, %v3624
        %v3629 = vlaneseq
        %v3630 = vshrl.u32 %v3629, 7
        %v3631 = vsub.s32 0, %v3630
        %v3632 = vrot.slane %v3603, %v3631
        %v3633 = vlaneseq
        %v3634 = vshrl.u32 %v3633, 7
        %v3635 = vsub.s32 1, %v3634
        %v3636 = vrot.slane %v3603, %v3635
        %v3637 = vlaneseq
        %v3638 = vshrl.u32 %v3637, 7
        %v3639 = vsub.s32 2, %v3638
        %v3640 = vrot.slane %v3603, %v3639
        %v3641 = vlaneseq
        %v3642 = vshrl.u32 %v3641, 7
        %v3643 = vsub.s32 3, %v3642
        %v3644 = vrot.slane %v3603, %v3643
        %v3645 = vlaneseq
        %v3646 = vshrl.u32 %v3645, 7
        %v3647 = vsub.s32 0, %v3646
        %v3648 = vrot.slane %v3617, %v3647
        %v3649 = vlaneseq
        %v3650 = vshrl.u32 %v3649, 7
        %v3651 = vsub.s32 1, %v3650
        %v3652 = vrot.slane %v3617, %v3651
        %v3653 = vlaneseq
        %v3654 = vshrl.u32 %v3653, 7
        %v3655 = vsub.s32 2, %v3654
        %v3656 = vrot.slane %v3617, %v3655
        %v3657 = vlaneseq
        %v3658 = vshrl.u32 %v3657, 7
        %v3659 = vsub.s32 3, %v3658
        %v3660 = vrot.slane %v3617, %v3659
        %v3661 = vlaneseq
        %v3662 = vshrl.u32 %v3661, 7
        %v3663 = vsub.s32 0, %v3662
        %v3664 = vrot.slane %v3625, %v3663
        %v3665 = vlaneseq
        %v3666 = vshrl.u32 %v3665, 7
        %v3667 = vsub.s32 1, %v3666
        %v3668 = vrot.slane %v3625, %v3667
        %v3669 = vlaneseq
        %v3670 = vshrl.u32 %v3669, 7
        %v3671 = vsub.s32 2, %v3670
        %v3672 = vrot.slane %v3625, %v3671
        %v3673 = vlaneseq
        %v3674 = vshrl.u32 %v3673, 7
        %v3675 = vsub.s32 3, %v3674
        %v3676 = vrot.slane %v3625, %v3675
        %v3677 = vlaneseq
        %v3678 = vshrl.u32 %v3677, 7
        %v3679 = vsub.s32 0, %v3678
        %v3680 = vrot.slane %v3627, %v3679
        %v3681 = vlaneseq
        %v3682 = vshrl.u32 %v3681, 7
        %v3683 = vsub.s32 1, %v3682
        %v3684 = vrot.slane %v3627, %v3683
        %v3685 = vlaneseq
        %v3686 = vshrl.u32 %v3685, 7
        %v3687 = vsub.s32 2, %v3686
        %v3688 = vrot.slane %v3627, %v3687
        %v3689 = vlaneseq
        %v3690 = vshrl.u32 %v3689, 7
        %v3691 = vsub.s32 3, %v3690
        %v3692 = vrot.slane %v3627, %v3691
        %v3693 = vlaneseq
        %v3694 = vshrl.u32 %v3693, 7
        %v3695 = vsub.s32 0, %v3694
        %v3696 = vrot.slane %v3610, %v3695
        %v3697 = vlaneseq
        %v3698 = vshrl.u32 %v3697, 7
        %v3699 = vsub.s32 1, %v3698
        %v3700 = vrot.slane %v3610, %v3699
        %v3701 = vlaneseq
        %v3702 = vshrl.u32 %v3701, 7
        %v3703 = vsub.s32 2, %v3702
        %v3704 = vrot.slane %v3610, %v3703
        %v3705 = vlaneseq
        %v3706 = vshrl.u32 %v3705, 7
        %v3707 = vsub.s32 3, %v3706
        %v3708 = vrot.slane %v3610, %v3707
        %v3709 = vlaneseq
        %v3710 = vshrl.u32 %v3709, 7
        %v3711 = vsub.s32 0, %v3710
        %v3712 = vrot.slane %v3624, %v3711
        %v3713 = vlaneseq
        %v3714 = vshrl.u32 %v3713, 7
        %v3715 = vsub.s32 1, %v3714
        %v3716 = vrot.slane %v3624, %v3715
        %v3717 = vlaneseq
        %v3718 = vshrl.u32 %v3717, 7
        %v3719 = vsub.s32 2, %v3718
        %v3720 = vrot.slane %v3624, %v3719
        %v3721 = vlaneseq
        %v3722 = vshrl.u32 %v3721, 7
        %v3723 = vsub.s32 3, %v3722
        %v3724 = vrot.slane %v3624, %v3723
        %v3725 = vlaneseq
        %v3726 = vshrl.u32 %v3725, 7
        %v3727 = vsub.s32 0, %v3726
        %v3728 = vrot.slane %v3626, %v3727
        %v3729 = vlaneseq
        %v3730 = vshrl.u32 %v3729, 7
        %v3731 = vsub.s32 1, %v3730
        %v3732 = vrot.slane %v3626, %v3731
        %v3733 = vlaneseq
        %v3734 = vshrl.u32 %v3733, 7
        %v3735 = vsub.s32 2, %v3734
        %v3736 = vrot.slane %v3626, %v3735
        %v3737 = vlaneseq
        %v3738 = vshrl.u32 %v3737, 7
        %v3739 = vsub.s32 3, %v3738
        %v3740 = vrot.slane %v3626, %v3739
        %v3741 = vlaneseq
        %v3742 = vshrl.u32 %v3741, 7
        %v3743 = vsub.s32 0, %v3742
        %v3744 = vrot.slane %v3628, %v3743
        %v3745 = vlaneseq
        %v3746 = vshrl.u32 %v3745, 7
        %v3747 = vsub.s32 1, %v3746
        %v3748 = vrot.slane %v3628, %v3747
        %v3749 = vlaneseq
        %v3750 = vshrl.u32 %v3749, 7
        %v3751 = vsub.s32 2, %v3750
        %v3752 = vrot.slane %v3628, %v3751
        %v3753 = vlaneseq
        %v3754 = vshrl.u32 %v3753, 7
        %v3755 = vsub.s32 3, %v3754
        %v3756 = vrot.slane %v3628, %v3755
        %v3789 = vmul.f32 %v3632, %v482
        %v3790 = vmul.f32 %v3636, %v483
        %v3791 = vmul.f32 %v3640, %v484
        %v3792 = vmul.f32 %v3644, %v485
        %v3793 = vmul.f32 %v3648, %v486
        %v3794 = vmul.f32 %v3652, %v487
        %v3795 = vmul.f32 %v3656, %v488
        %v3796 = vmul.f32 %v3660, %v489
        %v3797 = vmul.f32 %v3664, %v490
        %v3798 = vmul.f32 %v3668, %v491
        %v3799 = vmul.f32 %v3672, %v492
        %v3800 = vmul.f32 %v3676, %v493
        %v3801 = vmul.f32 %v3680, %v494
        %v3802 = vmul.f32 %v3684, %v495
        %v3803 = vmul.f32 %v3688, %v496
        %v3804 = vmul.f32 %v3692, %v497
        %v3805 = vmul.f32 %v3696, %v498
        %v3806 = vmul.f32 %v3700, %v499
        %v3807 = vmul.f32 %v3704, %v500
        %v3808 = vmul.f32 %v3708, %v501
        %v3809 = vmul.f32 %v3712, %v502
        %v3810 = vmul.f32 %v3716, %v503
        %v3811 = vmul.f32 %v3720, %v504
        %v3812 = vmul.f32 %v3724, %v505
        %v3813 = vmul.f32 %v3728, %v506
        %v3814 = vmul.f32 %v3732, %v507
        %v3815 = vmul.f32 %v3736, %v508
        %v3816 = vmul.f32 %v3740, %v509
        %v3817 = vmul.f32 %v3744, %v510
        %v3818 = vmul.f32 %v3748, %v511
        %v3819 = vmul.f32 %v3752, %v512
        %v3820 = vmul.f32 %v3756, %v513
        %v3821 = vadd.f32 %v3525, %v3789
        %v3822 = vadd.f32 %v3526, %v3790
        %v3823 = vadd.f32 %v3527, %v3791
        %v3824 = vadd.f32 %v3528, %v3792
        %v3825 = vadd.f32 %v3529, %v3793
        %v3826 = vadd.f32 %v3530, %v3794
        %v3827 = vadd.f32 %v3531, %v3795
        %v3828 = vadd.f32 %v3532, %v3796
        %v3829 = vadd.f32 %v3533, %v3797
        %v3830 = vadd.f32 %v3534, %v3798
        %v3831 = vadd.f32 %v3535, %v3799
        %v3832 = vadd.f32 %v3536, %v3800
        %v3833 = vadd.f32 %v3537, %v3801
        %v3834 = vadd.f32 %v3538, %v3802
        %v3835 = vadd.f32 %v3539, %v3803
        %v3836 = vadd.f32 %v3540, %v3804
        %v3837 = vadd.f32 %v3541, %v3805
        %v3838 = vadd.f32 %v3542, %v3806
        %v3839 = vadd.f32 %v3543, %v3807
        %v3840 = vadd.f32 %v3544, %v3808
        %v3841 = vadd.f32 %v3545, %v3809
        %v3842 = vadd.f32 %v3546, %v3810
        %v3843 = vadd.f32 %v3547, %v3811
        %v3844 = vadd.f32 %v3548, %v3812
        %v3845 = vadd.f32 %v3549, %v3813
        %v3846 = vadd.f32 %v3550, %v3814
        %v3847 = vadd.f32 %v3551, %v3815
        %v3848 = vadd.f32 %v3552, %v3816
        %v3849 = vadd.f32 %v3553, %v3817
        %v3850 = vadd.f32 %v3554, %v3818
        %v3851 = vadd.f32 %v3555, %v3819
        %v3852 = vadd.f32 %v3556, %v3820
        %v3857 = vcombine.low %v1970, %v1972
        %v3858 = vcombine.high %v1970, %v1972
        %v3859 = vcombine.low %v2011, %v2013
        %v3860 = vcombine.high %v2011, %v2013
        %v3862 = vunpack.c.l.s4 1966171168
        %v3863 = vunpack.c.0.s8 %v3862
        %v3864 = vlaneseq
        %v3865 = vshrl.u32 %v3864, 7
        %v3866 = vsub.s32 %v3863, %v3865
        %v3867 = vrot.slane %v3857, %v3866
        %v3869 = vunpack.c.l.s4 1966171168
        %v3870 = vunpack.c.0.s8 %v3869
        %v3871 = vlaneseq
        %v3872 = vshrl.u32 %v3871, 7
        %v3873 = vsub.s32 %v3870, %v3872
        %v3874 = vrot.slane %v3858, %v3873
        %v3876 = vunpack.c.l.s4 1966171168
        %v3877 = vunpack.c.0.s8 %v3876
        %v3878 = vlaneseq
        %v3879 = vshrl.u32 %v3878, 7
        %v3880 = vsub.s32 %v3877, %v3879
        %v3881 = vrot.slane %v3859, %v3880
        %v3883 = vunpack.c.l.s4 1966171168
        %v3884 = vunpack.c.0.s8 %v3883
        %v3885 = vlaneseq
        %v3886 = vshrl.u32 %v3885, 7
        %v3887 = vsub.s32 %v3884, %v3886
        %v3888 = vrot.slane %v3860, %v3887
        %v3889 = vcombine.low %v3867, %v3881
        %v3890 = vcombine.high %v3867, %v3881
        %v3891 = vcombine.low %v3874, %v3888
        %v3892 = vcombine.high %v3874, %v3888
        %v3894 = vunpack.c.l.s4 1966171168
        %v3895 = vunpack.c.0.s8 %v3894
        %v3896 = vlaneseq
        %v3897 = vshrl.u32 %v3896, 7
        %v3898 = vsub.s32 %v3895, %v3897
        %v3899 = vrot.slane %v3889, %v3898
        %v3901 = vunpack.c.l.s4 1966171168
        %v3902 = vunpack.c.0.s8 %v3901
        %v3903 = vlaneseq
        %v3904 = vshrl.u32 %v3903, 7
        %v3905 = vsub.s32 %v3902, %v3904
        %v3906 = vrot.slane %v3891, %v3905
        %v3908 = vunpack.c.l.s4 1966171168
        %v3909 = vunpack.c.0.s8 %v3908
        %v3910 = vlaneseq
        %v3911 = vshrl.u32 %v3910, 7
        %v3912 = vsub.s32 %v3909, %v3911
        %v3913 = vrot.slane %v3890, %v3912
        %v3915 = vunpack.c.l.s4 1966171168
        %v3916 = vunpack.c.0.s8 %v3915
        %v3917 = vlaneseq
        %v3918 = vshrl.u32 %v3917, 7
        %v3919 = vsub.s32 %v3916, %v3918
        %v3920 = vrot.slane %v3892, %v3919
        %v3921 = vcombine.high %v3899, %v3899
        %v3922 = vcombine.high %v3906, %v3906
        %v3923 = vcombine.high %v3913, %v3913
        %v3924 = vcombine.high %v3920, %v3920
        %v3925 = vlaneseq
        %v3926 = vshrl.u32 %v3925, 7
        %v3927 = vsub.s32 0, %v3926
        %v3928 = vrot.slane %v3899, %v3927
        %v3929 = vlaneseq
        %v3930 = vshrl.u32 %v3929, 7
        %v3931 = vsub.s32 1, %v3930
        %v3932 = vrot.slane %v3899, %v3931
        %v3933 = vlaneseq
        %v3934 = vshrl.u32 %v3933, 7
        %v3935 = vsub.s32 2, %v3934
        %v3936 = vrot.slane %v3899, %v3935
        %v3937 = vlaneseq
        %v3938 = vshrl.u32 %v3937, 7
        %v3939 = vsub.s32 3, %v3938
        %v3940 = vrot.slane %v3899, %v3939
        %v3941 = vlaneseq
        %v3942 = vshrl.u32 %v3941, 7
        %v3943 = vsub.s32 0, %v3942
        %v3944 = vrot.slane %v3913, %v3943
        %v3945 = vlaneseq
        %v3946 = vshrl.u32 %v3945, 7
        %v3947 = vsub.s32 1, %v3946
        %v3948 = vrot.slane %v3913, %v3947
        %v3949 = vlaneseq
        %v3950 = vshrl.u32 %v3949, 7
        %v3951 = vsub.s32 2, %v3950
        %v3952 = vrot.slane %v3913, %v3951
        %v3953 = vlaneseq
        %v3954 = vshrl.u32 %v3953, 7
        %v3955 = vsub.s32 3, %v3954
        %v3956 = vrot.slane %v3913, %v3955
        %v3957 = vlaneseq
        %v3958 = vshrl.u32 %v3957, 7
        %v3959 = vsub.s32 0, %v3958
        %v3960 = vrot.slane %v3921, %v3959
        %v3961 = vlaneseq
        %v3962 = vshrl.u32 %v3961, 7
        %v3963 = vsub.s32 1, %v3962
        %v3964 = vrot.slane %v3921, %v3963
        %v3965 = vlaneseq
        %v3966 = vshrl.u32 %v3965, 7
        %v3967 = vsub.s32 2, %v3966
        %v3968 = vrot.slane %v3921, %v3967
        %v3969 = vlaneseq
        %v3970 = vshrl.u32 %v3969, 7
        %v3971 = vsub.s32 3, %v3970
        %v3972 = vrot.slane %v3921, %v3971
        %v3973 = vlaneseq
        %v3974 = vshrl.u32 %v3973, 7
        %v3975 = vsub.s32 0, %v3974
        %v3976 = vrot.slane %v3923, %v3975
        %v3977 = vlaneseq
        %v3978 = vshrl.u32 %v3977, 7
        %v3979 = vsub.s32 1, %v3978
        %v3980 = vrot.slane %v3923, %v3979
        %v3981 = vlaneseq
        %v3982 = vshrl.u32 %v3981, 7
        %v3983 = vsub.s32 2, %v3982
        %v3984 = vrot.slane %v3923, %v3983
        %v3985 = vlaneseq
        %v3986 = vshrl.u32 %v3985, 7
        %v3987 = vsub.s32 3, %v3986
        %v3988 = vrot.slane %v3923, %v3987
        %v3989 = vlaneseq
        %v3990 = vshrl.u32 %v3989, 7
        %v3991 = vsub.s32 0, %v3990
        %v3992 = vrot.slane %v3906, %v3991
        %v3993 = vlaneseq
        %v3994 = vshrl.u32 %v3993, 7
        %v3995 = vsub.s32 1, %v3994
        %v3996 = vrot.slane %v3906, %v3995
        %v3997 = vlaneseq
        %v3998 = vshrl.u32 %v3997, 7
        %v3999 = vsub.s32 2, %v3998
        %v4000 = vrot.slane %v3906, %v3999
        %v4001 = vlaneseq
        %v4002 = vshrl.u32 %v4001, 7
        %v4003 = vsub.s32 3, %v4002
        %v4004 = vrot.slane %v3906, %v4003
        %v4005 = vlaneseq
        %v4006 = vshrl.u32 %v4005, 7
        %v4007 = vsub.s32 0, %v4006
        %v4008 = vrot.slane %v3920, %v4007
        %v4009 = vlaneseq
        %v4010 = vshrl.u32 %v4009, 7
        %v4011 = vsub.s32 1, %v4010
        %v4012 = vrot.slane %v3920, %v4011
        %v4013 = vlaneseq
        %v4014 = vshrl.u32 %v4013, 7
        %v4015 = vsub.s32 2, %v4014
        %v4016 = vrot.slane %v3920, %v4015
        %v4017 = vlaneseq
        %v4018 = vshrl.u32 %v4017, 7
        %v4019 = vsub.s32 3, %v4018
        %v4020 = vrot.slane %v3920, %v4019
        %v4021 = vlaneseq
        %v4022 = vshrl.u32 %v4021, 7
        %v4023 = vsub.s32 0, %v4022
        %v4024 = vrot.slane %v3922, %v4023
        %v4025 = vlaneseq
        %v4026 = vshrl.u32 %v4025, 7
        %v4027 = vsub.s32 1, %v4026
        %v4028 = vrot.slane %v3922, %v4027
        %v4029 = vlaneseq
        %v4030 = vshrl.u32 %v4029, 7
        %v4031 = vsub.s32 2, %v4030
        %v4032 = vrot.slane %v3922, %v4031
        %v4033 = vlaneseq
        %v4034 = vshrl.u32 %v4033, 7
        %v4035 = vsub.s32 3, %v4034
        %v4036 = vrot.slane %v3922, %v4035
        %v4037 = vlaneseq
        %v4038 = vshrl.u32 %v4037, 7
        %v4039 = vsub.s32 0, %v4038
        %v4040 = vrot.slane %v3924, %v4039
        %v4041 = vlaneseq
        %v4042 = vshrl.u32 %v4041, 7
        %v4043 = vsub.s32 1, %v4042
        %v4044 = vrot.slane %v3924, %v4043
        %v4045 = vlaneseq
        %v4046 = vshrl.u32 %v4045, 7
        %v4047 = vsub.s32 2, %v4046
        %v4048 = vrot.slane %v3924, %v4047
        %v4049 = vlaneseq
        %v4050 = vshrl.u32 %v4049, 7
        %v4051 = vsub.s32 3, %v4050
        %v4052 = vrot.slane %v3924, %v4051
        %v4085 = vmul.f32 %v3928, %v2405
        %v4086 = vmul.f32 %v3932, %v2406
        %v4087 = vmul.f32 %v3936, %v2407
        %v4088 = vmul.f32 %v3940, %v2408
        %v4089 = vmul.f32 %v3944, %v2409
        %v4090 = vmul.f32 %v3948, %v2410
        %v4091 = vmul.f32 %v3952, %v2411
        %v4092 = vmul.f32 %v3956, %v2412
        %v4093 = vmul.f32 %v3960, %v2413
        %v4094 = vmul.f32 %v3964, %v2414
        %v4095 = vmul.f32 %v3968, %v2415
        %v4096 = vmul.f32 %v3972, %v2416
        %v4097 = vmul.f32 %v3976, %v2417
        %v4098 = vmul.f32 %v3980, %v2418
        %v4099 = vmul.f32 %v3984, %v2419
        %v4100 = vmul.f32 %v3988, %v2420
        %v4101 = vmul.f32 %v3992, %v2421
        %v4102 = vmul.f32 %v3996, %v2422
        %v4103 = vmul.f32 %v4000, %v2423
        %v4104 = vmul.f32 %v4004, %v2424
        %v4105 = vmul.f32 %v4008, %v2425
        %v4106 = vmul.f32 %v4012, %v2426
        %v4107 = vmul.f32 %v4016, %v2427
        %v4108 = vmul.f32 %v4020, %v2428
        %v4109 = vmul.f32 %v4024, %v2429
        %v4110 = vmul.f32 %v4028, %v2430
        %v4111 = vmul.f32 %v4032, %v2431
        %v4112 = vmul.f32 %v4036, %v2432
        %v4113 = vmul.f32 %v4040, %v2433
        %v4114 = vmul.f32 %v4044, %v2434
        %v4115 = vmul.f32 %v4048, %v2435
        %v4116 = vmul.f32 %v4052, %v2436
        %v4117 = vadd.f32 %v3821, %v4085
        %v4118 = vadd.f32 %v3822, %v4086
        %v4119 = vadd.f32 %v3823, %v4087
        %v4120 = vadd.f32 %v3824, %v4088
        %v4121 = vadd.f32 %v3825, %v4089
        %v4122 = vadd.f32 %v3826, %v4090
        %v4123 = vadd.f32 %v3827, %v4091
        %v4124 = vadd.f32 %v3828, %v4092
        %v4125 = vadd.f32 %v3829, %v4093
        %v4126 = vadd.f32 %v3830, %v4094
        %v4127 = vadd.f32 %v3831, %v4095
        %v4128 = vadd.f32 %v3832, %v4096
        %v4129 = vadd.f32 %v3833, %v4097
        %v4130 = vadd.f32 %v3834, %v4098
        %v4131 = vadd.f32 %v3835, %v4099
        %v4132 = vadd.f32 %v3836, %v4100
        %v4133 = vadd.f32 %v3837, %v4101
        %v4134 = vadd.f32 %v3838, %v4102
        %v4135 = vadd.f32 %v3839, %v4103
        %v4136 = vadd.f32 %v3840, %v4104
        %v4137 = vadd.f32 %v3841, %v4105
        %v4138 = vadd.f32 %v3842, %v4106
        %v4139 = vadd.f32 %v3843, %v4107
        %v4140 = vadd.f32 %v3844, %v4108
        %v4141 = vadd.f32 %v3845, %v4109
        %v4142 = vadd.f32 %v3846, %v4110
        %v4143 = vadd.f32 %v3847, %v4111
        %v4144 = vadd.f32 %v3848, %v4112
        %v4145 = vadd.f32 %v3849, %v4113
        %v4146 = vadd.f32 %v3850, %v4114
        %v4147 = vadd.f32 %v3851, %v4115
        %v4148 = vadd.f32 %v3852, %v4116
        %v4153 = vcombine.low %v2052, %v2054
        %v4154 = vcombine.high %v2052, %v2054
        %v4155 = vcombine.low %v2093, %v2095
        %v4156 = vcombine.high %v2093, %v2095
        %v4158 = vunpack.c.l.s4 1966171168
        %v4159 = vunpack.c.0.s8 %v4158
        %v4160 = vlaneseq
        %v4161 = vshrl.u32 %v4160, 7
        %v4162 = vsub.s32 %v4159, %v4161
        %v4163 = vrot.slane %v4153, %v4162
        %v4165 = vunpack.c.l.s4 1966171168
        %v4166 = vunpack.c.0.s8 %v4165
        %v4167 = vlaneseq
        %v4168 = vshrl.u32 %v4167, 7
        %v4169 = vsub.s32 %v4166, %v4168
        %v4170 = vrot.slane %v4154, %v4169
        %v4172 = vunpack.c.l.s4 1966171168
        %v4173 = vunpack.c.0.s8 %v4172
        %v4174 = vlaneseq
        %v4175 = vshrl.u32 %v4174, 7
        %v4176 = vsub.s32 %v4173, %v4175
        %v4177 = vrot.slane %v4155, %v4176
        %v4179 = vunpack.c.l.s4 1966171168
        %v4180 = vunpack.c.0.s8 %v4179
        %v4181 = vlaneseq
        %v4182 = vshrl.u32 %v4181, 7
        %v4183 = vsub.s32 %v4180, %v4182
        %v4184 = vrot.slane %v4156, %v4183
        %v4185 = vcombine.low %v4163, %v4177
        %v4186 = vcombine.high %v4163, %v4177
        %v4187 = vcombine.low %v4170, %v4184
        %v4188 = vcombine.high %v4170, %v4184
        %v4190 = vunpack.c.l.s4 1966171168
        %v4191 = vunpack.c.0.s8 %v4190
        %v4192 = vlaneseq
        %v4193 = vshrl.u32 %v4192, 7
        %v4194 = vsub.s32 %v4191, %v4193
        %v4195 = vrot.slane %v4185, %v4194
        %v4197 = vunpack.c.l.s4 1966171168
        %v4198 = vunpack.c.0.s8 %v4197
        %v4199 = vlaneseq
        %v4200 = vshrl.u32 %v4199, 7
        %v4201 = vsub.s32 %v4198, %v4200
        %v4202 = vrot.slane %v4187, %v4201
        %v4204 = vunpack.c.l.s4 1966171168
        %v4205 = vunpack.c.0.s8 %v4204
        %v4206 = vlaneseq
        %v4207 = vshrl.u32 %v4206, 7
        %v4208 = vsub.s32 %v4205, %v4207
        %v4209 = vrot.slane %v4186, %v4208
        %v4211 = vunpack.c.l.s4 1966171168
        %v4212 = vunpack.c.0.s8 %v4211
        %v4213 = vlaneseq
        %v4214 = vshrl.u32 %v4213, 7
        %v4215 = vsub.s32 %v4212, %v4214
        %v4216 = vrot.slane %v4188, %v4215
        %v4217 = vcombine.high %v4195, %v4195
        %v4218 = vcombine.high %v4202, %v4202
        %v4219 = vcombine.high %v4209, %v4209
        %v4220 = vcombine.high %v4216, %v4216
        %v4221 = vlaneseq
        %v4222 = vshrl.u32 %v4221, 7
        %v4223 = vsub.s32 0, %v4222
        %v4224 = vrot.slane %v4195, %v4223
        %v4225 = vlaneseq
        %v4226 = vshrl.u32 %v4225, 7
        %v4227 = vsub.s32 1, %v4226
        %v4228 = vrot.slane %v4195, %v4227
        %v4229 = vlaneseq
        %v4230 = vshrl.u32 %v4229, 7
        %v4231 = vsub.s32 2, %v4230
        %v4232 = vrot.slane %v4195, %v4231
        %v4233 = vlaneseq
        %v4234 = vshrl.u32 %v4233, 7
        %v4235 = vsub.s32 3, %v4234
        %v4236 = vrot.slane %v4195, %v4235
        %v4237 = vlaneseq
        %v4238 = vshrl.u32 %v4237, 7
        %v4239 = vsub.s32 0, %v4238
        %v4240 = vrot.slane %v4209, %v4239
        %v4241 = vlaneseq
        %v4242 = vshrl.u32 %v4241, 7
        %v4243 = vsub.s32 1, %v4242
        %v4244 = vrot.slane %v4209, %v4243
        %v4245 = vlaneseq
        %v4246 = vshrl.u32 %v4245, 7
        %v4247 = vsub.s32 2, %v4246
        %v4248 = vrot.slane %v4209, %v4247
        %v4249 = vlaneseq
        %v4250 = vshrl.u32 %v4249, 7
        %v4251 = vsub.s32 3, %v4250
        %v4252 = vrot.slane %v4209, %v4251
        %v4253 = vlaneseq
        %v4254 = vshrl.u32 %v4253, 7
        %v4255 = vsub.s32 0, %v4254
        %v4256 = vrot.slane %v4217, %v4255
        %v4257 = vlaneseq
        %v4258 = vshrl.u32 %v4257, 7
        %v4259 = vsub.s32 1, %v4258
        %v4260 = vrot.slane %v4217, %v4259
        %v4261 = vlaneseq
        %v4262 = vshrl.u32 %v4261, 7
        %v4263 = vsub.s32 2, %v4262
        %v4264 = vrot.slane %v4217, %v4263
        %v4265 = vlaneseq
        %v4266 = vshrl.u32 %v4265, 7
        %v4267 = vsub.s32 3, %v4266
        %v4268 = vrot.slane %v4217, %v4267
        %v4269 = vlaneseq
        %v4270 = vshrl.u32 %v4269, 7
        %v4271 = vsub.s32 0, %v4270
        %v4272 = vrot.slane %v4219, %v4271
        %v4273 = vlaneseq
        %v4274 = vshrl.u32 %v4273, 7
        %v4275 = vsub.s32 1, %v4274
        %v4276 = vrot.slane %v4219, %v4275
        %v4277 = vlaneseq
        %v4278 = vshrl.u32 %v4277, 7
        %v4279 = vsub.s32 2, %v4278
        %v4280 = vrot.slane %v4219, %v4279
        %v4281 = vlaneseq
        %v4282 = vshrl.u32 %v4281, 7
        %v4283 = vsub.s32 3, %v4282
        %v4284 = vrot.slane %v4219, %v4283
        %v4285 = vlaneseq
        %v4286 = vshrl.u32 %v4285, 7
        %v4287 = vsub.s32 0, %v4286
        %v4288 = vrot.slane %v4202, %v4287
        %v4289 = vlaneseq
        %v4290 = vshrl.u32 %v4289, 7
        %v4291 = vsub.s32 1, %v4290
        %v4292 = vrot.slane %v4202, %v4291
        %v4293 = vlaneseq
        %v4294 = vshrl.u32 %v4293, 7
        %v4295 = vsub.s32 2, %v4294
        %v4296 = vrot.slane %v4202, %v4295
        %v4297 = vlaneseq
        %v4298 = vshrl.u32 %v4297, 7
        %v4299 = vsub.s32 3, %v4298
        %v4300 = vrot.slane %v4202, %v4299
        %v4301 = vlaneseq
        %v4302 = vshrl.u32 %v4301, 7
        %v4303 = vsub.s32 0, %v4302
        %v4304 = vrot.slane %v4216, %v4303
        %v4305 = vlaneseq
        %v4306 = vshrl.u32 %v4305, 7
        %v4307 = vsub.s32 1, %v4306
        %v4308 = vrot.slane %v4216, %v4307
        %v4309 = vlaneseq
        %v4310 = vshrl.u32 %v4309, 7
        %v4311 = vsub.s32 2, %v4310
        %v4312 = vrot.slane %v4216, %v4311
        %v4313 = vlaneseq
        %v4314 = vshrl.u32 %v4313, 7
        %v4315 = vsub.s32 3, %v4314
        %v4316 = vrot.slane %v4216, %v4315
        %v4317 = vlaneseq
        %v4318 = vshrl.u32 %v4317, 7
        %v4319 = vsub.s32 0, %v4318
        %v4320 = vrot.slane %v4218, %v4319
        %v4321 = vlaneseq
        %v4322 = vshrl.u32 %v4321, 7
        %v4323 = vsub.s32 1, %v4322
        %v4324 = vrot.slane %v4218, %v4323
        %v4325 = vlaneseq
        %v4326 = vshrl.u32 %v4325, 7
        %v4327 = vsub.s32 2, %v4326
        %v4328 = vrot.slane %v4218, %v4327
        %v4329 = vlaneseq
        %v4330 = vshrl.u32 %v4329, 7
        %v4331 = vsub.s32 3, %v4330
        %v4332 = vrot.slane %v4218, %v4331
        %v4333 = vlaneseq
        %v4334 = vshrl.u32 %v4333, 7
        %v4335 = vsub.s32 0, %v4334
        %v4336 = vrot.slane %v4220, %v4335
        %v4337 = vlaneseq
        %v4338 = vshrl.u32 %v4337, 7
        %v4339 = vsub.s32 1, %v4338
        %v4340 = vrot.slane %v4220, %v4339
        %v4341 = vlaneseq
        %v4342 = vshrl.u32 %v4341, 7
        %v4343 = vsub.s32 2, %v4342
        %v4344 = vrot.slane %v4220, %v4343
        %v4345 = vlaneseq
        %v4346 = vshrl.u32 %v4345, 7
        %v4347 = vsub.s32 3, %v4346
        %v4348 = vrot.slane %v4220, %v4347
        %v4381 = vmul.f32 %v4224, %v2369
        %v4382 = vmul.f32 %v4228, %v2370
        %v4383 = vmul.f32 %v4232, %v2371
        %v4384 = vmul.f32 %v4236, %v2372
        %v4385 = vmul.f32 %v4240, %v2373
        %v4386 = vmul.f32 %v4244, %v2374
        %v4387 = vmul.f32 %v4248, %v2375
        %v4388 = vmul.f32 %v4252, %v2376
        %v4389 = vmul.f32 %v4256, %v2377
        %v4390 = vmul.f32 %v4260, %v2378
        %v4391 = vmul.f32 %v4264, %v2379
        %v4392 = vmul.f32 %v4268, %v2380
        %v4393 = vmul.f32 %v4272, %v2381
        %v4394 = vmul.f32 %v4276, %v2382
        %v4395 = vmul.f32 %v4280, %v2383
        %v4396 = vmul.f32 %v4284, %v2384
        %v4397 = vmul.f32 %v4288, %v2385
        %v4398 = vmul.f32 %v4292, %v2386
        %v4399 = vmul.f32 %v4296, %v2387
        %v4400 = vmul.f32 %v4300, %v2388
        %v4401 = vmul.f32 %v4304, %v2389
        %v4402 = vmul.f32 %v4308, %v2390
        %v4403 = vmul.f32 %v4312, %v2391
        %v4404 = vmul.f32 %v4316, %v2392
        %v4405 = vmul.f32 %v4320, %v2393
        %v4406 = vmul.f32 %v4324, %v2394
        %v4407 = vmul.f32 %v4328, %v2395
        %v4408 = vmul.f32 %v4332, %v2396
        %v4409 = vmul.f32 %v4336, %v2397
        %v4410 = vmul.f32 %v4340, %v2398
        %v4411 = vmul.f32 %v4344, %v2399
        %v4412 = vmul.f32 %v4348, %v2400
        %v4417 = vcombine.low %v2134, %v2136
        %v4418 = vcombine.high %v2134, %v2136
        %v4419 = vcombine.low %v2175, %v2177
        %v4420 = vcombine.high %v2175, %v2177
        %v4422 = vunpack.c.l.s4 1966171168
        %v4423 = vunpack.c.0.s8 %v4422
        %v4424 = vlaneseq
        %v4425 = vshrl.u32 %v4424, 7
        %v4426 = vsub.s32 %v4423, %v4425
        %v4427 = vrot.slane %v4417, %v4426
        %v4429 = vunpack.c.l.s4 1966171168
        %v4430 = vunpack.c.0.s8 %v4429
        %v4431 = vlaneseq
        %v4432 = vshrl.u32 %v4431, 7
        %v4433 = vsub.s32 %v4430, %v4432
        %v4434 = vrot.slane %v4418, %v4433
        %v4436 = vunpack.c.l.s4 1966171168
        %v4437 = vunpack.c.0.s8 %v4436
        %v4438 = vlaneseq
        %v4439 = vshrl.u32 %v4438, 7
        %v4440 = vsub.s32 %v4437, %v4439
        %v4441 = vrot.slane %v4419, %v4440
        %v4443 = vunpack.c.l.s4 1966171168
        %v4444 = vunpack.c.0.s8 %v4443
        %v4445 = vlaneseq
        %v4446 = vshrl.u32 %v4445, 7
        %v4447 = vsub.s32 %v4444, %v4446
        %v4448 = vrot.slane %v4420, %v4447
        %v4449 = vcombine.low %v4427, %v4441
        %v4450 = vcombine.high %v4427, %v4441
        %v4451 = vcombine.low %v4434, %v4448
        %v4452 = vcombine.high %v4434, %v4448
        %v4454 = vunpack.c.l.s4 1966171168
        %v4455 = vunpack.c.0.s8 %v4454
        %v4456 = vlaneseq
        %v4457 = vshrl.u32 %v4456, 7
        %v4458 = vsub.s32 %v4455, %v4457
        %v4459 = vrot.slane %v4449, %v4458
        %v4461 = vunpack.c.l.s4 1966171168
        %v4462 = vunpack.c.0.s8 %v4461
        %v4463 = vlaneseq
        %v4464 = vshrl.u32 %v4463, 7
        %v4465 = vsub.s32 %v4462, %v4464
        %v4466 = vrot.slane %v4451, %v4465
        %v4468 = vunpack.c.l.s4 1966171168
        %v4469 = vunpack.c.0.s8 %v4468
        %v4470 = vlaneseq
        %v4471 = vshrl.u32 %v4470, 7
        %v4472 = vsub.s32 %v4469, %v4471
        %v4473 = vrot.slane %v4450, %v4472
        %v4475 = vunpack.c.l.s4 1966171168
        %v4476 = vunpack.c.0.s8 %v4475
        %v4477 = vlaneseq
        %v4478 = vshrl.u32 %v4477, 7
        %v4479 = vsub.s32 %v4476, %v4478
        %v4480 = vrot.slane %v4452, %v4479
        %v4481 = vcombine.high %v4459, %v4459
        %v4482 = vcombine.high %v4466, %v4466
        %v4483 = vcombine.high %v4473, %v4473
        %v4484 = vcombine.high %v4480, %v4480
        %v4485 = vlaneseq
        %v4486 = vshrl.u32 %v4485, 7
        %v4487 = vsub.s32 0, %v4486
        %v4488 = vrot.slane %v4459, %v4487
        %v4489 = vlaneseq
        %v4490 = vshrl.u32 %v4489, 7
        %v4491 = vsub.s32 1, %v4490
        %v4492 = vrot.slane %v4459, %v4491
        %v4493 = vlaneseq
        %v4494 = vshrl.u32 %v4493, 7
        %v4495 = vsub.s32 2, %v4494
        %v4496 = vrot.slane %v4459, %v4495
        %v4497 = vlaneseq
        %v4498 = vshrl.u32 %v4497, 7
        %v4499 = vsub.s32 3, %v4498
        %v4500 = vrot.slane %v4459, %v4499
        %v4501 = vlaneseq
        %v4502 = vshrl.u32 %v4501, 7
        %v4503 = vsub.s32 0, %v4502
        %v4504 = vrot.slane %v4473, %v4503
        %v4505 = vlaneseq
        %v4506 = vshrl.u32 %v4505, 7
        %v4507 = vsub.s32 1, %v4506
        %v4508 = vrot.slane %v4473, %v4507
        %v4509 = vlaneseq
        %v4510 = vshrl.u32 %v4509, 7
        %v4511 = vsub.s32 2, %v4510
        %v4512 = vrot.slane %v4473, %v4511
        %v4513 = vlaneseq
        %v4514 = vshrl.u32 %v4513, 7
        %v4515 = vsub.s32 3, %v4514
        %v4516 = vrot.slane %v4473, %v4515
        %v4517 = vlaneseq
        %v4518 = vshrl.u32 %v4517, 7
        %v4519 = vsub.s32 0, %v4518
        %v4520 = vrot.slane %v4481, %v4519
        %v4521 = vlaneseq
        %v4522 = vshrl.u32 %v4521, 7
        %v4523 = vsub.s32 1, %v4522
        %v4524 = vrot.slane %v4481, %v4523
        %v4525 = vlaneseq
        %v4526 = vshrl.u32 %v4525, 7
        %v4527 = vsub.s32 2, %v4526
        %v4528 = vrot.slane %v4481, %v4527
        %v4529 = vlaneseq
        %v4530 = vshrl.u32 %v4529, 7
        %v4531 = vsub.s32 3, %v4530
        %v4532 = vrot.slane %v4481, %v4531
        %v4533 = vlaneseq
        %v4534 = vshrl.u32 %v4533, 7
        %v4535 = vsub.s32 0, %v4534
        %v4536 = vrot.slane %v4483, %v4535
        %v4537 = vlaneseq
        %v4538 = vshrl.u32 %v4537, 7
        %v4539 = vsub.s32 1, %v4538
        %v4540 = vrot.slane %v4483, %v4539
        %v4541 = vlaneseq
        %v4542 = vshrl.u32 %v4541, 7
        %v4543 = vsub.s32 2, %v4542
        %v4544 = vrot.slane %v4483, %v4543
        %v4545 = vlaneseq
        %v4546 = vshrl.u32 %v4545, 7
        %v4547 = vsub.s32 3, %v4546
        %v4548 = vrot.slane %v4483, %v4547
        %v4549 = vlaneseq
        %v4550 = vshrl.u32 %v4549, 7
        %v4551 = vsub.s32 0, %v4550
        %v4552 = vrot.slane %v4466, %v4551
        %v4553 = vlaneseq
        %v4554 = vshrl.u32 %v4553, 7
        %v4555 = vsub.s32 1, %v4554
        %v4556 = vrot.slane %v4466, %v4555
        %v4557 = vlaneseq
        %v4558 = vshrl.u32 %v4557, 7
        %v4559 = vsub.s32 2, %v4558
        %v4560 = vrot.slane %v4466, %v4559
        %v4561 = vlaneseq
        %v4562 = vshrl.u32 %v4561, 7
        %v4563 = vsub.s32 3, %v4562
        %v4564 = vrot.slane %v4466, %v4563
        %v4565 = vlaneseq
        %v4566 = vshrl.u32 %v4565, 7
        %v4567 = vsub.s32 0, %v4566
        %v4568 = vrot.slane %v4480, %v4567
        %v4569 = vlaneseq
        %v4570 = vshrl.u32 %v4569, 7
        %v4571 = vsub.s32 1, %v4570
        %v4572 = vrot.slane %v4480, %v4571
        %v4573 = vlaneseq
        %v4574 = vshrl.u32 %v4573, 7
        %v4575 = vsub.s32 2, %v4574
        %v4576 = vrot.slane %v4480, %v4575
        %v4577 = vlaneseq
        %v4578 = vshrl.u32 %v4577, 7
        %v4579 = vsub.s32 3, %v4578
        %v4580 = vrot.slane %v4480, %v4579
        %v4581 = vlaneseq
        %v4582 = vshrl.u32 %v4581, 7
        %v4583 = vsub.s32 0, %v4582
        %v4584 = vrot.slane %v4482, %v4583
        %v4585 = vlaneseq
        %v4586 = vshrl.u32 %v4585, 7
        %v4587 = vsub.s32 1, %v4586
        %v4588 = vrot.slane %v4482, %v4587
        %v4589 = vlaneseq
        %v4590 = vshrl.u32 %v4589, 7
        %v4591 = vsub.s32 2, %v4590
        %v4592 = vrot.slane %v4482, %v4591
        %v4593 = vlaneseq
        %v4594 = vshrl.u32 %v4593, 7
        %v4595 = vsub.s32 3, %v4594
        %v4596 = vrot.slane %v4482, %v4595
        %v4597 = vlaneseq
        %v4598 = vshrl.u32 %v4597, 7
        %v4599 = vsub.s32 0, %v4598
        %v4600 = vrot.slane %v4484, %v4599
        %v4601 = vlaneseq
        %v4602 = vshrl.u32 %v4601, 7
        %v4603 = vsub.s32 1, %v4602
        %v4604 = vrot.slane %v4484, %v4603
        %v4605 = vlaneseq
        %v4606 = vshrl.u32 %v4605, 7
        %v4607 = vsub.s32 2, %v4606
        %v4608 = vrot.slane %v4484, %v4607
        %v4609 = vlaneseq
        %v4610 = vshrl.u32 %v4609, 7
        %v4611 = vsub.s32 3, %v4610
        %v4612 = vrot.slane %v4484, %v4611
        %v4645 = vmul.f32 %v4488, %v482
        %v4646 = vmul.f32 %v4492, %v483
        %v4647 = vmul.f32 %v4496, %v484
        %v4648 = vmul.f32 %v4500, %v485
        %v4649 = vmul.f32 %v4504, %v486
        %v4650 = vmul.f32 %v4508, %v487
        %v4651 = vmul.f32 %v4512, %v488
        %v4652 = vmul.f32 %v4516, %v489
        %v4653 = vmul.f32 %v4520, %v490
        %v4654 = vmul.f32 %v4524, %v491
        %v4655 = vmul.f32 %v4528, %v492
        %v4656 = vmul.f32 %v4532, %v493
        %v4657 = vmul.f32 %v4536, %v494
        %v4658 = vmul.f32 %v4540, %v495
        %v4659 = vmul.f32 %v4544, %v496
        %v4660 = vmul.f32 %v4548, %v497
        %v4661 = vmul.f32 %v4552, %v498
        %v4662 = vmul.f32 %v4556, %v499
        %v4663 = vmul.f32 %v4560, %v500
        %v4664 = vmul.f32 %v4564, %v501
        %v4665 = vmul.f32 %v4568, %v502
        %v4666 = vmul.f32 %v4572, %v503
        %v4667 = vmul.f32 %v4576, %v504
        %v4668 = vmul.f32 %v4580, %v505
        %v4669 = vmul.f32 %v4584, %v506
        %v4670 = vmul.f32 %v4588, %v507
        %v4671 = vmul.f32 %v4592, %v508
        %v4672 = vmul.f32 %v4596, %v509
        %v4673 = vmul.f32 %v4600, %v510
        %v4674 = vmul.f32 %v4604, %v511
        %v4675 = vmul.f32 %v4608, %v512
        %v4676 = vmul.f32 %v4612, %v513
        %v4677 = vadd.f32 %v4381, %v4645
        %v4678 = vadd.f32 %v4382, %v4646
        %v4679 = vadd.f32 %v4383, %v4647
        %v4680 = vadd.f32 %v4384, %v4648
        %v4681 = vadd.f32 %v4385, %v4649
        %v4682 = vadd.f32 %v4386, %v4650
        %v4683 = vadd.f32 %v4387, %v4651
        %v4684 = vadd.f32 %v4388, %v4652
        %v4685 = vadd.f32 %v4389, %v4653
        %v4686 = vadd.f32 %v4390, %v4654
        %v4687 = vadd.f32 %v4391, %v4655
        %v4688 = vadd.f32 %v4392, %v4656
        %v4689 = vadd.f32 %v4393, %v4657
        %v4690 = vadd.f32 %v4394, %v4658
        %v4691 = vadd.f32 %v4395, %v4659
        %v4692 = vadd.f32 %v4396, %v4660
        %v4693 = vadd.f32 %v4397, %v4661
        %v4694 = vadd.f32 %v4398, %v4662
        %v4695 = vadd.f32 %v4399, %v4663
        %v4696 = vadd.f32 %v4400, %v4664
        %v4697 = vadd.f32 %v4401, %v4665
        %v4698 = vadd.f32 %v4402, %v4666
        %v4699 = vadd.f32 %v4403, %v4667
        %v4700 = vadd.f32 %v4404, %v4668
        %v4701 = vadd.f32 %v4405, %v4669
        %v4702 = vadd.f32 %v4406, %v4670
        %v4703 = vadd.f32 %v4407, %v4671
        %v4704 = vadd.f32 %v4408, %v4672
        %v4705 = vadd.f32 %v4409, %v4673
        %v4706 = vadd.f32 %v4410, %v4674
        %v4707 = vadd.f32 %v4411, %v4675
        %v4708 = vadd.f32 %v4412, %v4676
        %v4713 = vcombine.low %v2216, %v2218
        %v4714 = vcombine.high %v2216, %v2218
        %v4715 = vcombine.low %v2257, %v2259
        %v4716 = vcombine.high %v2257, %v2259
        %v4718 = vunpack.c.l.s4 1966171168
        %v4719 = vunpack.c.0.s8 %v4718
        %v4720 = vlaneseq
        %v4721 = vshrl.u32 %v4720, 7
        %v4722 = vsub.s32 %v4719, %v4721
        %v4723 = vrot.slane %v4713, %v4722
        %v4725 = vunpack.c.l.s4 1966171168
        %v4726 = vunpack.c.0.s8 %v4725
        %v4727 = vlaneseq
        %v4728 = vshrl.u32 %v4727, 7
        %v4729 = vsub.s32 %v4726, %v4728
        %v4730 = vrot.slane %v4714, %v4729
        %v4732 = vunpack.c.l.s4 1966171168
        %v4733 = vunpack.c.0.s8 %v4732
        %v4734 = vlaneseq
        %v4735 = vshrl.u32 %v4734, 7
        %v4736 = vsub.s32 %v4733, %v4735
        %v4737 = vrot.slane %v4715, %v4736
        %v4739 = vunpack.c.l.s4 1966171168
        %v4740 = vunpack.c.0.s8 %v4739
        %v4741 = vlaneseq
        %v4742 = vshrl.u32 %v4741, 7
        %v4743 = vsub.s32 %v4740, %v4742
        %v4744 = vrot.slane %v4716, %v4743
        %v4745 = vcombine.low %v4723, %v4737
        %v4746 = vcombine.high %v4723, %v4737
        %v4747 = vcombine.low %v4730, %v4744
        %v4748 = vcombine.high %v4730, %v4744
        %v4750 = vunpack.c.l.s4 1966171168
        %v4751 = vunpack.c.0.s8 %v4750
        %v4752 = vlaneseq
        %v4753 = vshrl.u32 %v4752, 7
        %v4754 = vsub.s32 %v4751, %v4753
        %v4755 = vrot.slane %v4745, %v4754
        %v4757 = vunpack.c.l.s4 1966171168
        %v4758 = vunpack.c.0.s8 %v4757
        %v4759 = vlaneseq
        %v4760 = vshrl.u32 %v4759, 7
        %v4761 = vsub.s32 %v4758, %v4760
        %v4762 = vrot.slane %v4747, %v4761
        %v4764 = vunpack.c.l.s4 1966171168
        %v4765 = vunpack.c.0.s8 %v4764
        %v4766 = vlaneseq
        %v4767 = vshrl.u32 %v4766, 7
        %v4768 = vsub.s32 %v4765, %v4767
        %v4769 = vrot.slane %v4746, %v4768
        %v4771 = vunpack.c.l.s4 1966171168
        %v4772 = vunpack.c.0.s8 %v4771
        %v4773 = vlaneseq
        %v4774 = vshrl.u32 %v4773, 7
        %v4775 = vsub.s32 %v4772, %v4774
        %v4776 = vrot.slane %v4748, %v4775
        %v4777 = vcombine.high %v4755, %v4755
        %v4778 = vcombine.high %v4762, %v4762
        %v4779 = vcombine.high %v4769, %v4769
        %v4780 = vcombine.high %v4776, %v4776
        %v4781 = vlaneseq
        %v4782 = vshrl.u32 %v4781, 7
        %v4783 = vsub.s32 0, %v4782
        %v4784 = vrot.slane %v4755, %v4783
        %v4785 = vlaneseq
        %v4786 = vshrl.u32 %v4785, 7
        %v4787 = vsub.s32 1, %v4786
        %v4788 = vrot.slane %v4755, %v4787
        %v4789 = vlaneseq
        %v4790 = vshrl.u32 %v4789, 7
        %v4791 = vsub.s32 2, %v4790
        %v4792 = vrot.slane %v4755, %v4791
        %v4793 = vlaneseq
        %v4794 = vshrl.u32 %v4793, 7
        %v4795 = vsub.s32 3, %v4794
        %v4796 = vrot.slane %v4755, %v4795
        %v4797 = vlaneseq
        %v4798 = vshrl.u32 %v4797, 7
        %v4799 = vsub.s32 0, %v4798
        %v4800 = vrot.slane %v4769, %v4799
        %v4801 = vlaneseq
        %v4802 = vshrl.u32 %v4801, 7
        %v4803 = vsub.s32 1, %v4802
        %v4804 = vrot.slane %v4769, %v4803
        %v4805 = vlaneseq
        %v4806 = vshrl.u32 %v4805, 7
        %v4807 = vsub.s32 2, %v4806
        %v4808 = vrot.slane %v4769, %v4807
        %v4809 = vlaneseq
        %v4810 = vshrl.u32 %v4809, 7
        %v4811 = vsub.s32 3, %v4810
        %v4812 = vrot.slane %v4769, %v4811
        %v4813 = vlaneseq
        %v4814 = vshrl.u32 %v4813, 7
        %v4815 = vsub.s32 0, %v4814
        %v4816 = vrot.slane %v4777, %v4815
        %v4817 = vlaneseq
        %v4818 = vshrl.u32 %v4817, 7
        %v4819 = vsub.s32 1, %v4818
        %v4820 = vrot.slane %v4777, %v4819
        %v4821 = vlaneseq
        %v4822 = vshrl.u32 %v4821, 7
        %v4823 = vsub.s32 2, %v4822
        %v4824 = vrot.slane %v4777, %v4823
        %v4825 = vlaneseq
        %v4826 = vshrl.u32 %v4825, 7
        %v4827 = vsub.s32 3, %v4826
        %v4828 = vrot.slane %v4777, %v4827
        %v4829 = vlaneseq
        %v4830 = vshrl.u32 %v4829, 7
        %v4831 = vsub.s32 0, %v4830
        %v4832 = vrot.slane %v4779, %v4831
        %v4833 = vlaneseq
        %v4834 = vshrl.u32 %v4833, 7
        %v4835 = vsub.s32 1, %v4834
        %v4836 = vrot.slane %v4779, %v4835
        %v4837 = vlaneseq
        %v4838 = vshrl.u32 %v4837, 7
        %v4839 = vsub.s32 2, %v4838
        %v4840 = vrot.slane %v4779, %v4839
        %v4841 = vlaneseq
        %v4842 = vshrl.u32 %v4841, 7
        %v4843 = vsub.s32 3, %v4842
        %v4844 = vrot.slane %v4779, %v4843
        %v4845 = vlaneseq
        %v4846 = vshrl.u32 %v4845, 7
        %v4847 = vsub.s32 0, %v4846
        %v4848 = vrot.slane %v4762, %v4847
        %v4849 = vlaneseq
        %v4850 = vshrl.u32 %v4849, 7
        %v4851 = vsub.s32 1, %v4850
        %v4852 = vrot.slane %v4762, %v4851
        %v4853 = vlaneseq
        %v4854 = vshrl.u32 %v4853, 7
        %v4855 = vsub.s32 2, %v4854
        %v4856 = vrot.slane %v4762, %v4855
        %v4857 = vlaneseq
        %v4858 = vshrl.u32 %v4857, 7
        %v4859 = vsub.s32 3, %v4858
        %v4860 = vrot.slane %v4762, %v4859
        %v4861 = vlaneseq
        %v4862 = vshrl.u32 %v4861, 7
        %v4863 = vsub.s32 0, %v4862
        %v4864 = vrot.slane %v4776, %v4863
        %v4865 = vlaneseq
        %v4866 = vshrl.u32 %v4865, 7
        %v4867 = vsub.s32 1, %v4866
        %v4868 = vrot.slane %v4776, %v4867
        %v4869 = vlaneseq
        %v4870 = vshrl.u32 %v4869, 7
        %v4871 = vsub.s32 2, %v4870
        %v4872 = vrot.slane %v4776, %v4871
        %v4873 = vlaneseq
        %v4874 = vshrl.u32 %v4873, 7
        %v4875 = vsub.s32 3, %v4874
        %v4876 = vrot.slane %v4776, %v4875
        %v4877 = vlaneseq
        %v4878 = vshrl.u32 %v4877, 7
        %v4879 = vsub.s32 0, %v4878
        %v4880 = vrot.slane %v4778, %v4879
        %v4881 = vlaneseq
        %v4882 = vshrl.u32 %v4881, 7
        %v4883 = vsub.s32 1, %v4882
        %v4884 = vrot.slane %v4778, %v4883
        %v4885 = vlaneseq
        %v4886 = vshrl.u32 %v4885, 7
        %v4887 = vsub.s32 2, %v4886
        %v4888 = vrot.slane %v4778, %v4887
        %v4889 = vlaneseq
        %v4890 = vshrl.u32 %v4889, 7
        %v4891 = vsub.s32 3, %v4890
        %v4892 = vrot.slane %v4778, %v4891
        %v4893 = vlaneseq
        %v4894 = vshrl.u32 %v4893, 7
        %v4895 = vsub.s32 0, %v4894
        %v4896 = vrot.slane %v4780, %v4895
        %v4897 = vlaneseq
        %v4898 = vshrl.u32 %v4897, 7
        %v4899 = vsub.s32 1, %v4898
        %v4900 = vrot.slane %v4780, %v4899
        %v4901 = vlaneseq
        %v4902 = vshrl.u32 %v4901, 7
        %v4903 = vsub.s32 2, %v4902
        %v4904 = vrot.slane %v4780, %v4903
        %v4905 = vlaneseq
        %v4906 = vshrl.u32 %v4905, 7
        %v4907 = vsub.s32 3, %v4906
        %v4908 = vrot.slane %v4780, %v4907
        %v4941 = vmul.f32 %v4784, %v2405
        %v4942 = vmul.f32 %v4788, %v2406
        %v4943 = vmul.f32 %v4792, %v2407
        %v4944 = vmul.f32 %v4796, %v2408
        %v4945 = vmul.f32 %v4800, %v2409
        %v4946 = vmul.f32 %v4804, %v2410
        %v4947 = vmul.f32 %v4808, %v2411
        %v4948 = vmul.f32 %v4812, %v2412
        %v4949 = vmul.f32 %v4816, %v2413
        %v4950 = vmul.f32 %v4820, %v2414
        %v4951 = vmul.f32 %v4824, %v2415
        %v4952 = vmul.f32 %v4828, %v2416
        %v4953 = vmul.f32 %v4832, %v2417
        %v4954 = vmul.f32 %v4836, %v2418
        %v4955 = vmul.f32 %v4840, %v2419
        %v4956 = vmul.f32 %v4844, %v2420
        %v4957 = vmul.f32 %v4848, %v2421
        %v4958 = vmul.f32 %v4852, %v2422
        %v4959 = vmul.f32 %v4856, %v2423
        %v4960 = vmul.f32 %v4860, %v2424
        %v4961 = vmul.f32 %v4864, %v2425
        %v4962 = vmul.f32 %v4868, %v2426
        %v4963 = vmul.f32 %v4872, %v2427
        %v4964 = vmul.f32 %v4876, %v2428
        %v4965 = vmul.f32 %v4880, %v2429
        %v4966 = vmul.f32 %v4884, %v2430
        %v4967 = vmul.f32 %v4888, %v2431
        %v4968 = vmul.f32 %v4892, %v2432
        %v4969 = vmul.f32 %v4896, %v2433
        %v4970 = vmul.f32 %v4900, %v2434
        %v4971 = vmul.f32 %v4904, %v2435
        %v4972 = vmul.f32 %v4908, %v2436
        %v4973 = vadd.f32 %v4677, %v4941
        %v4974 = vadd.f32 %v4678, %v4942
        %v4975 = vadd.f32 %v4679, %v4943
        %v4976 = vadd.f32 %v4680, %v4944
        %v4977 = vadd.f32 %v4681, %v4945
        %v4978 = vadd.f32 %v4682, %v4946
        %v4979 = vadd.f32 %v4683, %v4947
        %v4980 = vadd.f32 %v4684, %v4948
        %v4981 = vadd.f32 %v4685, %v4949
        %v4982 = vadd.f32 %v4686, %v4950
        %v4983 = vadd.f32 %v4687, %v4951
        %v4984 = vadd.f32 %v4688, %v4952
        %v4985 = vadd.f32 %v4689, %v4953
        %v4986 = vadd.f32 %v4690, %v4954
        %v4987 = vadd.f32 %v4691, %v4955
        %v4988 = vadd.f32 %v4692, %v4956
        %v4989 = vadd.f32 %v4693, %v4957
        %v4990 = vadd.f32 %v4694, %v4958
        %v4991 = vadd.f32 %v4695, %v4959
        %v4992 = vadd.f32 %v4696, %v4960
        %v4993 = vadd.f32 %v4697, %v4961
        %v4994 = vadd.f32 %v4698, %v4962
        %v4995 = vadd.f32 %v4699, %v4963
        %v4996 = vadd.f32 %v4700, %v4964
        %v4997 = vadd.f32 %v4701, %v4965
        %v4998 = vadd.f32 %v4702, %v4966
        %v4999 = vadd.f32 %v4703, %v4967
        %v5000 = vadd.f32 %v4704, %v4968
        %v5001 = vadd.f32 %v4705, %v4969
        %v5002 = vadd.f32 %v4706, %v4970
        %v5003 = vadd.f32 %v4707, %v4971
        %v5004 = vadd.f32 %v4708, %v4972
        %v5005 = vlaneseq
        %v5006 = vshrl.u32 %v5005, 7
        %vm5007 = vcmp.ge.s32.totalorder %v5006, 1
        %v5008 = vrot.slane %v3261, 7
        %v5009 = vrot.slane %v3262, 7
        %v5010 = vrot.slane %v3263, 7
        %v5011 = vrot.slane %v3264, 7
        %v5012 = vrot.slane %v3265, 7
        %v5013 = vrot.slane %v3266, 7
        %v5014 = vrot.slane %v3267, 7
        %v5015 = vrot.slane %v3268, 7
        %v5016 = vrot.slane %v3269, 7
        %v5017 = vrot.slane %v3270, 7
        %v5018 = vrot.slane %v3271, 7
        %v5019 = vrot.slane %v3272, 7
        %v5020 = vrot.slane %v3273, 7
        %v5021 = vrot.slane %v3274, 7
        %v5022 = vrot.slane %v3275, 7
        %v5023 = vrot.slane %v3276, 7
        %v5024 = vrot.slane %v3277, 7
        %v5025 = vrot.slane %v3278, 7
        %v5026 = vrot.slane %v3279, 7
        %v5027 = vrot.slane %v3280, 7
        %v5028 = vrot.slane %v3281, 7
        %v5029 = vrot.slane %v3282, 7
        %v5030 = vrot.slane %v3283, 7
        %v5031 = vrot.slane %v3284, 7
        %v5032 = vrot.slane %v3285, 7
        %v5033 = vrot.slane %v3286, 7
        %v5034 = vrot.slane %v3287, 7
        %v5035 = vrot.slane %v3288, 7
        %v5036 = vrot.slane %v3289, 7
        %v5037 = vrot.slane %v3290, 7
        %v5038 = vrot.slane %v3291, 7
        %v5039 = vrot.slane %v3292, 7
        %vm5040 = vcmp.lt.s32.totalorder %v5006, 1
        %v5041 = vsel %vm5040, %v5032, %v5036
        %v5042 = vsel %vm5040, %v5033, %v5037
        %v5043 = vsel %vm5040, %v5034, %v5038
        %v5044 = vsel %vm5040, %v5035, %v5039
        %v5045 = vsel %vm5040, %v5028, %v5032
        %v5046 = vsel %vm5040, %v5029, %v5033
        %v5047 = vsel %vm5040, %v5030, %v5034
        %v5048 = vsel %vm5040, %v5031, %v5035
        %v5049 = vsel %vm5040, %v5024, %v5028
        %v5050 = vsel %vm5040, %v5025, %v5029
        %v5051 = vsel %vm5040, %v5026, %v5030
        %v5052 = vsel %vm5040, %v5027, %v5031
        %v5053 = vsel %vm5040, %v5020, %v5024
        %v5054 = vsel %vm5040, %v5021, %v5025
        %v5055 = vsel %vm5040, %v5022, %v5026
        %v5056 = vsel %vm5040, %v5023, %v5027
        %v5057 = vsel %vm5040, %v5016, %v5020
        %v5058 = vsel %vm5040, %v5017, %v5021
        %v5059 = vsel %vm5040, %v5018, %v5022
        %v5060 = vsel %vm5040, %v5019, %v5023
        %v5061 = vsel %vm5040, %v5012, %v5016
        %v5062 = vsel %vm5040, %v5013, %v5017
        %v5063 = vsel %vm5040, %v5014, %v5018
        %v5064 = vsel %vm5040, %v5015, %v5019
        %v5065 = vsel %vm5040, %v5008, %v5012
        %v5066 = vsel %vm5040, %v5009, %v5013
        %v5067 = vsel %vm5040, %v5010, %v5014
        %v5068 = vsel %vm5040, %v5011, %v5015
        %v5069 = vsel %vm5040, %v5036, %v5008
        %v5070 = vsel %vm5040, %v5037, %v5009
        %v5071 = vsel %vm5040, %v5038, %v5010
        %v5072 = vsel %vm5040, %v5039, %v5011
        %v5073 = vsel %vm5007, %v5069, 0.0
        %v5074 = vsel %vm5007, %v5070, 0.0
        %v5075 = vsel %vm5007, %v5071, 0.0
        %v5076 = vsel %vm5007, %v5072, 0.0
        %v5077 = vsel %vm5007, %v5065, 0.0
        %v5078 = vsel %vm5007, %v5066, 0.0
        %v5079 = vsel %vm5007, %v5067, 0.0
        %v5080 = vsel %vm5007, %v5068, 0.0
        %v5081 = vsel %vm5007, %v5061, 0.0
        %v5082 = vsel %vm5007, %v5062, 0.0
        %v5083 = vsel %vm5007, %v5063, 0.0
        %v5084 = vsel %vm5007, %v5064, 0.0
        %v5085 = vsel %vm5007, %v5057, 0.0
        %v5086 = vsel %vm5007, %v5058, 0.0
        %v5087 = vsel %vm5007, %v5059, 0.0
        %v5088 = vsel %vm5007, %v5060, 0.0
        %v5089 = vsel %vm5007, %v5053, 0.0
        %v5090 = vsel %vm5007, %v5054, 0.0
        %v5091 = vsel %vm5007, %v5055, 0.0
        %v5092 = vsel %vm5007, %v5056, 0.0
        %v5093 = vsel %vm5007, %v5049, 0.0
        %v5094 = vsel %vm5007, %v5050, 0.0
        %v5095 = vsel %vm5007, %v5051, 0.0
        %v5096 = vsel %vm5007, %v5052, 0.0
        %v5097 = vsel %vm5007, %v5045, 0.0
        %v5098 = vsel %vm5007, %v5046, 0.0
        %v5099 = vsel %vm5007, %v5047, 0.0
        %v5100 = vsel %vm5007, %v5048, 0.0
        %v5101 = vsel %vm5007, %v5041, 0.0
        %v5102 = vsel %vm5007, %v5042, 0.0
        %v5103 = vsel %vm5007, %v5043, 0.0
        %v5104 = vsel %vm5007, %v5044, 0.0
        %vm5105 = vcmp.le.s32.totalorder %v5006, 6
        %v5106 = vrot.slane %v4973, 1
        %v5107 = vrot.slane %v4974, 1
        %v5108 = vrot.slane %v4975, 1
        %v5109 = vrot.slane %v4976, 1
        %v5110 = vrot.slane %v4977, 1
        %v5111 = vrot.slane %v4978, 1
        %v5112 = vrot.slane %v4979, 1
        %v5113 = vrot.slane %v4980, 1
        %v5114 = vrot.slane %v4981, 1
        %v5115 = vrot.slane %v4982, 1
        %v5116 = vrot.slane %v4983, 1
        %v5117 = vrot.slane %v4984, 1
        %v5118 = vrot.slane %v4985, 1
        %v5119 = vrot.slane %v4986, 1
        %v5120 = vrot.slane %v4987, 1
        %v5121 = vrot.slane %v4988, 1
        %v5122 = vrot.slane %v4989, 1
        %v5123 = vrot.slane %v4990, 1
        %v5124 = vrot.slane %v4991, 1
        %v5125 = vrot.slane %v4992, 1
        %v5126 = vrot.slane %v4993, 1
        %v5127 = vrot.slane %v4994, 1
        %v5128 = vrot.slane %v4995, 1
        %v5129 = vrot.slane %v4996, 1
        %v5130 = vrot.slane %v4997, 1
        %v5131 = vrot.slane %v4998, 1
        %v5132 = vrot.slane %v4999, 1
        %v5133 = vrot.slane %v5000, 1
        %v5134 = vrot.slane %v5001, 1
        %v5135 = vrot.slane %v5002, 1
        %v5136 = vrot.slane %v5003, 1
        %v5137 = vrot.slane %v5004, 1
        %vm5138 = vcmp.lt.s32.totalorder %v5006, 7
        %v5139 = vsel %vm5138, %v5130, %v5134
        %v5140 = vsel %vm5138, %v5131, %v5135
        %v5141 = vsel %vm5138, %v5132, %v5136
        %v5142 = vsel %vm5138, %v5133, %v5137
        %v5143 = vsel %vm5138, %v5126, %v5130
        %v5144 = vsel %vm5138, %v5127, %v5131
        %v5145 = vsel %vm5138, %v5128, %v5132
        %v5146 = vsel %vm5138, %v5129, %v5133
        %v5147 = vsel %vm5138, %v5122, %v5126
        %v5148 = vsel %vm5138, %v5123, %v5127
        %v5149 = vsel %vm5138, %v5124, %v5128
        %v5150 = vsel %vm5138, %v5125, %v5129
        %v5151 = vsel %vm5138, %v5118, %v5122
        %v5152 = vsel %vm5138, %v5119, %v5123
        %v5153 = vsel %vm5138, %v5120, %v5124
        %v5154 = vsel %vm5138, %v5121, %v5125
        %v5155 = vsel %vm5138, %v5114, %v5118
        %v5156 = vsel %vm5138, %v5115, %v5119
        %v5157 = vsel %vm5138, %v5116, %v5120
        %v5158 = vsel %vm5138, %v5117, %v5121
        %v5159 = vsel %vm5138, %v5110, %v5114
        %v5160 = vsel %vm5138, %v5111, %v5115
        %v5161 = vsel %vm5138, %v5112, %v5116
        %v5162 = vsel %vm5138, %v5113, %v5117
        %v5163 = vsel %vm5138, %v5106, %v5110
        %v5164 = vsel %vm5138, %v5107, %v5111
        %v5165 = vsel %vm5138, %v5108, %v5112
        %v5166 = vsel %vm5138, %v5109, %v5113
        %v5167 = vsel %vm5138, %v5134, %v5106
        %v5168 = vsel %vm5138, %v5135, %v5107
        %v5169 = vsel %vm5138, %v5136, %v5108
        %v5170 = vsel %vm5138, %v5137, %v5109
        %v5171 = vsel %vm5105, %v5163, 0.0
        %v5172 = vsel %vm5105, %v5164, 0.0
        %v5173 = vsel %vm5105, %v5165, 0.0
        %v5174 = vsel %vm5105, %v5166, 0.0
        %v5175 = vsel %vm5105, %v5159, 0.0
        %v5176 = vsel %vm5105, %v5160, 0.0
        %v5177 = vsel %vm5105, %v5161, 0.0
        %v5178 = vsel %vm5105, %v5162, 0.0
        %v5179 = vsel %vm5105, %v5155, 0.0
        %v5180 = vsel %vm5105, %v5156, 0.0
        %v5181 = vsel %vm5105, %v5157, 0.0
        %v5182 = vsel %vm5105, %v5158, 0.0
        %v5183 = vsel %vm5105, %v5151, 0.0
        %v5184 = vsel %vm5105, %v5152, 0.0
        %v5185 = vsel %vm5105, %v5153, 0.0
        %v5186 = vsel %vm5105, %v5154, 0.0
        %v5187 = vsel %vm5105, %v5147, 0.0
        %v5188 = vsel %vm5105, %v5148, 0.0
        %v5189 = vsel %vm5105, %v5149, 0.0
        %v5190 = vsel %vm5105, %v5150, 0.0
        %v5191 = vsel %vm5105, %v5143, 0.0
        %v5192 = vsel %vm5105, %v5144, 0.0
        %v5193 = vsel %vm5105, %v5145, 0.0
        %v5194 = vsel %vm5105, %v5146, 0.0
        %v5195 = vsel %vm5105, %v5139, 0.0
        %v5196 = vsel %vm5105, %v5140, 0.0
        %v5197 = vsel %vm5105, %v5141, 0.0
        %v5198 = vsel %vm5105, %v5142, 0.0
        %v5199 = vsel %vm5105, %v5167, 0.0
        %v5200 = vsel %vm5105, %v5168, 0.0
        %v5201 = vsel %vm5105, %v5169, 0.0
        %v5202 = vsel %vm5105, %v5170, 0.0
        %v5203 = vadd.f32 %v4117, %v5073
        %v5204 = vadd.f32 %v4118, %v5074
        %v5205 = vadd.f32 %v4119, %v5075
        %v5206 = vadd.f32 %v4120, %v5076
        %v5207 = vadd.f32 %v4121, %v5077
        %v5208 = vadd.f32 %v4122, %v5078
        %v5209 = vadd.f32 %v4123, %v5079
        %v5210 = vadd.f32 %v4124, %v5080
        %v5211 = vadd.f32 %v4125, %v5081
        %v5212 = vadd.f32 %v4126, %v5082
        %v5213 = vadd.f32 %v4127, %v5083
        %v5214 = vadd.f32 %v4128, %v5084
        %v5215 = vadd.f32 %v4129, %v5085
        %v5216 = vadd.f32 %v4130, %v5086
        %v5217 = vadd.f32 %v4131, %v5087
        %v5218 = vadd.f32 %v4132, %v5088
        %v5219 = vadd.f32 %v4133, %v5089
        %v5220 = vadd.f32 %v4134, %v5090
        %v5221 = vadd.f32 %v4135, %v5091
        %v5222 = vadd.f32 %v4136, %v5092
        %v5223 = vadd.f32 %v4137, %v5093
        %v5224 = vadd.f32 %v4138, %v5094
        %v5225 = vadd.f32 %v4139, %v5095
        %v5226 = vadd.f32 %v4140, %v5096
        %v5227 = vadd.f32 %v4141, %v5097
        %v5228 = vadd.f32 %v4142, %v5098
        %v5229 = vadd.f32 %v4143, %v5099
        %v5230 = vadd.f32 %v4144, %v5100
        %v5231 = vadd.f32 %v4145, %v5101
        %v5232 = vadd.f32 %v4146, %v5102
        %v5233 = vadd.f32 %v4147, %v5103
        %v5234 = vadd.f32 %v4148, %v5104
        %v5235 = vadd.f32 %v5203, %v5171
        %v5236 = vadd.f32 %v5204, %v5172
        %v5237 = vadd.f32 %v5205, %v5173
        %v5238 = vadd.f32 %v5206, %v5174
        %v5239 = vadd.f32 %v5207, %v5175
        %v5240 = vadd.f32 %v5208, %v5176
        %v5241 = vadd.f32 %v5209, %v5177
        %v5242 = vadd.f32 %v5210, %v5178
        %v5243 = vadd.f32 %v5211, %v5179
        %v5244 = vadd.f32 %v5212, %v5180
        %v5245 = vadd.f32 %v5213, %v5181
        %v5246 = vadd.f32 %v5214, %v5182
        %v5247 = vadd.f32 %v5215, %v5183
        %v5248 = vadd.f32 %v5216, %v5184
        %v5249 = vadd.f32 %v5217, %v5185
        %v5250 = vadd.f32 %v5218, %v5186
        %v5251 = vadd.f32 %v5219, %v5187
        %v5252 = vadd.f32 %v5220, %v5188
        %v5253 = vadd.f32 %v5221, %v5189
        %v5254 = vadd.f32 %v5222, %v5190
        %v5255 = vadd.f32 %v5223, %v5191
        %v5256 = vadd.f32 %v5224, %v5192
        %v5257 = vadd.f32 %v5225, %v5193
        %v5258 = vadd.f32 %v5226, %v5194
        %v5259 = vadd.f32 %v5227, %v5195
        %v5260 = vadd.f32 %v5228, %v5196
        %v5261 = vadd.f32 %v5229, %v5197
        %v5262 = vadd.f32 %v5230, %v5198
        %v5263 = vadd.f32 %v5231, %v5199
        %v5264 = vadd.f32 %v5232, %v5200
        %v5265 = vadd.f32 %v5233, %v5201
        %v5266 = vadd.f32 %v5234, %v5202
        %v5267 = vmul.f32 %v5235, 0.1
        %v5268 = vmul.f32 %v5236, 0.1
        %v5269 = vmul.f32 %v5237, 0.1
        %v5270 = vmul.f32 %v5238, 0.1
        %v5271 = vmul.f32 %v5239, 0.1
        %v5272 = vmul.f32 %v5240, 0.1
        %v5273 = vmul.f32 %v5241, 0.1
        %v5274 = vmul.f32 %v5242, 0.1
        %v5275 = vmul.f32 %v5243, 0.1
        %v5276 = vmul.f32 %v5244, 0.1
        %v5277 = vmul.f32 %v5245, 0.1
        %v5278 = vmul.f32 %v5246, 0.1
        %v5279 = vmul.f32 %v5247, 0.1
        %v5280 = vmul.f32 %v5248, 0.1
        %v5281 = vmul.f32 %v5249, 0.1
        %v5282 = vmul.f32 %v5250, 0.1
        %v5283 = vmul.f32 %v5251, 0.1
        %v5284 = vmul.f32 %v5252, 0.1
        %v5285 = vmul.f32 %v5253, 0.1
        %v5286 = vmul.f32 %v5254, 0.1
        %v5287 = vmul.f32 %v5255, 0.1
        %v5288 = vmul.f32 %v5256, 0.1
        %v5289 = vmul.f32 %v5257, 0.1
        %v5290 = vmul.f32 %v5258, 0.1
        %v5291 = vmul.f32 %v5259, 0.1
        %v5292 = vmul.f32 %v5260, 0.1
        %v5293 = vmul.f32 %v5261, 0.1
        %v5294 = vmul.f32 %v5262, 0.1
        %v5295 = vmul.f32 %v5263, 0.1
        %v5296 = vmul.f32 %v5264, 0.1
        %v5297 = vmul.f32 %v5265, 0.1
        %v5298 = vmul.f32 %v5266, 0.1
        %v5299 = vmax.f32 %v5235, %v5267
        %v5300 = vmax.f32 %v5236, %v5268
        %v5301 = vmax.f32 %v5237, %v5269
        %v5302 = vmax.f32 %v5238, %v5270
        %v5303 = vmax.f32 %v5239, %v5271
        %v5304 = vmax.f32 %v5240, %v5272
        %v5305 = vmax.f32 %v5241, %v5273
        %v5306 = vmax.f32 %v5242, %v5274
        %v5307 = vmax.f32 %v5243, %v5275
        %v5308 = vmax.f32 %v5244, %v5276
        %v5309 = vmax.f32 %v5245, %v5277
        %v5310 = vmax.f32 %v5246, %v5278
        %v5311 = vmax.f32 %v5247, %v5279
        %v5312 = vmax.f32 %v5248, %v5280
        %v5313 = vmax.f32 %v5249, %v5281
        %v5314 = vmax.f32 %v5250, %v5282
        %v5315 = vmax.f32 %v5251, %v5283
        %v5316 = vmax.f32 %v5252, %v5284
        %v5317 = vmax.f32 %v5253, %v5285
        %v5318 = vmax.f32 %v5254, %v5286
        %v5319 = vmax.f32 %v5255, %v5287
        %v5320 = vmax.f32 %v5256, %v5288
        %v5321 = vmax.f32 %v5257, %v5289
        %v5322 = vmax.f32 %v5258, %v5290
        %v5323 = vmax.f32 %v5259, %v5291
        %v5324 = vmax.f32 %v5260, %v5292
        %v5325 = vmax.f32 %v5261, %v5293
        %v5326 = vmax.f32 %v5262, %v5294
        %v5327 = vmax.f32 %v5263, %v5295
        %v5328 = vmax.f32 %v5264, %v5296
        %v5329 = vmax.f32 %v5265, %v5297
        %v5330 = vmax.f32 %v5266, %v5298
        %v5331 = vpack.c.bf16 %v5303, %v5299
        %v5332 = vpack.c.bf16 %v5304, %v5300
        %v5333 = vpack.c.bf16 %v5305, %v5301
        %v5334 = vpack.c.bf16 %v5306, %v5302
        %v5335 = vpack.c.bf16 %v5311, %v5307
        %v5336 = vpack.c.bf16 %v5312, %v5308
        %v5337 = vpack.c.bf16 %v5313, %v5309
        %v5338 = vpack.c.bf16 %v5314, %v5310
        %v5339 = vpack.c.bf16 %v5319, %v5315
        %v5340 = vpack.c.bf16 %v5320, %v5316
        %v5341 = vpack.c.bf16 %v5321, %v5317
        %v5342 = vpack.c.bf16 %v5322, %v5318
        %v5343 = vpack.c.bf16 %v5327, %v5323
        %v5344 = vpack.c.bf16 %v5328, %v5324
        %v5345 = vpack.c.bf16 %v5329, %v5325
        %v5346 = vpack.c.bf16 %v5330, %v5326
        %v5347 = vld [vmem:[%s4] sm:$0xf]
        %v5348 = vld [vmem:[%s4 + $0x4] sm:$0xf]
        %v5349 = vld [vmem:[%s4 + $0x8] sm:$0xf]
        %v5350 = vld [vmem:[%s4 + $0xc] sm:$0xf]
        %v5351 = vld [vmem:[%s4 + $0x10] sm:$0xf]
        %v5352 = vld [vmem:[%s4 + $0x14] sm:$0xf]
        %v5353 = vld [vmem:[%s4 + $0x18] sm:$0xf]
        %v5354 = vld [vmem:[%s4 + $0x1c] sm:$0xf]
        %v5355 = vld [vmem:[%s4 + $0x20] sm:$0xf]
        %v5356 = vld [vmem:[%s4 + $0x24] sm:$0xf]
        %v5357 = vld [vmem:[%s4 + $0x28] sm:$0xf]
        %v5358 = vld [vmem:[%s4 + $0x2c] sm:$0xf]
        %v5359 = vld [vmem:[%s4 + $0x30] sm:$0xf]
        %v5360 = vld [vmem:[%s4 + $0x34] sm:$0xf]
        %v5361 = vld [vmem:[%s4 + $0x38] sm:$0xf]
        %v5362 = vld [vmem:[%s4 + $0x3c] sm:$0xf]
        %v5379 = vunpack.c.l.b16 %v5347
        %v5380 = vunpack.c.l.b16 %v5348
        %v5381 = vunpack.c.l.b16 %v5349
        %v5382 = vunpack.c.l.b16 %v5350
        %v5383 = vunpack.c.l.b16 %v5351
        %v5384 = vunpack.c.l.b16 %v5352
        %v5385 = vunpack.c.l.b16 %v5353
        %v5386 = vunpack.c.l.b16 %v5354
        %v5387 = vunpack.c.l.b16 %v5355
        %v5388 = vunpack.c.l.b16 %v5356
        %v5389 = vunpack.c.l.b16 %v5357
        %v5390 = vunpack.c.l.b16 %v5358
        %v5391 = vunpack.c.l.b16 %v5359
        %v5392 = vunpack.c.l.b16 %v5360
        %v5393 = vunpack.c.l.b16 %v5361
        %v5394 = vunpack.c.l.b16 %v5362
        %v5395 = vpack.c.b16 %v5380, %v5379
        %v5396 = vpack.c.b16 %v5382, %v5381
        %v5397 = vpack.c.b16 %v5384, %v5383
        %v5398 = vpack.c.b16 %v5386, %v5385
        %v5399 = vpack.c.b16 %v5388, %v5387
        %v5400 = vpack.c.b16 %v5390, %v5389
        %v5401 = vpack.c.b16 %v5392, %v5391
        %v5402 = vpack.c.b16 %v5394, %v5393
        %5411 = vmatprep.subr.bf16.mxu0 0
        %5412 = vmatpush1.bf16.msra.mxu0 %v5402
        %5413 = vmatprep.subr.bf16.mxu0 0
        %5414 = vmatpush1.bf16.msra.mxu0 %v5401
        %5415 = vmatprep.subr.bf16.mxu0 0
        %5416 = vmatpush1.bf16.msra.mxu0 %v5400
        %5417 = vmatprep.subr.bf16.mxu0 0
        %5418 = vmatpush1.bf16.msra.mxu0 %v5399
        %5419 = vmatprep.subr.bf16.mxu0 0
        %5420 = vmatpush1.bf16.msra.mxu0 %v5398
        %5421 = vmatprep.subr.bf16.mxu0 0
        %5422 = vmatpush1.bf16.msra.mxu0 %v5397
        %5423 = vmatprep.subr.bf16.mxu0 0
        %5424 = vmatpush1.bf16.msra.mxu0 %v5396
        %5425 = vmatprep.subr.bf16.mxu0 0
        %5426 = vmatpush1.bf16.msra.mxu0 %v5395
        %5427 = vmatprep.subr.bf16.mxu0 0
        %5428 = vmatpush2.bf16.msra.mxu0 0
        %5429 = vmatprep.subr.bf16.mxu0 0
        %5430 = vmatpush2.bf16.msra.mxu0 0
        %5431 = vmatprep.subr.bf16.mxu0 0
        %5432 = vmatpush2.bf16.msra.mxu0 0
        %5433 = vmatprep.subr.bf16.mxu0 0
        %5434 = vmatpush2.bf16.msra.mxu0 0
        %5435 = vmatprep.subr.bf16.mxu0 0
        %5436 = vmatpush2.bf16.msra.mxu0 0
        %5437 = vmatprep.subr.bf16.mxu0 0
        %5438 = vmatpush2.bf16.msra.mxu0 0
        %5439 = vmatprep.subr.bf16.mxu0 0
        %5440 = vmatpush2.bf16.msra.mxu0 0
        %5441 = vmatprep.subr.bf16.mxu0 0
        %5442 = vmatpush2.bf16.msra.mxu0 0
        %5443 = vmatprep.mubr.bf16.mxu0 0
        %5444 = vmatmul.mubr.bf16.gmra.mxu0 %v5331
        %v5445 = vpop.f32.mrf.mxu0
        %v5446 = vadd.f32 0.0, %v5445
        %v5447 = vpop.f32.mrf.mxu0
        %v5448 = vpop.f32.mrf.mxu0
        %v5449 = vadd.f32 0.0, %v5448
        %v5450 = vpop.f32.mrf.mxu0
        %5451 = vmatprep.mubr.bf16.mxu0 0
        %5452 = vmatmul.mubr.bf16.gmra.mxu0 %v5335
        %v5453 = vpop.f32.mrf.mxu0
        %v5454 = vadd.f32 0.0, %v5453
        %v5455 = vpop.f32.mrf.mxu0
        %v5456 = vpop.f32.mrf.mxu0
        %v5457 = vadd.f32 0.0, %v5456
        %v5458 = vpop.f32.mrf.mxu0
        %5459 = vmatprep.mubr.bf16.mxu0 0
        %5460 = vmatmul.mubr.bf16.gmra.mxu0 %v5339
        %v5461 = vpop.f32.mrf.mxu0
        %v5462 = vadd.f32 0.0, %v5461
        %v5463 = vpop.f32.mrf.mxu0
        %v5464 = vpop.f32.mrf.mxu0
        %v5465 = vadd.f32 0.0, %v5464
        %v5466 = vpop.f32.mrf.mxu0
        %5467 = vmatprep.mubr.bf16.mxu0 0
        %5468 = vmatmul.mubr.bf16.gmra.mxu0 %v5343
        %v5469 = vpop.f32.mrf.mxu0
        %v5470 = vadd.f32 0.0, %v5469
        %v5471 = vpop.f32.mrf.mxu0
        %v5472 = vpop.f32.mrf.mxu0
        %v5473 = vadd.f32 0.0, %v5472
        %v5474 = vpop.f32.mrf.mxu0
        %5475 = vdwg.mxu0
        %5476 = vmatprep.subr.bf16.mxu0 0
        %5477 = vmatpush1.bf16.msra.mxu0 %v5402
        %5478 = vmatprep.subr.bf16.mxu0 0
        %5479 = vmatpush1.bf16.msra.mxu0 %v5401
        %5480 = vmatprep.subr.bf16.mxu0 0
        %5481 = vmatpush1.bf16.msra.mxu0 %v5400
        %5482 = vmatprep.subr.bf16.mxu0 0
        %5483 = vmatpush1.bf16.msra.mxu0 %v5399
        %5484 = vmatprep.subr.bf16.mxu0 0
        %5485 = vmatpush1.bf16.msra.mxu0 %v5398
        %5486 = vmatprep.subr.bf16.mxu0 0
        %5487 = vmatpush1.bf16.msra.mxu0 %v5397
        %5488 = vmatprep.subr.bf16.mxu0 0
        %5489 = vmatpush1.bf16.msra.mxu0 %v5396
        %5490 = vmatprep.subr.bf16.mxu0 0
        %5491 = vmatpush1.bf16.msra.mxu0 %v5395
        %5492 = vmatprep.subr.bf16.mxu0 0
        %5493 = vmatpush2.bf16.msra.mxu0 0
        %5494 = vmatprep.subr.bf16.mxu0 0
        %5495 = vmatpush2.bf16.msra.mxu0 0
        %5496 = vmatprep.subr.bf16.mxu0 0
        %5497 = vmatpush2.bf16.msra.mxu0 0
        %5498 = vmatprep.subr.bf16.mxu0 0
        %5499 = vmatpush2.bf16.msra.mxu0 0
        %5500 = vmatprep.subr.bf16.mxu0 0
        %5501 = vmatpush2.bf16.msra.mxu0 0
        %5502 = vmatprep.subr.bf16.mxu0 0
        %5503 = vmatpush2.bf16.msra.mxu0 0
        %5504 = vmatprep.subr.bf16.mxu0 0
        %5505 = vmatpush2.bf16.msra.mxu0 0
        %5506 = vmatprep.subr.bf16.mxu0 0
        %5507 = vmatpush2.bf16.msra.mxu0 0
        %5508 = vmatprep.mubr.bf16.mxu0 0
        %5509 = vmatmul.mubr.bf16.gmra.mxu0 %v5332
        %v5510 = vpop.f32.mrf.mxu0
        %v5511 = vadd.f32 0.0, %v5510
        %v5512 = vpop.f32.mrf.mxu0
        %v5513 = vpop.f32.mrf.mxu0
        %v5514 = vadd.f32 0.0, %v5513
        %v5515 = vpop.f32.mrf.mxu0
        %5516 = vmatprep.mubr.bf16.mxu0 0
        %5517 = vmatmul.mubr.bf16.gmra.mxu0 %v5336
        %v5518 = vpop.f32.mrf.mxu0
        %v5519 = vadd.f32 0.0, %v5518
        %v5520 = vpop.f32.mrf.mxu0
        %v5521 = vpop.f32.mrf.mxu0
        %v5522 = vadd.f32 0.0, %v5521
        %v5523 = vpop.f32.mrf.mxu0
        %5524 = vmatprep.mubr.bf16.mxu0 0
        %5525 = vmatmul.mubr.bf16.gmra.mxu0 %v5340
        %v5526 = vpop.f32.mrf.mxu0
        %v5527 = vadd.f32 0.0, %v5526
        %v5528 = vpop.f32.mrf.mxu0
        %v5529 = vpop.f32.mrf.mxu0
        %v5530 = vadd.f32 0.0, %v5529
        %v5531 = vpop.f32.mrf.mxu0
        %5532 = vmatprep.mubr.bf16.mxu0 0
        %5533 = vmatmul.mubr.bf16.gmra.mxu0 %v5344
        %v5534 = vpop.f32.mrf.mxu0
        %v5535 = vadd.f32 0.0, %v5534
        %v5536 = vpop.f32.mrf.mxu0
        %v5537 = vpop.f32.mrf.mxu0
        %v5538 = vadd.f32 0.0, %v5537
        %v5539 = vpop.f32.mrf.mxu0
        %5540 = vdwg.mxu0
        %5541 = vmatprep.subr.bf16.mxu0 0
        %5542 = vmatpush1.bf16.msra.mxu0 %v5402
        %5543 = vmatprep.subr.bf16.mxu0 0
        %5544 = vmatpush1.bf16.msra.mxu0 %v5401
        %5545 = vmatprep.subr.bf16.mxu0 0
        %5546 = vmatpush1.bf16.msra.mxu0 %v5400
        %5547 = vmatprep.subr.bf16.mxu0 0
        %5548 = vmatpush1.bf16.msra.mxu0 %v5399
        %5549 = vmatprep.subr.bf16.mxu0 0
        %5550 = vmatpush1.bf16.msra.mxu0 %v5398
        %5551 = vmatprep.subr.bf16.mxu0 0
        %5552 = vmatpush1.bf16.msra.mxu0 %v5397
        %5553 = vmatprep.subr.bf16.mxu0 0
        %5554 = vmatpush1.bf16.msra.mxu0 %v5396
        %5555 = vmatprep.subr.bf16.mxu0 0
        %5556 = vmatpush1.bf16.msra.mxu0 %v5395
        %5557 = vmatprep.subr.bf16.mxu0 0
        %5558 = vmatpush2.bf16.msra.mxu0 0
        %5559 = vmatprep.subr.bf16.mxu0 0
        %5560 = vmatpush2.bf16.msra.mxu0 0
        %5561 = vmatprep.subr.bf16.mxu0 0
        %5562 = vmatpush2.bf16.msra.mxu0 0
        %5563 = vmatprep.subr.bf16.mxu0 0
        %5564 = vmatpush2.bf16.msra.mxu0 0
        %5565 = vmatprep.subr.bf16.mxu0 0
        %5566 = vmatpush2.bf16.msra.mxu0 0
        %5567 = vmatprep.subr.bf16.mxu0 0
        %5568 = vmatpush2.bf16.msra.mxu0 0
        %5569 = vmatprep.subr.bf16.mxu0 0
        %5570 = vmatpush2.bf16.msra.mxu0 0
        %5571 = vmatprep.subr.bf16.mxu0 0
        %5572 = vmatpush2.bf16.msra.mxu0 0
        %5573 = vmatprep.mubr.bf16.mxu0 0
        %5574 = vmatmul.mubr.bf16.gmra.mxu0 %v5333
        %v5575 = vpop.f32.mrf.mxu0
        %v5576 = vadd.f32 0.0, %v5575
        %v5577 = vpop.f32.mrf.mxu0
        %v5578 = vpop.f32.mrf.mxu0
        %v5579 = vadd.f32 0.0, %v5578
        %v5580 = vpop.f32.mrf.mxu0
        %5581 = vmatprep.mubr.bf16.mxu0 0
        %5582 = vmatmul.mubr.bf16.gmra.mxu0 %v5337
        %v5583 = vpop.f32.mrf.mxu0
        %v5584 = vadd.f32 0.0, %v5583
        %v5585 = vpop.f32.mrf.mxu0
        %v5586 = vpop.f32.mrf.mxu0
        %v5587 = vadd.f32 0.0, %v5586
        %v5588 = vpop.f32.mrf.mxu0
        %5589 = vmatprep.mubr.bf16.mxu0 0
        %5590 = vmatmul.mubr.bf16.gmra.mxu0 %v5341
        %v5591 = vpop.f32.mrf.mxu0
        %v5592 = vadd.f32 0.0, %v5591
        %v5593 = vpop.f32.mrf.mxu0
        %v5594 = vpop.f32.mrf.mxu0
        %v5595 = vadd.f32 0.0, %v5594
        %v5596 = vpop.f32.mrf.mxu0
        %5597 = vmatprep.mubr.bf16.mxu0 0
        %5598 = vmatmul.mubr.bf16.gmra.mxu0 %v5345
        %v5599 = vpop.f32.mrf.mxu0
        %v5600 = vadd.f32 0.0, %v5599
        %v5601 = vpop.f32.mrf.mxu0
        %v5602 = vpop.f32.mrf.mxu0
        %v5603 = vadd.f32 0.0, %v5602
        %v5604 = vpop.f32.mrf.mxu0
        %5605 = vdwg.mxu0
        %5606 = vmatprep.subr.bf16.mxu0 0
        %5607 = vmatpush1.bf16.msra.mxu0 %v5402
        %5608 = vmatprep.subr.bf16.mxu0 0
        %5609 = vmatpush1.bf16.msra.mxu0 %v5401
        %5610 = vmatprep.subr.bf16.mxu0 0
        %5611 = vmatpush1.bf16.msra.mxu0 %v5400
        %5612 = vmatprep.subr.bf16.mxu0 0
        %5613 = vmatpush1.bf16.msra.mxu0 %v5399
        %5614 = vmatprep.subr.bf16.mxu0 0
        %5615 = vmatpush1.bf16.msra.mxu0 %v5398
        %5616 = vmatprep.subr.bf16.mxu0 0
        %5617 = vmatpush1.bf16.msra.mxu0 %v5397
        %5618 = vmatprep.subr.bf16.mxu0 0
        %5619 = vmatpush1.bf16.msra.mxu0 %v5396
        %5620 = vmatprep.subr.bf16.mxu0 0
        %5621 = vmatpush1.bf16.msra.mxu0 %v5395
        %5622 = vmatprep.subr.bf16.mxu0 0
        %5623 = vmatpush2.bf16.msra.mxu0 0
        %5624 = vmatprep.subr.bf16.mxu0 0
        %5625 = vmatpush2.bf16.msra.mxu0 0
        %5626 = vmatprep.subr.bf16.mxu0 0
        %5627 = vmatpush2.bf16.msra.mxu0 0
        %5628 = vmatprep.subr.bf16.mxu0 0
        %5629 = vmatpush2.bf16.msra.mxu0 0
        %5630 = vmatprep.subr.bf16.mxu0 0
        %5631 = vmatpush2.bf16.msra.mxu0 0
        %5632 = vmatprep.subr.bf16.mxu0 0
        %5633 = vmatpush2.bf16.msra.mxu0 0
        %5634 = vmatprep.subr.bf16.mxu0 0
        %5635 = vmatpush2.bf16.msra.mxu0 0
        %5636 = vmatprep.subr.bf16.mxu0 0
        %5637 = vmatpush2.bf16.msra.mxu0 0
        %5638 = vmatprep.mubr.bf16.mxu0 0
        %5639 = vmatmul.mubr.bf16.gmra.mxu0 %v5334
        %v5640 = vpop.f32.mrf.mxu0
        %v5641 = vadd.f32 0.0, %v5640
        %v5642 = vpop.f32.mrf.mxu0
        %v5643 = vpop.f32.mrf.mxu0
        %v5644 = vadd.f32 0.0, %v5643
        %v5645 = vpop.f32.mrf.mxu0
        %5646 = vmatprep.mubr.bf16.mxu0 0
        %5647 = vmatmul.mubr.bf16.gmra.mxu0 %v5338
        %v5648 = vpop.f32.mrf.mxu0
        %v5649 = vadd.f32 0.0, %v5648
        %v5650 = vpop.f32.mrf.mxu0
        %v5651 = vpop.f32.mrf.mxu0
        %v5652 = vadd.f32 0.0, %v5651
        %v5653 = vpop.f32.mrf.mxu0
        %5654 = vmatprep.mubr.bf16.mxu0 0
        %5655 = vmatmul.mubr.bf16.gmra.mxu0 %v5342
        %v5656 = vpop.f32.mrf.mxu0
        %v5657 = vadd.f32 0.0, %v5656
        %v5658 = vpop.f32.mrf.mxu0
        %v5659 = vpop.f32.mrf.mxu0
        %v5660 = vadd.f32 0.0, %v5659
        %v5661 = vpop.f32.mrf.mxu0
        %5662 = vmatprep.mubr.bf16.mxu0 0
        %5663 = vmatmul.mubr.bf16.gmra.mxu0 %v5346
        %v5664 = vpop.f32.mrf.mxu0
        %v5665 = vadd.f32 0.0, %v5664
        %v5666 = vpop.f32.mrf.mxu0
        %v5667 = vpop.f32.mrf.mxu0
        %v5668 = vadd.f32 0.0, %v5667
        %v5669 = vpop.f32.mrf.mxu0
        %5670 = vdwg.mxu0
        %v5671 = vrot.slane %v5446, 4
        %v5672 = vadd.f32 %v5446, %v5671
        %v5673 = vrot.slane %v5672, 2
        %v5674 = vadd.f32 %v5672, %v5673
        %v5675 = vrot.slane %v5674, 1
        %v5676 = vadd.f32 %v5674, %v5675
        %v5677 = vrot.slane %v5511, 4
        %v5678 = vadd.f32 %v5511, %v5677
        %v5679 = vrot.slane %v5678, 2
        %v5680 = vadd.f32 %v5678, %v5679
        %v5681 = vrot.slane %v5680, 1
        %v5682 = vadd.f32 %v5680, %v5681
        %v5683 = vrot.slane %v5576, 4
        %v5684 = vadd.f32 %v5576, %v5683
        %v5685 = vrot.slane %v5684, 2
        %v5686 = vadd.f32 %v5684, %v5685
        %v5687 = vrot.slane %v5686, 1
        %v5688 = vadd.f32 %v5686, %v5687
        %v5689 = vrot.slane %v5641, 4
        %v5690 = vadd.f32 %v5641, %v5689
        %v5691 = vrot.slane %v5690, 2
        %v5692 = vadd.f32 %v5690, %v5691
        %v5693 = vrot.slane %v5692, 1
        %v5694 = vadd.f32 %v5692, %v5693
        %v5695 = vrot.slane %v5449, 4
        %v5696 = vadd.f32 %v5449, %v5695
        %v5697 = vrot.slane %v5696, 2
        %v5698 = vadd.f32 %v5696, %v5697
        %v5699 = vrot.slane %v5698, 1
        %v5700 = vadd.f32 %v5698, %v5699
        %v5701 = vrot.slane %v5514, 4
        %v5702 = vadd.f32 %v5514, %v5701
        %v5703 = vrot.slane %v5702, 2
        %v5704 = vadd.f32 %v5702, %v5703
        %v5705 = vrot.slane %v5704, 1
        %v5706 = vadd.f32 %v5704, %v5705
        %v5707 = vrot.slane %v5579, 4
        %v5708 = vadd.f32 %v5579, %v5707
        %v5709 = vrot.slane %v5708, 2
        %v5710 = vadd.f32 %v5708, %v5709
        %v5711 = vrot.slane %v5710, 1
        %v5712 = vadd.f32 %v5710, %v5711
        %v5713 = vrot.slane %v5644, 4
        %v5714 = vadd.f32 %v5644, %v5713
        %v5715 = vrot.slane %v5714, 2
        %v5716 = vadd.f32 %v5714, %v5715
        %v5717 = vrot.slane %v5716, 1
        %v5718 = vadd.f32 %v5716, %v5717
        %v5719 = vrot.slane %v5454, 4
        %v5720 = vadd.f32 %v5454, %v5719
        %v5721 = vrot.slane %v5720, 2
        %v5722 = vadd.f32 %v5720, %v5721
        %v5723 = vrot.slane %v5722, 1
        %v5724 = vadd.f32 %v5722, %v5723
        %v5725 = vrot.slane %v5519, 4
        %v5726 = vadd.f32 %v5519, %v5725
        %v5727 = vrot.slane %v5726, 2
        %v5728 = vadd.f32 %v5726, %v5727
        %v5729 = vrot.slane %v5728, 1
        %v5730 = vadd.f32 %v5728, %v5729
        %v5731 = vrot.slane %v5584, 4
        %v5732 = vadd.f32 %v5584, %v5731
        %v5733 = vrot.slane %v5732, 2
        %v5734 = vadd.f32 %v5732, %v5733
        %v5735 = vrot.slane %v5734, 1
        %v5736 = vadd.f32 %v5734, %v5735
        %v5737 = vrot.slane %v5649, 4
        %v5738 = vadd.f32 %v5649, %v5737
        %v5739 = vrot.slane %v5738, 2
        %v5740 = vadd.f32 %v5738, %v5739
        %v5741 = vrot.slane %v5740, 1
        %v5742 = vadd.f32 %v5740, %v5741
        %v5743 = vrot.slane %v5457, 4
        %v5744 = vadd.f32 %v5457, %v5743
        %v5745 = vrot.slane %v5744, 2
        %v5746 = vadd.f32 %v5744, %v5745
        %v5747 = vrot.slane %v5746, 1
        %v5748 = vadd.f32 %v5746, %v5747
        %v5749 = vrot.slane %v5522, 4
        %v5750 = vadd.f32 %v5522, %v5749
        %v5751 = vrot.slane %v5750, 2
        %v5752 = vadd.f32 %v5750, %v5751
        %v5753 = vrot.slane %v5752, 1
        %v5754 = vadd.f32 %v5752, %v5753
        %v5755 = vrot.slane %v5587, 4
        %v5756 = vadd.f32 %v5587, %v5755
        %v5757 = vrot.slane %v5756, 2
        %v5758 = vadd.f32 %v5756, %v5757
        %v5759 = vrot.slane %v5758, 1
        %v5760 = vadd.f32 %v5758, %v5759
        %v5761 = vrot.slane %v5652, 4
        %v5762 = vadd.f32 %v5652, %v5761
        %v5763 = vrot.slane %v5762, 2
        %v5764 = vadd.f32 %v5762, %v5763
        %v5765 = vrot.slane %v5764, 1
        %v5766 = vadd.f32 %v5764, %v5765
        %v5767 = vrot.slane %v5462, 4
        %v5768 = vadd.f32 %v5462, %v5767
        %v5769 = vrot.slane %v5768, 2
        %v5770 = vadd.f32 %v5768, %v5769
        %v5771 = vrot.slane %v5770, 1
        %v5772 = vadd.f32 %v5770, %v5771
        %v5773 = vrot.slane %v5527, 4
        %v5774 = vadd.f32 %v5527, %v5773
        %v5775 = vrot.slane %v5774, 2
        %v5776 = vadd.f32 %v5774, %v5775
        %v5777 = vrot.slane %v5776, 1
        %v5778 = vadd.f32 %v5776, %v5777
        %v5779 = vrot.slane %v5592, 4
        %v5780 = vadd.f32 %v5592, %v5779
        %v5781 = vrot.slane %v5780, 2
        %v5782 = vadd.f32 %v5780, %v5781
        %v5783 = vrot.slane %v5782, 1
        %v5784 = vadd.f32 %v5782, %v5783
        %v5785 = vrot.slane %v5657, 4
        %v5786 = vadd.f32 %v5657, %v5785
        %v5787 = vrot.slane %v5786, 2
        %v5788 = vadd.f32 %v5786, %v5787
        %v5789 = vrot.slane %v5788, 1
        %v5790 = vadd.f32 %v5788, %v5789
        %v5791 = vrot.slane %v5465, 4
        %v5792 = vadd.f32 %v5465, %v5791
        %v5793 = vrot.slane %v5792, 2
        %v5794 = vadd.f32 %v5792, %v5793
        %v5795 = vrot.slane %v5794, 1
        %v5796 = vadd.f32 %v5794, %v5795
        %v5797 = vrot.slane %v5530, 4
        %v5798 = vadd.f32 %v5530, %v5797
        %v5799 = vrot.slane %v5798, 2
        %v5800 = vadd.f32 %v5798, %v5799
        %v5801 = vrot.slane %v5800, 1
        %v5802 = vadd.f32 %v5800, %v5801
        %v5803 = vrot.slane %v5595, 4
        %v5804 = vadd.f32 %v5595, %v5803
        %v5805 = vrot.slane %v5804, 2
        %v5806 = vadd.f32 %v5804, %v5805
        %v5807 = vrot.slane %v5806, 1
        %v5808 = vadd.f32 %v5806, %v5807
        %v5809 = vrot.slane %v5660, 4
        %v5810 = vadd.f32 %v5660, %v5809
        %v5811 = vrot.slane %v5810, 2
        %v5812 = vadd.f32 %v5810, %v5811
        %v5813 = vrot.slane %v5812, 1
        %v5814 = vadd.f32 %v5812, %v5813
        %v5815 = vrot.slane %v5470, 4
        %v5816 = vadd.f32 %v5470, %v5815
        %v5817 = vrot.slane %v5816, 2
        %v5818 = vadd.f32 %v5816, %v5817
        %v5819 = vrot.slane %v5818, 1
        %v5820 = vadd.f32 %v5818, %v5819
        %v5821 = vrot.slane %v5535, 4
        %v5822 = vadd.f32 %v5535, %v5821
        %v5823 = vrot.slane %v5822, 2
        %v5824 = vadd.f32 %v5822, %v5823
        %v5825 = vrot.slane %v5824, 1
        %v5826 = vadd.f32 %v5824, %v5825
        %v5827 = vrot.slane %v5600, 4
        %v5828 = vadd.f32 %v5600, %v5827
        %v5829 = vrot.slane %v5828, 2
        %v5830 = vadd.f32 %v5828, %v5829
        %v5831 = vrot.slane %v5830, 1
        %v5832 = vadd.f32 %v5830, %v5831
        %v5833 = vrot.slane %v5665, 4
        %v5834 = vadd.f32 %v5665, %v5833
        %v5835 = vrot.slane %v5834, 2
        %v5836 = vadd.f32 %v5834, %v5835
        %v5837 = vrot.slane %v5836, 1
        %v5838 = vadd.f32 %v5836, %v5837
        %v5839 = vrot.slane %v5473, 4
        %v5840 = vadd.f32 %v5473, %v5839
        %v5841 = vrot.slane %v5840, 2
        %v5842 = vadd.f32 %v5840, %v5841
        %v5843 = vrot.slane %v5842, 1
        %v5844 = vadd.f32 %v5842, %v5843
        %v5845 = vrot.slane %v5538, 4
        %v5846 = vadd.f32 %v5538, %v5845
        %v5847 = vrot.slane %v5846, 2
        %v5848 = vadd.f32 %v5846, %v5847
        %v5849 = vrot.slane %v5848, 1
        %v5850 = vadd.f32 %v5848, %v5849
        %v5851 = vrot.slane %v5603, 4
        %v5852 = vadd.f32 %v5603, %v5851
        %v5853 = vrot.slane %v5852, 2
        %v5854 = vadd.f32 %v5852, %v5853
        %v5855 = vrot.slane %v5854, 1
        %v5856 = vadd.f32 %v5854, %v5855
        %v5857 = vrot.slane %v5668, 4
        %v5858 = vadd.f32 %v5668, %v5857
        %v5859 = vrot.slane %v5858, 2
        %v5860 = vadd.f32 %v5858, %v5859
        %v5861 = vrot.slane %v5860, 1
        %v5862 = vadd.f32 %v5860, %v5861
        %v5863 = vld [vmem:[%s5] sm:$0xff]
        %v5864 = vld [vmem:[%s5 + $0x8] sm:$0xff]
        %v5865 = vld [vmem:[%s5 + $0x10] sm:$0xff]
        %v5866 = vld [vmem:[%s5 + $0x18] sm:$0xff]
        %v5867 = vld [vmem:[%s5 + $0x20] sm:$0xff]
        %v5868 = vld [vmem:[%s5 + $0x28] sm:$0xff]
        %v5869 = vld [vmem:[%s5 + $0x30] sm:$0xff]
        %v5870 = vld [vmem:[%s5 + $0x38] sm:$0xff]
        %v5871 = vld [vmem:[%s5 + $0x40] sm:$0xff]
        %v5872 = vld [vmem:[%s5 + $0x48] sm:$0xff]
        %v5873 = vld [vmem:[%s5 + $0x50] sm:$0xff]
        %v5874 = vld [vmem:[%s5 + $0x58] sm:$0xff]
        %v5875 = vld [vmem:[%s5 + $0x60] sm:$0xff]
        %v5876 = vld [vmem:[%s5 + $0x68] sm:$0xff]
        %v5877 = vld [vmem:[%s5 + $0x70] sm:$0xff]
        %v5878 = vld [vmem:[%s5 + $0x78] sm:$0xff]
        %v5879 = vld [vmem:[%s5 + $0x80] sm:$0xff]
        %v5880 = vld [vmem:[%s5 + $0x88] sm:$0xff]
        %v5881 = vld [vmem:[%s5 + $0x90] sm:$0xff]
        %v5882 = vld [vmem:[%s5 + $0x98] sm:$0xff]
        %v5883 = vld [vmem:[%s5 + $0xa0] sm:$0xff]
        %v5884 = vld [vmem:[%s5 + $0xa8] sm:$0xff]
        %v5885 = vld [vmem:[%s5 + $0xb0] sm:$0xff]
        %v5886 = vld [vmem:[%s5 + $0xb8] sm:$0xff]
        %v5887 = vld [vmem:[%s5 + $0xc0] sm:$0xff]
        %v5888 = vld [vmem:[%s5 + $0xc8] sm:$0xff]
        %v5889 = vld [vmem:[%s5 + $0xd0] sm:$0xff]
        %v5890 = vld [vmem:[%s5 + $0xd8] sm:$0xff]
        %v5891 = vld [vmem:[%s5 + $0xe0] sm:$0xff]
        %v5892 = vld [vmem:[%s5 + $0xe8] sm:$0xff]
        %v5893 = vld [vmem:[%s5 + $0xf0] sm:$0xff]
        %v5894 = vld [vmem:[%s5 + $0xf8] sm:$0xff]
        %v5895 = vld [vmem:[%s5 + $0x100] sm:$0xff]
        %v5896 = vld [vmem:[%s5 + $0x108] sm:$0xff]
        %v5897 = vld [vmem:[%s5 + $0x110] sm:$0xff]
        %v5898 = vld [vmem:[%s5 + $0x118] sm:$0xff]
        %v5899 = vld [vmem:[%s5 + $0x120] sm:$0xff]
        %v5900 = vld [vmem:[%s5 + $0x128] sm:$0xff]
        %v5901 = vld [vmem:[%s5 + $0x130] sm:$0xff]
        %v5902 = vld [vmem:[%s5 + $0x138] sm:$0xff]
        %v5903 = vld [vmem:[%s5 + $0x140] sm:$0xff]
        %v5904 = vld [vmem:[%s5 + $0x148] sm:$0xff]
        %v5905 = vld [vmem:[%s5 + $0x150] sm:$0xff]
        %v5906 = vld [vmem:[%s5 + $0x158] sm:$0xff]
        %v5907 = vld [vmem:[%s5 + $0x160] sm:$0xff]
        %v5908 = vld [vmem:[%s5 + $0x168] sm:$0xff]
        %v5909 = vld [vmem:[%s5 + $0x170] sm:$0xff]
        %v5910 = vld [vmem:[%s5 + $0x178] sm:$0xff]
        %v5911 = vld [vmem:[%s5 + $0x180] sm:$0xff]
        %v5912 = vld [vmem:[%s5 + $0x188] sm:$0xff]
        %v5913 = vld [vmem:[%s5 + $0x190] sm:$0xff]
        %v5914 = vld [vmem:[%s5 + $0x198] sm:$0xff]
        %v5915 = vld [vmem:[%s5 + $0x1a0] sm:$0xff]
        %v5916 = vld [vmem:[%s5 + $0x1a8] sm:$0xff]
        %v5917 = vld [vmem:[%s5 + $0x1b0] sm:$0xff]
        %v5918 = vld [vmem:[%s5 + $0x1b8] sm:$0xff]
        %v5919 = vld [vmem:[%s5 + $0x1c0] sm:$0xff]
        %v5920 = vld [vmem:[%s5 + $0x1c8] sm:$0xff]
        %v5921 = vld [vmem:[%s5 + $0x1d0] sm:$0xff]
        %v5922 = vld [vmem:[%s5 + $0x1d8] sm:$0xff]
        %v5923 = vld [vmem:[%s5 + $0x1e0] sm:$0xff]
        %v5924 = vld [vmem:[%s5 + $0x1e8] sm:$0xff]
        %v5925 = vld [vmem:[%s5 + $0x1f0] sm:$0xff]
        %v5926 = vld [vmem:[%s5 + $0x1f8] sm:$0xff]
        %vm5959 = vcmask 1041409
        %v5960 = vsel %vm5959, %v5700, %v5676
        %vm5961 = vcmask 1042434
        %v5962 = vsel %vm5961, %v5724, %v5960
        %vm5963 = vcmask 1043459
        %v5964 = vsel %vm5963, %v5748, %v5962
        %vm5965 = vcmask 1044484
        %v5966 = vsel %vm5965, %v5772, %v5964
        %vm5967 = vcmask 1045509
        %v5968 = vsel %vm5967, %v5796, %v5966
        %vm5969 = vcmask 1046534
        %v5970 = vsel %vm5969, %v5820, %v5968
        %vm5971 = vcmask 1047559
        %v5972 = vsel %vm5971, %v5844, %v5970
        %v5973 = vsel %vm5959, %v5706, %v5682
        %v5974 = vsel %vm5961, %v5730, %v5973
        %v5975 = vsel %vm5963, %v5754, %v5974
        %v5976 = vsel %vm5965, %v5778, %v5975
        %v5977 = vsel %vm5967, %v5802, %v5976
        %v5978 = vsel %vm5969, %v5826, %v5977
        %v5979 = vsel %vm5971, %v5850, %v5978
        %v5980 = vsel %vm5959, %v5712, %v5688
        %v5981 = vsel %vm5961, %v5736, %v5980
        %v5982 = vsel %vm5963, %v5760, %v5981
        %v5983 = vsel %vm5965, %v5784, %v5982
        %v5984 = vsel %vm5967, %v5808, %v5983
        %v5985 = vsel %vm5969, %v5832, %v5984
        %v5986 = vsel %vm5971, %v5856, %v5985
        %v5987 = vsel %vm5959, %v5718, %v5694
        %v5988 = vsel %vm5961, %v5742, %v5987
        %v5989 = vsel %vm5963, %v5766, %v5988
        %v5990 = vsel %vm5965, %v5790, %v5989
        %v5991 = vsel %vm5967, %v5814, %v5990
        %v5992 = vsel %vm5969, %v5838, %v5991
        %v5993 = vsel %vm5971, %v5862, %v5992
        %5998 = vmatprep.subr.mxu0 0.0
        %5999 = vmatpush1.msra.mxu0 %v5878
        %6000 = vmatprep.subr.mxu0 0.0
        %6001 = vmatpush1.msra.mxu0 %v5877
        %6002 = vmatprep.subr.mxu0 0.0
        %6003 = vmatpush1.msra.mxu0 %v5876
        %6004 = vmatprep.subr.mxu0 0.0
        %6005 = vmatpush1.msra.mxu0 %v5875
        %6006 = vmatprep.subr.mxu0 0.0
        %6007 = vmatpush1.msra.mxu0 %v5874
        %6008 = vmatprep.subr.mxu0 0.0
        %6009 = vmatpush1.msra.mxu0 %v5873
        %6010 = vmatprep.subr.mxu0 0.0
        %6011 = vmatpush1.msra.mxu0 %v5872
        %6012 = vmatprep.subr.mxu0 0.0
        %6013 = vmatpush1.msra.mxu0 %v5871
        %6014 = vmatprep.subr.mxu0 0.0
        %6015 = vmatpush1.msra.mxu0 %v5870
        %6016 = vmatprep.subr.mxu0 0.0
        %6017 = vmatpush1.msra.mxu0 %v5869
        %6018 = vmatprep.subr.mxu0 0.0
        %6019 = vmatpush1.msra.mxu0 %v5868
        %6020 = vmatprep.subr.mxu0 0.0
        %6021 = vmatpush1.msra.mxu0 %v5867
        %6022 = vmatprep.subr.mxu0 0.0
        %6023 = vmatpush1.msra.mxu0 %v5866
        %6024 = vmatprep.subr.mxu0 0.0
        %6025 = vmatpush1.msra.mxu0 %v5865
        %6026 = vmatprep.subr.mxu0 0.0
        %6027 = vmatpush1.msra.mxu0 %v5864
        %6028 = vmatprep.subr.mxu0 0.0
        %6029 = vmatpush1.msra.mxu0 %v5863
        %6030 = vmatprep.subr.mxu0 0.0
        %6031 = vmatpush2.msra.mxu0 %v5894
        %6032 = vmatprep.subr.mxu0 0.0
        %6033 = vmatpush2.msra.mxu0 %v5893
        %6034 = vmatprep.subr.mxu0 0.0
        %6035 = vmatpush2.msra.mxu0 %v5892
        %6036 = vmatprep.subr.mxu0 0.0
        %6037 = vmatpush2.msra.mxu0 %v5891
        %6038 = vmatprep.subr.mxu0 0.0
        %6039 = vmatpush2.msra.mxu0 %v5890
        %6040 = vmatprep.subr.mxu0 0.0
        %6041 = vmatpush2.msra.mxu0 %v5889
        %6042 = vmatprep.subr.mxu0 0.0
        %6043 = vmatpush2.msra.mxu0 %v5888
        %6044 = vmatprep.subr.mxu0 0.0
        %6045 = vmatpush2.msra.mxu0 %v5887
        %6046 = vmatprep.subr.mxu0 0.0
        %6047 = vmatpush2.msra.mxu0 %v5886
        %6048 = vmatprep.subr.mxu0 0.0
        %6049 = vmatpush2.msra.mxu0 %v5885
        %6050 = vmatprep.subr.mxu0 0.0
        %6051 = vmatpush2.msra.mxu0 %v5884
        %6052 = vmatprep.subr.mxu0 0.0
        %6053 = vmatpush2.msra.mxu0 %v5883
        %6054 = vmatprep.subr.mxu0 0.0
        %6055 = vmatpush2.msra.mxu0 %v5882
        %6056 = vmatprep.subr.mxu0 0.0
        %6057 = vmatpush2.msra.mxu0 %v5881
        %6058 = vmatprep.subr.mxu0 0.0
        %6059 = vmatpush2.msra.mxu0 %v5880
        %6060 = vmatprep.subr.mxu0 0.0
        %6061 = vmatpush2.msra.mxu0 %v5879
        %6062 = vmatprep.mubr.f32.mxu0 %v5979
        %6063 = vmatmul.mubr.f32.gmra.mxu0 %v5972
        %v6064 = vpop.f32.mrf.mxu0
        %v6065 = vadd.f32 0.0, %v6064
        %v6066 = vpop.f32.mrf.mxu0
        %6067 = vdwg.mxu0
        %6068 = vmatprep.subr.mxu0 0.0
        %6069 = vmatpush1.msra.mxu0 %v5910
        %6070 = vmatprep.subr.mxu0 0.0
        %6071 = vmatpush1.msra.mxu0 %v5909
        %6072 = vmatprep.subr.mxu0 0.0
        %6073 = vmatpush1.msra.mxu0 %v5908
        %6074 = vmatprep.subr.mxu0 0.0
        %6075 = vmatpush1.msra.mxu0 %v5907
        %6076 = vmatprep.subr.mxu0 0.0
        %6077 = vmatpush1.msra.mxu0 %v5906
        %6078 = vmatprep.subr.mxu0 0.0
        %6079 = vmatpush1.msra.mxu0 %v5905
        %6080 = vmatprep.subr.mxu0 0.0
        %6081 = vmatpush1.msra.mxu0 %v5904
        %6082 = vmatprep.subr.mxu0 0.0
        %6083 = vmatpush1.msra.mxu0 %v5903
        %6084 = vmatprep.subr.mxu0 0.0
        %6085 = vmatpush1.msra.mxu0 %v5902
        %6086 = vmatprep.subr.mxu0 0.0
        %6087 = vmatpush1.msra.mxu0 %v5901
        %6088 = vmatprep.subr.mxu0 0.0
        %6089 = vmatpush1.msra.mxu0 %v5900
        %6090 = vmatprep.subr.mxu0 0.0
        %6091 = vmatpush1.msra.mxu0 %v5899
        %6092 = vmatprep.subr.mxu0 0.0
        %6093 = vmatpush1.msra.mxu0 %v5898
        %6094 = vmatprep.subr.mxu0 0.0
        %6095 = vmatpush1.msra.mxu0 %v5897
        %6096 = vmatprep.subr.mxu0 0.0
        %6097 = vmatpush1.msra.mxu0 %v5896
        %6098 = vmatprep.subr.mxu0 0.0
        %6099 = vmatpush1.msra.mxu0 %v5895
        %6100 = vmatprep.subr.mxu0 0.0
        %6101 = vmatpush2.msra.mxu0 %v5926
        %6102 = vmatprep.subr.mxu0 0.0
        %6103 = vmatpush2.msra.mxu0 %v5925
        %6104 = vmatprep.subr.mxu0 0.0
        %6105 = vmatpush2.msra.mxu0 %v5924
        %6106 = vmatprep.subr.mxu0 0.0
        %6107 = vmatpush2.msra.mxu0 %v5923
        %6108 = vmatprep.subr.mxu0 0.0
        %6109 = vmatpush2.msra.mxu0 %v5922
        %6110 = vmatprep.subr.mxu0 0.0
        %6111 = vmatpush2.msra.mxu0 %v5921
        %6112 = vmatprep.subr.mxu0 0.0
        %6113 = vmatpush2.msra.mxu0 %v5920
        %6114 = vmatprep.subr.mxu0 0.0
        %6115 = vmatpush2.msra.mxu0 %v5919
        %6116 = vmatprep.subr.mxu0 0.0
        %6117 = vmatpush2.msra.mxu0 %v5918
        %6118 = vmatprep.subr.mxu0 0.0
        %6119 = vmatpush2.msra.mxu0 %v5917
        %6120 = vmatprep.subr.mxu0 0.0
        %6121 = vmatpush2.msra.mxu0 %v5916
        %6122 = vmatprep.subr.mxu0 0.0
        %6123 = vmatpush2.msra.mxu0 %v5915
        %6124 = vmatprep.subr.mxu0 0.0
        %6125 = vmatpush2.msra.mxu0 %v5914
        %6126 = vmatprep.subr.mxu0 0.0
        %6127 = vmatpush2.msra.mxu0 %v5913
        %6128 = vmatprep.subr.mxu0 0.0
        %6129 = vmatpush2.msra.mxu0 %v5912
        %6130 = vmatprep.subr.mxu0 0.0
        %6131 = vmatpush2.msra.mxu0 %v5911
        %6132 = vmatprep.mubr.f32.mxu0 %v5993
        %6133 = vmatmul.mubr.f32.gmra.mxu0 %v5986
        %v6134 = vpop.f32.mrf.mxu0
        %v6135 = vadd.f32 %v6065, %v6134
        %v6136 = vpop.f32.mrf.mxu0
        %6137 = vdwg.mxu0
        %v6138 = vld [vmem:[%s7] sm:$0xff]
        %v6139 = vld [vmem:[%s7 + $0x8] sm:$0xff]
        %v6140 = vld [vmem:[%s7 + $0x10] sm:$0xff]
        %v6141 = vld [vmem:[%s7 + $0x18] sm:$0xff]
        %v6142 = vld [vmem:[%s7 + $0x20] sm:$0xff]
        %v6143 = vld [vmem:[%s7 + $0x28] sm:$0xff]
        %v6144 = vld [vmem:[%s7 + $0x30] sm:$0xff]
        %v6145 = vld [vmem:[%s7 + $0x38] sm:$0xff]
        %v6146 = vld [vmem:[#allocation7] sm:$0xff]
        %v6147 = vld [vmem:[#allocation7 + $0x8] sm:$0xff]
        %6148 = vmatprep.subr.mxu0 0.0
        %6149 = vmatpush1.msra.mxu0 0.0
        %6150 = vmatprep.subr.mxu0 0.0
        %6151 = vmatpush1.msra.mxu0 0.0
        %6152 = vmatprep.subr.mxu0 0.0
        %6153 = vmatpush1.msra.mxu0 0.0
        %6154 = vmatprep.subr.mxu0 0.0
        %6155 = vmatpush1.msra.mxu0 0.0
        %6156 = vmatprep.subr.mxu0 0.0
        %6157 = vmatpush1.msra.mxu0 0.0
        %6158 = vmatprep.subr.mxu0 0.0
        %6159 = vmatpush1.msra.mxu0 0.0
        %6160 = vmatprep.subr.mxu0 0.0
        %6161 = vmatpush1.msra.mxu0 0.0
        %6162 = vmatprep.subr.mxu0 0.0
        %6163 = vmatpush1.msra.mxu0 0.0
        %6164 = vmatprep.subr.mxu0 0.0
        %6165 = vmatpush1.msra.mxu0 0.0
        %6166 = vmatprep.subr.mxu0 0.0
        %6167 = vmatpush1.msra.mxu0 0.0
        %6168 = vmatprep.subr.mxu0 0.0
        %6169 = vmatpush1.msra.mxu0 0.0
        %6170 = vmatprep.subr.mxu0 0.0
        %6171 = vmatpush1.msra.mxu0 0.0
        %6172 = vmatprep.subr.mxu0 0.0
        %6173 = vmatpush1.msra.mxu0 0.0
        %6174 = vmatprep.subr.mxu0 0.0
        %6175 = vmatpush1.msra.mxu0 0.0
        %6176 = vmatprep.subr.mxu0 0.0
        %6177 = vmatpush1.msra.mxu0 %v6147
        %6178 = vmatprep.subr.mxu0 0.0
        %6179 = vmatpush1.msra.mxu0 %v6146
        %6180 = vmatprep.subr.mxu0 0.0
        %6181 = vmatpush2.msra.mxu0 0.0
        %6182 = vmatprep.subr.mxu0 0.0
        %6183 = vmatpush2.msra.mxu0 0.0
        %6184 = vmatprep.subr.mxu0 0.0
        %6185 = vmatpush2.msra.mxu0 0.0
        %6186 = vmatprep.subr.mxu0 0.0
        %6187 = vmatpush2.msra.mxu0 0.0
        %6188 = vmatprep.subr.mxu0 0.0
        %6189 = vmatpush2.msra.mxu0 0.0
        %6190 = vmatprep.subr.mxu0 0.0
        %6191 = vmatpush2.msra.mxu0 0.0
        %6192 = vmatprep.subr.mxu0 0.0
        %6193 = vmatpush2.msra.mxu0 0.0
        %6194 = vmatprep.subr.mxu0 0.0
        %6195 = vmatpush2.msra.mxu0 0.0
        %6196 = vmatprep.subr.mxu0 0.0
        %6197 = vmatpush2.msra.mxu0 0.0
        %6198 = vmatprep.subr.mxu0 0.0
        %6199 = vmatpush2.msra.mxu0 0.0
        %6200 = vmatprep.subr.mxu0 0.0
        %6201 = vmatpush2.msra.mxu0 0.0
        %6202 = vmatprep.subr.mxu0 0.0
        %6203 = vmatpush2.msra.mxu0 0.0
        %6204 = vmatprep.subr.mxu0 0.0
        %6205 = vmatpush2.msra.mxu0 0.0
        %6206 = vmatprep.subr.mxu0 0.0
        %6207 = vmatpush2.msra.mxu0 0.0
        %6208 = vmatprep.subr.mxu0 0.0
        %6209 = vmatpush2.msra.mxu0 0.0
        %6210 = vmatprep.subr.mxu0 0.0
        %6211 = vmatpush2.msra.mxu0 0.0
        %6212 = vmatprep.mubr.f32.mxu0 0.0
        %6213 = vmatmul.mubr.f32.gmra.mxu0 %v582
        %v6214 = vpop.f32.mrf.mxu0
        %v6215 = vadd.f32 0.0, %v6214
        %v6216 = vpop.f32.mrf.mxu0
        %6217 = vdwg.mxu0
        %v6219 = vsel %vm1521, %v6135, 0
        %6221 = vmatprep.subr.mxu0 0.0
        %6222 = vmatpush1.msra.mxu0 0.0
        %6223 = vmatprep.subr.mxu0 0.0
        %6224 = vmatpush1.msra.mxu0 0.0
        %6225 = vmatprep.subr.mxu0 0.0
        %6226 = vmatpush1.msra.mxu0 0.0
        %6227 = vmatprep.subr.mxu0 0.0
        %6228 = vmatpush1.msra.mxu0 0.0
        %6229 = vmatprep.subr.mxu0 0.0
        %6230 = vmatpush1.msra.mxu0 0.0
        %6231 = vmatprep.subr.mxu0 0.0
        %6232 = vmatpush1.msra.mxu0 0.0
        %6233 = vmatprep.subr.mxu0 0.0
        %6234 = vmatpush1.msra.mxu0 0.0
        %6235 = vmatprep.subr.mxu0 0.0
        %6236 = vmatpush1.msra.mxu0 0.0
        %6237 = vmatprep.subr.mxu0 0.0
        %6238 = vmatpush1.msra.mxu0 %v6145
        %6239 = vmatprep.subr.mxu0 0.0
        %6240 = vmatpush1.msra.mxu0 %v6144
        %6241 = vmatprep.subr.mxu0 0.0
        %6242 = vmatpush1.msra.mxu0 %v6143
        %6243 = vmatprep.subr.mxu0 0.0
        %6244 = vmatpush1.msra.mxu0 %v6142
        %6245 = vmatprep.subr.mxu0 0.0
        %6246 = vmatpush1.msra.mxu0 %v6141
        %6247 = vmatprep.subr.mxu0 0.0
        %6248 = vmatpush1.msra.mxu0 %v6140
        %6249 = vmatprep.subr.mxu0 0.0
        %6250 = vmatpush1.msra.mxu0 %v6139
        %6251 = vmatprep.subr.mxu0 0.0
        %6252 = vmatpush1.msra.mxu0 %v6138
        %6253 = vmatprep.subr.mxu0 0.0
        %6254 = vmatpush2.msra.mxu0 0.0
        %6255 = vmatprep.subr.mxu0 0.0
        %6256 = vmatpush2.msra.mxu0 0.0
        %6257 = vmatprep.subr.mxu0 0.0
        %6258 = vmatpush2.msra.mxu0 0.0
        %6259 = vmatprep.subr.mxu0 0.0
        %6260 = vmatpush2.msra.mxu0 0.0
        %6261 = vmatprep.subr.mxu0 0.0
        %6262 = vmatpush2.msra.mxu0 0.0
        %6263 = vmatprep.subr.mxu0 0.0
        %6264 = vmatpush2.msra.mxu0 0.0
        %6265 = vmatprep.subr.mxu0 0.0
        %6266 = vmatpush2.msra.mxu0 0.0
        %6267 = vmatprep.subr.mxu0 0.0
        %6268 = vmatpush2.msra.mxu0 0.0
        %6269 = vmatprep.subr.mxu0 0.0
        %6270 = vmatpush2.msra.mxu0 0.0
        %6271 = vmatprep.subr.mxu0 0.0
        %6272 = vmatpush2.msra.mxu0 0.0
        %6273 = vmatprep.subr.mxu0 0.0
        %6274 = vmatpush2.msra.mxu0 0.0
        %6275 = vmatprep.subr.mxu0 0.0
        %6276 = vmatpush2.msra.mxu0 0.0
        %6277 = vmatprep.subr.mxu0 0.0
        %6278 = vmatpush2.msra.mxu0 0.0
        %6279 = vmatprep.subr.mxu0 0.0
        %6280 = vmatpush2.msra.mxu0 0.0
        %6281 = vmatprep.subr.mxu0 0.0
        %6282 = vmatpush2.msra.mxu0 0.0
        %6283 = vmatprep.subr.mxu0 0.0
        %6284 = vmatpush2.msra.mxu0 0.0
        %6285 = vmatprep.mubr.f32.mxu0 0.0
        %6286 = vmatmul.mubr.f32.gmra.mxu0 %v6219
        %v6287 = vpop.f32.mrf.mxu0
        %v6288 = vadd.f32 %v6215, %v6287
        %v6289 = vpop.f32.mrf.mxu0
        %6290 = vdwg.mxu0
        %v6291 = vld [vmem:[%s9] sm:$0x1]
        %v6293 = vlaneseq
        %v6294 = vshrl.u32 %v6293, 7
        %v6295 = vsub.s32 0, %v6294
        %v6296 = vrot.slane %v6291, %v6295
        %v6298 = vadd.f32 %v6288, %v6296
        %v6299 = vmul.f32 %v6298, 0.1
        %v6300 = vmax.f32 %v6298, %v6299
        %v6301 = vld [vmem:[%s10] sm:$0xff]
        %v6302 = vld [vmem:[%s10 + $0x8] sm:$0xff]
        %v6303 = vld [vmem:[%s11] sm:$0x1]
        %v6305 = vlaneseq
        %v6306 = vshrl.u32 %v6305, 7
        %v6307 = vsub.s32 0, %v6306
        %v6308 = vrot.slane %v6303, %v6307
        %v6311 = vsel %vm581, %v6300, 0
        %6313 = vmatprep.subr.mxu0 0.0
        %6314 = vmatpush1.msra.mxu0 0.0
        %6315 = vmatprep.subr.mxu0 0.0
        %6316 = vmatpush1.msra.mxu0 0.0
        %6317 = vmatprep.subr.mxu0 0.0
        %6318 = vmatpush1.msra.mxu0 0.0
        %6319 = vmatprep.subr.mxu0 0.0
        %6320 = vmatpush1.msra.mxu0 0.0
        %6321 = vmatprep.subr.mxu0 0.0
        %6322 = vmatpush1.msra.mxu0 0.0
        %6323 = vmatprep.subr.mxu0 0.0
        %6324 = vmatpush1.msra.mxu0 0.0
        %6325 = vmatprep.subr.mxu0 0.0
        %6326 = vmatpush1.msra.mxu0 0.0
        %6327 = vmatprep.subr.mxu0 0.0
        %6328 = vmatpush1.msra.mxu0 0.0
        %6329 = vmatprep.subr.mxu0 0.0
        %6330 = vmatpush1.msra.mxu0 0.0
        %6331 = vmatprep.subr.mxu0 0.0
        %6332 = vmatpush1.msra.mxu0 0.0
        %6333 = vmatprep.subr.mxu0 0.0
        %6334 = vmatpush1.msra.mxu0 0.0
        %6335 = vmatprep.subr.mxu0 0.0
        %6336 = vmatpush1.msra.mxu0 0.0
        %6337 = vmatprep.subr.mxu0 0.0
        %6338 = vmatpush1.msra.mxu0 0.0
        %6339 = vmatprep.subr.mxu0 0.0
        %6340 = vmatpush1.msra.mxu0 0.0
        %6341 = vmatprep.subr.mxu0 0.0
        %6342 = vmatpush1.msra.mxu0 %v6302
        %6343 = vmatprep.subr.mxu0 0.0
        %6344 = vmatpush1.msra.mxu0 %v6301
        %6345 = vmatprep.subr.mxu0 0.0
        %6346 = vmatpush2.msra.mxu0 0.0
        %6347 = vmatprep.subr.mxu0 0.0
        %6348 = vmatpush2.msra.mxu0 0.0
        %6349 = vmatprep.subr.mxu0 0.0
        %6350 = vmatpush2.msra.mxu0 0.0
        %6351 = vmatprep.subr.mxu0 0.0
        %6352 = vmatpush2.msra.mxu0 0.0
        %6353 = vmatprep.subr.mxu0 0.0
        %6354 = vmatpush2.msra.mxu0 0.0
        %6355 = vmatprep.subr.mxu0 0.0
        %6356 = vmatpush2.msra.mxu0 0.0
        %6357 = vmatprep.subr.mxu0 0.0
        %6358 = vmatpush2.msra.mxu0 0.0
        %6359 = vmatprep.subr.mxu0 0.0
        %6360 = vmatpush2.msra.mxu0 0.0
        %6361 = vmatprep.subr.mxu0 0.0
        %6362 = vmatpush2.msra.mxu0 0.0
        %6363 = vmatprep.subr.mxu0 0.0
        %6364 = vmatpush2.msra.mxu0 0.0
        %6365 = vmatprep.subr.mxu0 0.0
        %6366 = vmatpush2.msra.mxu0 0.0
        %6367 = vmatprep.subr.mxu0 0.0
        %6368 = vmatpush2.msra.mxu0 0.0
        %6369 = vmatprep.subr.mxu0 0.0
        %6370 = vmatpush2.msra.mxu0 0.0
        %6371 = vmatprep.subr.mxu0 0.0
        %6372 = vmatpush2.msra.mxu0 0.0
        %6373 = vmatprep.subr.mxu0 0.0
        %6374 = vmatpush2.msra.mxu0 0.0
        %6375 = vmatprep.subr.mxu0 0.0
        %6376 = vmatpush2.msra.mxu0 0.0
        %6377 = vmatprep.mubr.f32.mxu0 0.0
        %6378 = vmatmul.mubr.f32.gmra.mxu0 %v6311
        %v6379 = vpop.f32.mrf.mxu0
        %v6380 = vadd.f32 %v6308, %v6379
        %v6381 = vpop.f32.mrf.mxu0
        %6382 = vdwg.mxu0
        %v6383 = vxor.u32 %v6380, 2147483648
        %v6384 = vmul.f32 %v6383, 1.442695
        %v6385 = vpow.pop %v6384
        %v6386 = vadd.f32 %v6385, 1.0
        %v6387 = vrcp.pop %v6386
        %v6388 = vmul.f32 1.0, %v6387
        %v6389 = vld [vmem:[%s6] sm:$0xff]
        %v6390 = vld [vmem:[%s6 + $0x8] sm:$0xff]
        %v6391 = vld [vmem:[%s6 + $0x10] sm:$0xff]
        %v6392 = vld [vmem:[%s6 + $0x18] sm:$0xff]
        %v6393 = vld [vmem:[%s6 + $0x20] sm:$0xff]
        %v6394 = vld [vmem:[%s6 + $0x28] sm:$0xff]
        %v6395 = vld [vmem:[%s6 + $0x30] sm:$0xff]
        %v6396 = vld [vmem:[%s6 + $0x38] sm:$0xff]
        %v6397 = vld [vmem:[%s6 + $0x40] sm:$0xff]
        %v6398 = vld [vmem:[%s6 + $0x48] sm:$0xff]
        %v6399 = vld [vmem:[%s6 + $0x50] sm:$0xff]
        %v6400 = vld [vmem:[%s6 + $0x58] sm:$0xff]
        %v6401 = vld [vmem:[%s6 + $0x60] sm:$0xff]
        %v6402 = vld [vmem:[%s6 + $0x68] sm:$0xff]
        %v6403 = vld [vmem:[%s6 + $0x70] sm:$0xff]
        %v6404 = vld [vmem:[%s6 + $0x78] sm:$0xff]
        %v6405 = vld [vmem:[%s6 + $0x80] sm:$0xff]
        %v6406 = vld [vmem:[%s6 + $0x88] sm:$0xff]
        %v6407 = vld [vmem:[%s6 + $0x90] sm:$0xff]
        %v6408 = vld [vmem:[%s6 + $0x98] sm:$0xff]
        %v6409 = vld [vmem:[%s6 + $0xa0] sm:$0xff]
        %v6410 = vld [vmem:[%s6 + $0xa8] sm:$0xff]
        %v6411 = vld [vmem:[%s6 + $0xb0] sm:$0xff]
        %v6412 = vld [vmem:[%s6 + $0xb8] sm:$0xff]
        %v6413 = vld [vmem:[%s6 + $0xc0] sm:$0xff]
        %v6414 = vld [vmem:[%s6 + $0xc8] sm:$0xff]
        %v6415 = vld [vmem:[%s6 + $0xd0] sm:$0xff]
        %v6416 = vld [vmem:[%s6 + $0xd8] sm:$0xff]
        %v6417 = vld [vmem:[%s6 + $0xe0] sm:$0xff]
        %v6418 = vld [vmem:[%s6 + $0xe8] sm:$0xff]
        %v6419 = vld [vmem:[%s6 + $0xf0] sm:$0xff]
        %v6420 = vld [vmem:[%s6 + $0xf8] sm:$0xff]
        %v6422 = vsel %vm1521, %v6388, 0
        %6424 = vmatprep.subr.mxu0 0.0
        %6425 = vmatpush1.msra.mxu0 0.0
        %6426 = vmatprep.subr.mxu0 0.0
        %6427 = vmatpush1.msra.mxu0 0.0
        %6428 = vmatprep.subr.mxu0 0.0
        %6429 = vmatpush1.msra.mxu0 0.0
        %6430 = vmatprep.subr.mxu0 0.0
        %6431 = vmatpush1.msra.mxu0 0.0
        %6432 = vmatprep.subr.mxu0 0.0
        %6433 = vmatpush1.msra.mxu0 0.0
        %6434 = vmatprep.subr.mxu0 0.0
        %6435 = vmatpush1.msra.mxu0 0.0
        %6436 = vmatprep.subr.mxu0 0.0
        %6437 = vmatpush1.msra.mxu0 0.0
        %6438 = vmatprep.subr.mxu0 0.0
        %6439 = vmatpush1.msra.mxu0 0.0
        %6440 = vmatprep.subr.mxu0 %v6418
        %6441 = vmatpush1.msra.mxu0 %v6417
        %6442 = vmatprep.subr.mxu0 %v6414
        %6443 = vmatpush1.msra.mxu0 %v6413
        %6444 = vmatprep.subr.mxu0 %v6410
        %6445 = vmatpush1.msra.mxu0 %v6409
        %6446 = vmatprep.subr.mxu0 %v6406
        %6447 = vmatpush1.msra.mxu0 %v6405
        %6448 = vmatprep.subr.mxu0 %v6402
        %6449 = vmatpush1.msra.mxu0 %v6401
        %6450 = vmatprep.subr.mxu0 %v6398
        %6451 = vmatpush1.msra.mxu0 %v6397
        %6452 = vmatprep.subr.mxu0 %v6394
        %6453 = vmatpush1.msra.mxu0 %v6393
        %6454 = vmatprep.subr.mxu0 %v6390
        %6455 = vmatpush1.msra.mxu0 %v6389
        %6456 = vmatprep.subr.mxu0 0.0
        %6457 = vmatpush2.msra.mxu0 0.0
        %6458 = vmatprep.subr.mxu0 0.0
        %6459 = vmatpush2.msra.mxu0 0.0
        %6460 = vmatprep.subr.mxu0 0.0
        %6461 = vmatpush2.msra.mxu0 0.0
        %6462 = vmatprep.subr.mxu0 0.0
        %6463 = vmatpush2.msra.mxu0 0.0
        %6464 = vmatprep.subr.mxu0 0.0
        %6465 = vmatpush2.msra.mxu0 0.0
        %6466 = vmatprep.subr.mxu0 0.0
        %6467 = vmatpush2.msra.mxu0 0.0
        %6468 = vmatprep.subr.mxu0 0.0
        %6469 = vmatpush2.msra.mxu0 0.0
        %6470 = vmatprep.subr.mxu0 0.0
        %6471 = vmatpush2.msra.mxu0 0.0
        %6472 = vmatprep.subr.mxu0 0.0
        %6473 = vmatpush2.msra.mxu0 0.0
        %6474 = vmatprep.subr.mxu0 0.0
        %6475 = vmatpush2.msra.mxu0 0.0
        %6476 = vmatprep.subr.mxu0 0.0
        %6477 = vmatpush2.msra.mxu0 0.0
        %6478 = vmatprep.subr.mxu0 0.0
        %6479 = vmatpush2.msra.mxu0 0.0
        %6480 = vmatprep.subr.mxu0 0.0
        %6481 = vmatpush2.msra.mxu0 0.0
        %6482 = vmatprep.subr.mxu0 0.0
        %6483 = vmatpush2.msra.mxu0 0.0
        %6484 = vmatprep.subr.mxu0 0.0
        %6485 = vmatpush2.msra.mxu0 0.0
        %6486 = vmatprep.subr.mxu0 0.0
        %6487 = vmatpush2.msra.mxu0 0.0
        %6488 = vmatprep.mubr.f32.mxu0 0.0
        %6489 = vmatmul.mubr.f32.gmra.mxu0 %v6422
        %v6490 = vpop.f32.mrf.mxu0
        %v6491 = vadd.f32 0.0, %v6490
        %v6492 = vpop.f32.mrf.mxu0
        %v6493 = vadd.f32 0.0, %v6492
        %6494 = vdwg.mxu0
        %6495 = vmatprep.subr.mxu0 0.0
        %6496 = vmatpush1.msra.mxu0 0.0
        %6497 = vmatprep.subr.mxu0 0.0
        %6498 = vmatpush1.msra.mxu0 0.0
        %6499 = vmatprep.subr.mxu0 0.0
        %6500 = vmatpush1.msra.mxu0 0.0
        %6501 = vmatprep.subr.mxu0 0.0
        %6502 = vmatpush1.msra.mxu0 0.0
        %6503 = vmatprep.subr.mxu0 0.0
        %6504 = vmatpush1.msra.mxu0 0.0
        %6505 = vmatprep.subr.mxu0 0.0
        %6506 = vmatpush1.msra.mxu0 0.0
        %6507 = vmatprep.subr.mxu0 0.0
        %6508 = vmatpush1.msra.mxu0 0.0
        %6509 = vmatprep.subr.mxu0 0.0
        %6510 = vmatpush1.msra.mxu0 0.0
        %6511 = vmatprep.subr.mxu0 %v6420
        %6512 = vmatpush1.msra.mxu0 %v6419
        %6513 = vmatprep.subr.mxu0 %v6416
        %6514 = vmatpush1.msra.mxu0 %v6415
        %6515 = vmatprep.subr.mxu0 %v6412
        %6516 = vmatpush1.msra.mxu0 %v6411
        %6517 = vmatprep.subr.mxu0 %v6408
        %6518 = vmatpush1.msra.mxu0 %v6407
        %6519 = vmatprep.subr.mxu0 %v6404
        %6520 = vmatpush1.msra.mxu0 %v6403
        %6521 = vmatprep.subr.mxu0 %v6400
        %6522 = vmatpush1.msra.mxu0 %v6399
        %6523 = vmatprep.subr.mxu0 %v6396
        %6524 = vmatpush1.msra.mxu0 %v6395
        %6525 = vmatprep.subr.mxu0 %v6392
        %6526 = vmatpush1.msra.mxu0 %v6391
        %6527 = vmatprep.subr.mxu0 0.0
        %6528 = vmatpush2.msra.mxu0 0.0
        %6529 = vmatprep.subr.mxu0 0.0
        %6530 = vmatpush2.msra.mxu0 0.0
        %6531 = vmatprep.subr.mxu0 0.0
        %6532 = vmatpush2.msra.mxu0 0.0
        %6533 = vmatprep.subr.mxu0 0.0
        %6534 = vmatpush2.msra.mxu0 0.0
        %6535 = vmatprep.subr.mxu0 0.0
        %6536 = vmatpush2.msra.mxu0 0.0
        %6537 = vmatprep.subr.mxu0 0.0
        %6538 = vmatpush2.msra.mxu0 0.0
        %6539 = vmatprep.subr.mxu0 0.0
        %6540 = vmatpush2.msra.mxu0 0.0
        %6541 = vmatprep.subr.mxu0 0.0
        %6542 = vmatpush2.msra.mxu0 0.0
        %6543 = vmatprep.subr.mxu0 0.0
        %6544 = vmatpush2.msra.mxu0 0.0
        %6545 = vmatprep.subr.mxu0 0.0
        %6546 = vmatpush2.msra.mxu0 0.0
        %6547 = vmatprep.subr.mxu0 0.0
        %6548 = vmatpush2.msra.mxu0 0.0
        %6549 = vmatprep.subr.mxu0 0.0
        %6550 = vmatpush2.msra.mxu0 0.0
        %6551 = vmatprep.subr.mxu0 0.0
        %6552 = vmatpush2.msra.mxu0 0.0
        %6553 = vmatprep.subr.mxu0 0.0
        %6554 = vmatpush2.msra.mxu0 0.0
        %6555 = vmatprep.subr.mxu0 0.0
        %6556 = vmatpush2.msra.mxu0 0.0
        %6557 = vmatprep.subr.mxu0 0.0
        %6558 = vmatpush2.msra.mxu0 0.0
        %6559 = vmatprep.mubr.f32.mxu0 0.0
        %6560 = vmatmul.mubr.f32.gmra.mxu0 %v6422
        %v6561 = vpop.f32.mrf.mxu0
        %v6562 = vadd.f32 0.0, %v6561
        %v6563 = vpop.f32.mrf.mxu0
        %v6564 = vadd.f32 0.0, %v6563
        %6565 = vdwg.mxu0
        %v6570 = vcombine.low %v6491, %v6493
        %v6571 = vcombine.high %v6491, %v6493
        %v6572 = vcombine.low %v6562, %v6564
        %v6573 = vcombine.high %v6562, %v6564
        %v6575 = vunpack.c.l.s4 1966171168
        %v6576 = vunpack.c.0.s8 %v6575
        %v6577 = vlaneseq
        %v6578 = vshrl.u32 %v6577, 7
        %v6579 = vsub.s32 %v6576, %v6578
        %v6580 = vrot.slane %v6570, %v6579
        %v6582 = vunpack.c.l.s4 1966171168
        %v6583 = vunpack.c.0.s8 %v6582
        %v6584 = vlaneseq
        %v6585 = vshrl.u32 %v6584, 7
        %v6586 = vsub.s32 %v6583, %v6585
        %v6587 = vrot.slane %v6571, %v6586
        %v6589 = vunpack.c.l.s4 1966171168
        %v6590 = vunpack.c.0.s8 %v6589
        %v6591 = vlaneseq
        %v6592 = vshrl.u32 %v6591, 7
        %v6593 = vsub.s32 %v6590, %v6592
        %v6594 = vrot.slane %v6572, %v6593
        %v6596 = vunpack.c.l.s4 1966171168
        %v6597 = vunpack.c.0.s8 %v6596
        %v6598 = vlaneseq
        %v6599 = vshrl.u32 %v6598, 7
        %v6600 = vsub.s32 %v6597, %v6599
        %v6601 = vrot.slane %v6573, %v6600
        %v6602 = vcombine.low %v6580, %v6594
        %v6603 = vcombine.high %v6580, %v6594
        %v6604 = vcombine.low %v6587, %v6601
        %v6605 = vcombine.high %v6587, %v6601
        %v6607 = vunpack.c.l.s4 1966171168
        %v6608 = vunpack.c.0.s8 %v6607
        %v6609 = vlaneseq
        %v6610 = vshrl.u32 %v6609, 7
        %v6611 = vsub.s32 %v6608, %v6610
        %v6612 = vrot.slane %v6602, %v6611
        %v6614 = vunpack.c.l.s4 1966171168
        %v6615 = vunpack.c.0.s8 %v6614
        %v6616 = vlaneseq
        %v6617 = vshrl.u32 %v6616, 7
        %v6618 = vsub.s32 %v6615, %v6617
        %v6619 = vrot.slane %v6604, %v6618
        %v6621 = vunpack.c.l.s4 1966171168
        %v6622 = vunpack.c.0.s8 %v6621
        %v6623 = vlaneseq
        %v6624 = vshrl.u32 %v6623, 7
        %v6625 = vsub.s32 %v6622, %v6624
        %v6626 = vrot.slane %v6603, %v6625
        %v6628 = vunpack.c.l.s4 1966171168
        %v6629 = vunpack.c.0.s8 %v6628
        %v6630 = vlaneseq
        %v6631 = vshrl.u32 %v6630, 7
        %v6632 = vsub.s32 %v6629, %v6631
        %v6633 = vrot.slane %v6605, %v6632
        %v6634 = vcombine.high %v6612, %v6612
        %v6635 = vcombine.high %v6619, %v6619
        %v6636 = vcombine.high %v6626, %v6626
        %v6637 = vcombine.high %v6633, %v6633
        %v6646 = vadd.f32 %v6612, 1.0
        %v6647 = vadd.f32 %v6626, 1.0
        %v6648 = vadd.f32 %v6634, 1.0
        %v6649 = vadd.f32 %v6636, 1.0
        %v6650 = vadd.f32 %v6619, 1.0
        %v6651 = vadd.f32 %v6633, 1.0
        %v6652 = vadd.f32 %v6635, 1.0
        %v6653 = vadd.f32 %v6637, 1.0
        %v6662 = vlaneseq
        %v6663 = vshrl.u32 %v6662, 7
        %v6664 = vsub.s32 0, %v6663
        %v6665 = vrot.slane %v6646, %v6664
        %v6666 = vlaneseq
        %v6667 = vshrl.u32 %v6666, 7
        %v6668 = vsub.s32 1, %v6667
        %v6669 = vrot.slane %v6646, %v6668
        %v6670 = vlaneseq
        %v6671 = vshrl.u32 %v6670, 7
        %v6672 = vsub.s32 2, %v6671
        %v6673 = vrot.slane %v6646, %v6672
        %v6674 = vlaneseq
        %v6675 = vshrl.u32 %v6674, 7
        %v6676 = vsub.s32 3, %v6675
        %v6677 = vrot.slane %v6646, %v6676
        %v6678 = vlaneseq
        %v6679 = vshrl.u32 %v6678, 7
        %v6680 = vsub.s32 0, %v6679
        %v6681 = vrot.slane %v6647, %v6680
        %v6682 = vlaneseq
        %v6683 = vshrl.u32 %v6682, 7
        %v6684 = vsub.s32 1, %v6683
        %v6685 = vrot.slane %v6647, %v6684
        %v6686 = vlaneseq
        %v6687 = vshrl.u32 %v6686, 7
        %v6688 = vsub.s32 2, %v6687
        %v6689 = vrot.slane %v6647, %v6688
        %v6690 = vlaneseq
        %v6691 = vshrl.u32 %v6690, 7
        %v6692 = vsub.s32 3, %v6691
        %v6693 = vrot.slane %v6647, %v6692
        %v6694 = vlaneseq
        %v6695 = vshrl.u32 %v6694, 7
        %v6696 = vsub.s32 0, %v6695
        %v6697 = vrot.slane %v6648, %v6696
        %v6698 = vlaneseq
        %v6699 = vshrl.u32 %v6698, 7
        %v6700 = vsub.s32 1, %v6699
        %v6701 = vrot.slane %v6648, %v6700
        %v6702 = vlaneseq
        %v6703 = vshrl.u32 %v6702, 7
        %v6704 = vsub.s32 2, %v6703
        %v6705 = vrot.slane %v6648, %v6704
        %v6706 = vlaneseq
        %v6707 = vshrl.u32 %v6706, 7
        %v6708 = vsub.s32 3, %v6707
        %v6709 = vrot.slane %v6648, %v6708
        %v6710 = vlaneseq
        %v6711 = vshrl.u32 %v6710, 7
        %v6712 = vsub.s32 0, %v6711
        %v6713 = vrot.slane %v6649, %v6712
        %v6714 = vlaneseq
        %v6715 = vshrl.u32 %v6714, 7
        %v6716 = vsub.s32 1, %v6715
        %v6717 = vrot.slane %v6649, %v6716
        %v6718 = vlaneseq
        %v6719 = vshrl.u32 %v6718, 7
        %v6720 = vsub.s32 2, %v6719
        %v6721 = vrot.slane %v6649, %v6720
        %v6722 = vlaneseq
        %v6723 = vshrl.u32 %v6722, 7
        %v6724 = vsub.s32 3, %v6723
        %v6725 = vrot.slane %v6649, %v6724
        %v6726 = vlaneseq
        %v6727 = vshrl.u32 %v6726, 7
        %v6728 = vsub.s32 0, %v6727
        %v6729 = vrot.slane %v6650, %v6728
        %v6730 = vlaneseq
        %v6731 = vshrl.u32 %v6730, 7
        %v6732 = vsub.s32 1, %v6731
        %v6733 = vrot.slane %v6650, %v6732
        %v6734 = vlaneseq
        %v6735 = vshrl.u32 %v6734, 7
        %v6736 = vsub.s32 2, %v6735
        %v6737 = vrot.slane %v6650, %v6736
        %v6738 = vlaneseq
        %v6739 = vshrl.u32 %v6738, 7
        %v6740 = vsub.s32 3, %v6739
        %v6741 = vrot.slane %v6650, %v6740
        %v6742 = vlaneseq
        %v6743 = vshrl.u32 %v6742, 7
        %v6744 = vsub.s32 0, %v6743
        %v6745 = vrot.slane %v6651, %v6744
        %v6746 = vlaneseq
        %v6747 = vshrl.u32 %v6746, 7
        %v6748 = vsub.s32 1, %v6747
        %v6749 = vrot.slane %v6651, %v6748
        %v6750 = vlaneseq
        %v6751 = vshrl.u32 %v6750, 7
        %v6752 = vsub.s32 2, %v6751
        %v6753 = vrot.slane %v6651, %v6752
        %v6754 = vlaneseq
        %v6755 = vshrl.u32 %v6754, 7
        %v6756 = vsub.s32 3, %v6755
        %v6757 = vrot.slane %v6651, %v6756
        %v6758 = vlaneseq
        %v6759 = vshrl.u32 %v6758, 7
        %v6760 = vsub.s32 0, %v6759
        %v6761 = vrot.slane %v6652, %v6760
        %v6762 = vlaneseq
        %v6763 = vshrl.u32 %v6762, 7
        %v6764 = vsub.s32 1, %v6763
        %v6765 = vrot.slane %v6652, %v6764
        %v6766 = vlaneseq
        %v6767 = vshrl.u32 %v6766, 7
        %v6768 = vsub.s32 2, %v6767
        %v6769 = vrot.slane %v6652, %v6768
        %v6770 = vlaneseq
        %v6771 = vshrl.u32 %v6770, 7
        %v6772 = vsub.s32 3, %v6771
        %v6773 = vrot.slane %v6652, %v6772
        %v6774 = vlaneseq
        %v6775 = vshrl.u32 %v6774, 7
        %v6776 = vsub.s32 0, %v6775
        %v6777 = vrot.slane %v6653, %v6776
        %v6778 = vlaneseq
        %v6779 = vshrl.u32 %v6778, 7
        %v6780 = vsub.s32 1, %v6779
        %v6781 = vrot.slane %v6653, %v6780
        %v6782 = vlaneseq
        %v6783 = vshrl.u32 %v6782, 7
        %v6784 = vsub.s32 2, %v6783
        %v6785 = vrot.slane %v6653, %v6784
        %v6786 = vlaneseq
        %v6787 = vshrl.u32 %v6786, 7
        %v6788 = vsub.s32 3, %v6787
        %v6789 = vrot.slane %v6653, %v6788
        %v6822 = vmul.f32 %v5446, %v6665
        %v6823 = vmul.f32 %v5511, %v6669
        %v6824 = vmul.f32 %v5576, %v6673
        %v6825 = vmul.f32 %v5641, %v6677
        %v6826 = vmul.f32 %v5449, %v6681
        %v6827 = vmul.f32 %v5514, %v6685
        %v6828 = vmul.f32 %v5579, %v6689
        %v6829 = vmul.f32 %v5644, %v6693
        %v6830 = vmul.f32 %v5454, %v6697
        %v6831 = vmul.f32 %v5519, %v6701
        %v6832 = vmul.f32 %v5584, %v6705
        %v6833 = vmul.f32 %v5649, %v6709
        %v6834 = vmul.f32 %v5457, %v6713
        %v6835 = vmul.f32 %v5522, %v6717
        %v6836 = vmul.f32 %v5587, %v6721
        %v6837 = vmul.f32 %v5652, %v6725
        %v6838 = vmul.f32 %v5462, %v6729
        %v6839 = vmul.f32 %v5527, %v6733
        %v6840 = vmul.f32 %v5592, %v6737
        %v6841 = vmul.f32 %v5657, %v6741
        %v6842 = vmul.f32 %v5465, %v6745
        %v6843 = vmul.f32 %v5530, %v6749
        %v6844 = vmul.f32 %v5595, %v6753
        %v6845 = vmul.f32 %v5660, %v6757
        %v6846 = vmul.f32 %v5470, %v6761
        %v6847 = vmul.f32 %v5535, %v6765
        %v6848 = vmul.f32 %v5600, %v6769
        %v6849 = vmul.f32 %v5665, %v6773
        %v6850 = vmul.f32 %v5473, %v6777
        %v6851 = vmul.f32 %v5538, %v6781
        %v6852 = vmul.f32 %v5603, %v6785
        %v6853 = vmul.f32 %v5668, %v6789
        %v6854 = vadd.f32 %v6822, %v482
        %v6855 = vadd.f32 %v6823, %v483
        %v6856 = vadd.f32 %v6824, %v484
        %v6857 = vadd.f32 %v6825, %v485
        %v6858 = vadd.f32 %v6826, %v486
        %v6859 = vadd.f32 %v6827, %v487
        %v6860 = vadd.f32 %v6828, %v488
        %v6861 = vadd.f32 %v6829, %v489
        %v6862 = vadd.f32 %v6830, %v490
        %v6863 = vadd.f32 %v6831, %v491
        %v6864 = vadd.f32 %v6832, %v492
        %v6865 = vadd.f32 %v6833, %v493
        %v6866 = vadd.f32 %v6834, %v494
        %v6867 = vadd.f32 %v6835, %v495
        %v6868 = vadd.f32 %v6836, %v496
        %v6869 = vadd.f32 %v6837, %v497
        %v6870 = vadd.f32 %v6838, %v498
        %v6871 = vadd.f32 %v6839, %v499
        %v6872 = vadd.f32 %v6840, %v500
        %v6873 = vadd.f32 %v6841, %v501
        %v6874 = vadd.f32 %v6842, %v502
        %v6875 = vadd.f32 %v6843, %v503
        %v6876 = vadd.f32 %v6844, %v504
        %v6877 = vadd.f32 %v6845, %v505
        %v6878 = vadd.f32 %v6846, %v506
        %v6879 = vadd.f32 %v6847, %v507
        %v6880 = vadd.f32 %v6848, %v508
        %v6881 = vadd.f32 %v6849, %v509
        %v6882 = vadd.f32 %v6850, %v510
        %v6883 = vadd.f32 %v6851, %v511
        %v6884 = vadd.f32 %v6852, %v512
        %v6885 = vadd.f32 %v6853, %v513
        %6886 = vst [vmem:[%s467] sm:$0xff] %v6854
        %6887 = vst [vmem:[%s467 + $0x8] sm:$0xff] %v6855
        %6888 = vst [vmem:[%s467 + $0x10] sm:$0xff] %v6856
        %6889 = vst [vmem:[%s467 + $0x18] sm:$0xff] %v6857
        %6890 = vst [vmem:[%s467 + $0x20] sm:$0xff] %v6858
        %6891 = vst [vmem:[%s467 + $0x28] sm:$0xff] %v6859
        %6892 = vst [vmem:[%s467 + $0x30] sm:$0xff] %v6860
        %6893 = vst [vmem:[%s467 + $0x38] sm:$0xff] %v6861
        %6894 = vst [vmem:[%s467 + $0x40] sm:$0xff] %v6862
        %6895 = vst [vmem:[%s467 + $0x48] sm:$0xff] %v6863
        %6896 = vst [vmem:[%s467 + $0x50] sm:$0xff] %v6864
        %6897 = vst [vmem:[%s467 + $0x58] sm:$0xff] %v6865
        %6898 = vst [vmem:[%s467 + $0x60] sm:$0xff] %v6866
        %6899 = vst [vmem:[%s467 + $0x68] sm:$0xff] %v6867
        %6900 = vst [vmem:[%s467 + $0x70] sm:$0xff] %v6868
        %6901 = vst [vmem:[%s467 + $0x78] sm:$0xff] %v6869
        %6902 = vst [vmem:[%s467 + $0x80] sm:$0xff] %v6870
        %6903 = vst [vmem:[%s467 + $0x88] sm:$0xff] %v6871
        %6904 = vst [vmem:[%s467 + $0x90] sm:$0xff] %v6872
        %6905 = vst [vmem:[%s467 + $0x98] sm:$0xff] %v6873
        %6906 = vst [vmem:[%s467 + $0xa0] sm:$0xff] %v6874
        %6907 = vst [vmem:[%s467 + $0xa8] sm:$0xff] %v6875
        %6908 = vst [vmem:[%s467 + $0xb0] sm:$0xff] %v6876
        %6909 = vst [vmem:[%s467 + $0xb8] sm:$0xff] %v6877
        %6910 = vst [vmem:[%s467 + $0xc0] sm:$0xff] %v6878
        %6911 = vst [vmem:[%s467 + $0xc8] sm:$0xff] %v6879
        %6912 = vst [vmem:[%s467 + $0xd0] sm:$0xff] %v6880
        %6913 = vst [vmem:[%s467 + $0xd8] sm:$0xff] %v6881
        %6914 = vst [vmem:[%s467 + $0xe0] sm:$0xff] %v6882
        %6915 = vst [vmem:[%s467 + $0xe8] sm:$0xff] %v6883
        %6916 = vst [vmem:[%s467 + $0xf0] sm:$0xff] %v6884
        %6917 = vst [vmem:[%s467 + $0xf8] sm:$0xff] %v6885
        %s6918 = sand.u32 %s298, 1
        %s6919 = scalar_lea.sflag [#allocation4], %s6918
        %s6920 = sand.u32 %s298, 1
        %s6921 = smul.addr %s6920, 256
        %s6922 = scalar_lea.vmem [#allocation8], %s6921
        // Predicated region
        $region81: #{tpu_custom_call.1} parent=67 // pred_check
          %p6923 = pneg %p308
        $region82: #{tpu_custom_call.1} parent=67 // pred_check_branch
          %6925 = sbr.rel (%p6923) target = $region84
        $region83: #{tpu_custom_call.1} parent=67 // pred_region
          %s6926 = smul.u32 8, %s28
          %s6928 = ssub.s32 4096, 4096
          %6929 = vsyncadd %s6919, %s6928
          %s6930 = smul.addr %s6926, 4
          %s6931 = smul.addr %s6930, 128
          %s6932 = scalar_lea.hbm %s12, %s6931
          %s6933 = sshll.u32 %s6922, 4
          %s6934 = int_to_ptr.vmem [resolvable:$true] %s6933
          %6939 = dma.vmem_to_hbm [thread:$0]  %s6934, 4096, %s6932, %s6919, 512, 512, 32
        $region84: #{tpu_custom_call.1} parent=67 // pred_fallthru
          _
      $region68: #{tpu_custom_call.1} parent=5 // pred_fallthru
        _
      %p6940 = scmp.le.s32.totalorder 2, %s23
      // Predicated region
      $region85: #{tpu_custom_call.1} parent=5 // pred_check
        %p6941 = pneg %p6940
      $region86: #{tpu_custom_call.1} parent=5 // pred_check_branch
        %6943 = sbr.rel (%p6941) target = $region88
      $region87: #{tpu_custom_call.1} parent=5 // pred_region
        %s6944 = ssub.s32 %s23, 2
        // Predicated region
        $region89: #{tpu_custom_call.1} parent=87 // pred_check
          %p6945 = pneg %p314
        $region90: #{tpu_custom_call.1} parent=87 // pred_check_branch
          %6947 = sbr.rel (%p6945) target = $region92
        $region91: #{tpu_custom_call.1} parent=87 // pred_region
          %s6948 = sand.u32 %s299, 1
          %s6949 = scalar_lea.sflag [#allocation4], %s6948
          %s6950 = sand.u32 %s299, 1
          %s6951 = smul.addr %s6950, 256
          %s6952 = scalar_lea.vmem [#allocation8], %s6951
          %6953 = dma.done %s6949, 4096
        $region92: #{tpu_custom_call.1} parent=87 // pred_fallthru
          _
      $region88: #{tpu_custom_call.1} parent=5 // pred_fallthru
        _
    $region6: #{tpu_custom_call.1} parent=1 // loop_footer
      %s27 = sadd.s32 1, %s23
    $region7: #{tpu_custom_call.1} parent=1 // loop_footer_branch
      %22 = sbr.rel target = $region3
    $region8: #{tpu_custom_call.1} parent=1 // loop_exit
      _
    %6954 = vsyncpa [#allocation3], 1
    %s6955 = scalar_lea.sflag [#allocation3], 1
    %6956 = vsyncpa %s6955, 1
    %6957 = vsyncpa [#allocation6], 1
    %6958 = vsyncpa [#allocation4], 1
    %s6959 = scalar_lea.sflag [#allocation4], 1
    %6960 = vsyncpa %s6959, 1

</llo_original>
